<compile_context>
chip_gen: v5e
topology: v5e:2x2
jax: 0.10.0
libtpu: 0.0.40
codegen_flags: <defaults>
</compile_context>

<pallas_src>
import functools

import jax
import jax.numpy as jnp
import numpy as np
from jax.experimental import pallas as pl
from jax.experimental.pallas import tpu as pltpu


def _res_stack_kernel(x_ref, w1_ref, w2_ref, o_ref, pad_ref, *, H, W, C, Chid, L,
                      mm_dtype):
    """Fused ResStack: L x ( x + Conv1x1(ReLU(Conv3x3(ReLU(x)))) ), then ReLU."""
    HW = H * W

    # Zero the padded scratch once per grid step.  The border stays zero; only the
    # interior is rewritten per layer.  (Unconditional rather than pl.when(step==0)
    # so it is also correct if the 'parallel' batch axis is split across cores.)
    pad_ref[...] = jnp.zeros_like(pad_ref)

    # Load the activation tile once; all element-wise work stays in f32.
    x = x_ref[0].astype(jnp.float32)                        # (H*W, C)

    for l in range(L):                                      # static unroll over layers
        a = jnp.maximum(x, 0.0)                             # ReLU before conv3x3 (VPU, f32)

        # Write the ReLU'd activation into the interior of the zero-padded scratch
        # (padding=1 of the 3x3 conv).  Lane dim is full, sublane offset 1 -> masked vst.
        pad_ref[1:H + 1, 1:W + 1, :] = a.reshape(H, W, C)
        ap = pad_ref[...]                                   # (H+2, W+2, C), f32

        # im2col: the 9 shifted taps concatenated along channels -> one fat matmul
        # with K = 9*C instead of 9 thin K=C matmuls.
        patches = jnp.concatenate(
            [ap[dy:dy + H, dx:dx + W, :] for dy in range(3) for dx in range(3)],
            axis=-1).reshape(HW, 9 * C)

        # conv3x3 as a single MXU matmul (bf16 operands, f32 accumulation).
        h = jnp.dot(patches.astype(mm_dtype), w1_ref[l],
                    preferred_element_type=jnp.float32)     # (H*W, Chid)
        h = jnp.maximum(h, 0.0)                             # ReLU before conv1x1 (f32)

        # conv1x1 as a matmul.
        y = jnp.dot(h.astype(mm_dtype), w2_ref[l],
                    preferred_element_type=jnp.float32)     # (H*W, C)

        x = x + y                                           # residual add (f32)

    # ResStack's trailing F.relu, stored directly into the output view.
    o_ref[0] = jnp.maximum(x, 0.0).astype(o_ref.dtype)


def res_stack(x_nhwc, w1_all, w2_all):
    """Fused ResStack forward.

    x_nhwc : (N, H, W, C) activations (NHWC).
    w1_all : (L, 9*C, Chid) im2col-ordered 3x3 conv weights (matmul dtype).
    w2_all : (L, Chid, C)   1x1 conv weights (matmul dtype).
    """
    N, H, W, C = x_nhwc.shape
    L, K9, Chid = w1_all.shape
    assert K9 == 9 * C, "conv3x3 weight must be laid out as (L, 9*Cin, Chid)"
    # The residual add requires out_channels == in_channels (as in the module).
    assert w2_all.shape == (L, Chid, C), "conv1x1 weight must be (L, Chid, Cout==Cin)"

    # Flat (N, H*W, C) view of the contiguous NHWC buffer (free wrapper reshape);
    # the kernel consumes / produces exactly this shape, so there is no extra
    # in-kernel relayout at load/store time.
    x_flat = x_nhwc.reshape(N, H * W, C)

    kernel = functools.partial(_res_stack_kernel, H=H, W=W, C=C, Chid=Chid, L=L,
                               mm_dtype=w1_all.dtype)

    out_flat = pl.pallas_call(
        kernel,
        out_shape=jax.ShapeDtypeStruct((N, H * W, C), x_nhwc.dtype),
        grid_spec=pltpu.PrefetchScalarGridSpec(
            num_scalar_prefetch=0,
            grid=(N,),                                           # one image per step
            in_specs=[
                pl.BlockSpec((1, H * W, C), lambda n: (n, 0, 0)),
                # Constant index_map -> weights DMA'd once, resident in VMEM.
                pl.BlockSpec((L, 9 * C, Chid), lambda n: (0, 0, 0)),
                pl.BlockSpec((L, Chid, C), lambda n: (0, 0, 0)),
            ],
            out_specs=pl.BlockSpec((1, H * W, C), lambda n: (n, 0, 0)),
            scratch_shapes=[pltpu.VMEM((H + 2, W + 2, C), jnp.float32)],
        ),
        compiler_params=pltpu.CompilerParams(
            dimension_semantics=("parallel",),       # shards batch across TCs (v7x)
            vmem_limit_bytes=32 * 1024 * 1024,       # explicit, safe on v5e/v6e/v7x
        ),
    )(x_flat, w1_all, w2_all)

    return out_flat.reshape(N, H, W, C)


def init_params(key, in_ch, out_ch, hid_ch, num_layers):
    """Deterministic synthetic weights in the native PyTorch conv layouts."""
    params = []
    for _ in range(num_layers):
        key, k1, k2 = jax.random.split(key, 3)
        # Conv2d(in, hid, 3, padding=1, bias=False): weight (hid, in, 3, 3)
        w1 = jax.random.normal(k1, (hid_ch, in_ch, 3, 3), jnp.float32) * 0.1
        # Conv2d(hid, out, 1, bias=False): weight (out, hid, 1, 1)
        w2 = jax.random.normal(k2, (out_ch, hid_ch, 1, 1), jnp.float32) * 0.1
        params.append((w1, w2))
    return params


def pack_params(params_oihw, matmul_dtype=jnp.bfloat16):
    """PyTorch-layout conv weights -> stacked, im2col-ordered matmul weights."""
    w1_list, w2_list = [], []
    for w1_oihw, w2_oihw in params_oihw:
        chid, cin, _, _ = w1_oihw.shape
        # (Chid, Cin, 3, 3) -> (3, 3, Cin, Chid) -> (9*Cin, Chid); row order (dy, dx, ci)
        # matches the tap order used in the kernel's im2col concatenation.
        w1_m = jnp.transpose(w1_oihw, (2, 3, 1, 0)).reshape(9 * cin, chid)
        # (Cout, Chid, 1, 1) -> (Chid, Cout)
        w2_m = jnp.transpose(w2_oihw[:, :, 0, 0], (1, 0))
        w1_list.append(w1_m)
        w2_list.append(w2_m)
    return (jnp.stack(w1_list).astype(matmul_dtype),
            jnp.stack(w2_list).astype(matmul_dtype))


def ref_res_stack_nchw(x_nchw, params_oihw, matmul_dtype):
    """Pure-JAX reference of the PyTorch forward (NCHW), matching the kernel's
    matmul dtype (operands cast to matmul_dtype, accumulation in f32)."""
    x = x_nchw.astype(jnp.float32)
    for w1_oihw, w2_oihw in params_oihw:
        a = jax.nn.relu(x).astype(matmul_dtype)
        h = jax.lax.conv_general_dilated(
            a, w1_oihw.astype(matmul_dtype), (1, 1), ((1, 1), (1, 1)),
            dimension_numbers=("NCHW", "OIHW", "NCHW"),
            preferred_element_type=jnp.float32)
        h = jax.nn.relu(h).astype(matmul_dtype)
        y = jax.lax.conv_general_dilated(
            h, w2_oihw.astype(matmul_dtype), (1, 1), ((0, 0), (0, 0)),
            dimension_numbers=("NCHW", "OIHW", "NCHW"),
            preferred_element_type=jnp.float32)
        x = x + y
    return jax.nn.relu(x)


if __name__ == "__main__":
    # ResStack(4, 4, 8, 2) on a (2, 4, 16, 16) NCHW input (out_channels must equal
    # in_channels for the residual add, as in the original module).
    N, C, H, W = 2, 4, 16, 16
    hidden = 8
    num_res_layers = 2

    key = jax.random.PRNGKey(0)
    key, kx = jax.random.split(key)
    x_nchw = jax.random.normal(kx, (N, C, H, W), jnp.float32)
    params_oihw = init_params(key, C, C, hidden, num_res_layers)

    # NCHW -> NHWC (layout glue outside the kernel).
    x_nhwc = jnp.transpose(x_nchw, (0, 2, 3, 1))

    # --- f32 matmul path: strict numerical check against the exact reference. ---
    w1_f32, w2_f32 = pack_params(params_oihw, jnp.float32)
    out_f32 = jnp.transpose(res_stack(x_nhwc, w1_f32, w2_f32), (0, 3, 1, 2))
    jax.block_until_ready(out_f32)
    ref_f32 = ref_res_stack_nchw(x_nchw, params_oihw, jnp.float32)
    np.testing.assert_allclose(np.asarray(out_f32), np.asarray(ref_f32),
                               rtol=1e-4, atol=1e-4)

    # --- bf16 matmul path (recommended on v6e/v7x): checked against a bf16-aware
    #     reference (same operand casts, f32 accumulation). ---
    w1_bf16, w2_bf16 = pack_params(params_oihw, jnp.bfloat16)
    out_bf16 = jnp.transpose(res_stack(x_nhwc, w1_bf16, w2_bf16), (0, 3, 1, 2))
    jax.block_until_ready(out_bf16)
    ref_bf16 = ref_res_stack_nchw(x_nchw, params_oihw, jnp.bfloat16)
    np.testing.assert_allclose(np.asarray(out_bf16), np.asarray(ref_bf16),
                               rtol=2e-3, atol=2e-3)

    print("KERNEL_OK")
</pallas_src>

<mosaic_0001>
module attributes {stable_mosaic.version = 11 : i64} {
  func.func @_res_stack_kernel(%arg0: i32, %arg1: memref<1x256x4xf32, #tpu.memory_space<vmem>>, %arg2: memref<2x36x8xf32, #tpu.memory_space<vmem>>, %arg3: memref<2x8x4xf32, #tpu.memory_space<vmem>>, %arg4: memref<1x256x4xf32, #tpu.memory_space<vmem>>, %arg5: memref<18x18x4xf32, #tpu.memory_space<vmem>>) attributes {dimension_semantics = [#tpu.dimension_semantics<parallel>], iteration_bounds = array<i64: 2>, scalar_prefetch = 0 : i64, scratch_operands = 1 : i64, tpu.core_type = #tpu.core_type<tc>, window_params = [{transform_indices = @transform_0, window_bounds = array<i64: 1, 256, 4>}, {pipeline_mode = #tpu.pipeline_mode<synchronous>, transform_indices = @transform_1, window_bounds = array<i64: 2, 36, 8>}, {pipeline_mode = #tpu.pipeline_mode<synchronous>, transform_indices = @transform_2, window_bounds = array<i64: 2, 8, 4>}, {transform_indices = @transform_3, window_bounds = array<i64: 1, 256, 4>}]} {
    %cst = arith.constant 0.000000e+00 : f32
    %0 = vector.broadcast %cst : f32 to vector<18x18x4xf32>
    %c0 = arith.constant 0 : index
    %c0_0 = arith.constant 0 : index
    %c0_1 = arith.constant 0 : index
    %1 = vector.load %arg5[%c0, %c0_0, %c0_1] : memref<18x18x4xf32, #tpu.memory_space<vmem>>, vector<18x18x4xf32>
    tpu.vector_store %arg5[%c0, %c0_0, %c0_1], %0 {strides = array<i32>} : memref<18x18x4xf32, #tpu.memory_space<vmem>>, vector<18x18x4xf32>,
    %c0_2 = arith.constant 0 : index
    %c0_3 = arith.constant 0 : index
    %c0_4 = arith.constant 0 : index
    %2 = vector.load %arg1[%c0_2, %c0_3, %c0_4] : memref<1x256x4xf32, #tpu.memory_space<vmem>>, vector<1x256x4xf32>
    %3 = vector.shape_cast %2 : vector<1x256x4xf32> to vector<256x4xf32>
    %cst_5 = arith.constant 0.000000e+00 : f32
    %4 = vector.broadcast %cst_5 : f32 to vector<256x4xf32>
    %5 = arith.maximumf %3, %4 : vector<256x4xf32>
    %6 = vector.shape_cast %5 : vector<256x4xf32> to vector<16x16x4xf32>
    %c1 = arith.constant 1 : index
    %c1_6 = arith.constant 1 : index
    %c0_7 = arith.constant 0 : index
    %7 = vector.load %arg5[%c1, %c1_6, %c0_7] : memref<18x18x4xf32, #tpu.memory_space<vmem>>, vector<16x16x4xf32>
    tpu.vector_store %arg5[%c1, %c1_6, %c0_7], %6 {strides = array<i32>} : memref<18x18x4xf32, #tpu.memory_space<vmem>>, vector<16x16x4xf32>,
    %c0_8 = arith.constant 0 : index
    %c0_9 = arith.constant 0 : index
    %c0_10 = arith.constant 0 : index
    %8 = vector.load %arg5[%c0_8, %c0_9, %c0_10] : memref<18x18x4xf32, #tpu.memory_space<vmem>>, vector<18x18x4xf32>
    %9 = vector.extract_strided_slice %8 {offsets = [0, 0, 0], sizes = [16, 16, 4], strides = [1, 1, 1]} : vector<18x18x4xf32> to vector<16x16x4xf32>
    %10 = vector.extract_strided_slice %8 {offsets = [0, 1, 0], sizes = [16, 16, 4], strides = [1, 1, 1]} : vector<18x18x4xf32> to vector<16x16x4xf32>
    %11 = vector.extract_strided_slice %8 {offsets = [0, 2, 0], sizes = [16, 16, 4], strides = [1, 1, 1]} : vector<18x18x4xf32> to vector<16x16x4xf32>
    %12 = vector.extract_strided_slice %8 {offsets = [1, 0, 0], sizes = [16, 16, 4], strides = [1, 1, 1]} : vector<18x18x4xf32> to vector<16x16x4xf32>
    %13 = vector.extract_strided_slice %8 {offsets = [1, 1, 0], sizes = [16, 16, 4], strides = [1, 1, 1]} : vector<18x18x4xf32> to vector<16x16x4xf32>
    %14 = vector.extract_strided_slice %8 {offsets = [1, 2, 0], sizes = [16, 16, 4], strides = [1, 1, 1]} : vector<18x18x4xf32> to vector<16x16x4xf32>
    %15 = vector.extract_strided_slice %8 {offsets = [2, 0, 0], sizes = [16, 16, 4], strides = [1, 1, 1]} : vector<18x18x4xf32> to vector<16x16x4xf32>
    %16 = vector.extract_strided_slice %8 {offsets = [2, 1, 0], sizes = [16, 16, 4], strides = [1, 1, 1]} : vector<18x18x4xf32> to vector<16x16x4xf32>
    %17 = vector.extract_strided_slice %8 {offsets = [2, 2, 0], sizes = [16, 16, 4], strides = [1, 1, 1]} : vector<18x18x4xf32> to vector<16x16x4xf32>
    %18 = tpu.concatenate %9, %10, %11, %12, %13, %14, %15, %16, %17 in 2 : vector<16x16x4xf32>, vector<16x16x4xf32>, vector<16x16x4xf32>, vector<16x16x4xf32>, vector<16x16x4xf32>, vector<16x16x4xf32>, vector<16x16x4xf32>, vector<16x16x4xf32>, vector<16x16x4xf32> -> vector<16x16x36xf32>
    %19 = vector.shape_cast %18 : vector<16x16x36xf32> to vector<256x36xf32>
    %c0_11 = arith.constant 0 : index
    %c0_12 = arith.constant 0 : index
    %c0_13 = arith.constant 0 : index
    %20 = vector.load %arg2[%c0_11, %c0_12, %c0_13] : memref<2x36x8xf32, #tpu.memory_space<vmem>>, vector<1x36x8xf32>
    %21 = vector.shape_cast %20 : vector<1x36x8xf32> to vector<36x8xf32>
    %cst_14 = arith.constant dense<0.000000e+00> : vector<256x8xf32>
    %22 = tpu.matmul %19, %21, %cst_14 {dimension_numbers = #tpu.dot_dimension_numbers<[1], [0], [0], [1], [0, 0, 1, 1], [], []>} : vector<256x36xf32>, vector<36x8xf32>, vector<256x8xf32> -> vector<256x8xf32>
    %cst_15 = arith.constant 0.000000e+00 : f32
    %23 = vector.broadcast %cst_15 : f32 to vector<256x8xf32>
    %24 = arith.maximumf %22, %23 : vector<256x8xf32>
    %c0_16 = arith.constant 0 : index
    %c0_17 = arith.constant 0 : index
    %c0_18 = arith.constant 0 : index
    %25 = vector.load %arg3[%c0_16, %c0_17, %c0_18] : memref<2x8x4xf32, #tpu.memory_space<vmem>>, vector<1x8x4xf32>
    %26 = vector.shape_cast %25 : vector<1x8x4xf32> to vector<8x4xf32>
    %cst_19 = arith.constant dense<0.000000e+00> : vector<256x4xf32>
    %27 = tpu.matmul %24, %26, %cst_19 {dimension_numbers = #tpu.dot_dimension_numbers<[1], [0], [0], [1], [0, 0, 1, 1], [], []>} : vector<256x8xf32>, vector<8x4xf32>, vector<256x4xf32> -> vector<256x4xf32>
    %28 = arith.addf %3, %27 : vector<256x4xf32>
    %cst_20 = arith.constant 0.000000e+00 : f32
    %29 = vector.broadcast %cst_20 : f32 to vector<256x4xf32>
    %30 = arith.maximumf %28, %29 : vector<256x4xf32>
    %31 = vector.shape_cast %30 : vector<256x4xf32> to vector<16x16x4xf32>
    %c1_21 = arith.constant 1 : index
    %c1_22 = arith.constant 1 : index
    %c0_23 = arith.constant 0 : index
    %32 = vector.load %arg5[%c1_21, %c1_22, %c0_23] : memref<18x18x4xf32, #tpu.memory_space<vmem>>, vector<16x16x4xf32>
    tpu.vector_store %arg5[%c1_21, %c1_22, %c0_23], %31 {strides = array<i32>} : memref<18x18x4xf32, #tpu.memory_space<vmem>>, vector<16x16x4xf32>,
    %c0_24 = arith.constant 0 : index
    %c0_25 = arith.constant 0 : index
    %c0_26 = arith.constant 0 : index
    %33 = vector.load %arg5[%c0_24, %c0_25, %c0_26] : memref<18x18x4xf32, #tpu.memory_space<vmem>>, vector<18x18x4xf32>
    %34 = vector.extract_strided_slice %33 {offsets = [0, 0, 0], sizes = [16, 16, 4], strides = [1, 1, 1]} : vector<18x18x4xf32> to vector<16x16x4xf32>
    %35 = vector.extract_strided_slice %33 {offsets = [0, 1, 0], sizes = [16, 16, 4], strides = [1, 1, 1]} : vector<18x18x4xf32> to vector<16x16x4xf32>
    %36 = vector.extract_strided_slice %33 {offsets = [0, 2, 0], sizes = [16, 16, 4], strides = [1, 1, 1]} : vector<18x18x4xf32> to vector<16x16x4xf32>
    %37 = vector.extract_strided_slice %33 {offsets = [1, 0, 0], sizes = [16, 16, 4], strides = [1, 1, 1]} : vector<18x18x4xf32> to vector<16x16x4xf32>
    %38 = vector.extract_strided_slice %33 {offsets = [1, 1, 0], sizes = [16, 16, 4], strides = [1, 1, 1]} : vector<18x18x4xf32> to vector<16x16x4xf32>
    %39 = vector.extract_strided_slice %33 {offsets = [1, 2, 0], sizes = [16, 16, 4], strides = [1, 1, 1]} : vector<18x18x4xf32> to vector<16x16x4xf32>
    %40 = vector.extract_strided_slice %33 {offsets = [2, 0, 0], sizes = [16, 16, 4], strides = [1, 1, 1]} : vector<18x18x4xf32> to vector<16x16x4xf32>
    %41 = vector.extract_strided_slice %33 {offsets = [2, 1, 0], sizes = [16, 16, 4], strides = [1, 1, 1]} : vector<18x18x4xf32> to vector<16x16x4xf32>
    %42 = vector.extract_strided_slice %33 {offsets = [2, 2, 0], sizes = [16, 16, 4], strides = [1, 1, 1]} : vector<18x18x4xf32> to vector<16x16x4xf32>
    %43 = tpu.concatenate %34, %35, %36, %37, %38, %39, %40, %41, %42 in 2 : vector<16x16x4xf32>, vector<16x16x4xf32>, vector<16x16x4xf32>, vector<16x16x4xf32>, vector<16x16x4xf32>, vector<16x16x4xf32>, vector<16x16x4xf32>, vector<16x16x4xf32>, vector<16x16x4xf32> -> vector<16x16x36xf32>
    %44 = vector.shape_cast %43 : vector<16x16x36xf32> to vector<256x36xf32>
    %c1_27 = arith.constant 1 : index
    %c0_28 = arith.constant 0 : index
    %c0_29 = arith.constant 0 : index
    %45 = vector.load %arg2[%c1_27, %c0_28, %c0_29] : memref<2x36x8xf32, #tpu.memory_space<vmem>>, vector<1x36x8xf32>
    %46 = vector.shape_cast %45 : vector<1x36x8xf32> to vector<36x8xf32>
    %cst_30 = arith.constant dense<0.000000e+00> : vector<256x8xf32>
    %47 = tpu.matmul %44, %46, %cst_30 {dimension_numbers = #tpu.dot_dimension_numbers<[1], [0], [0], [1], [0, 0, 1, 1], [], []>} : vector<256x36xf32>, vector<36x8xf32>, vector<256x8xf32> -> vector<256x8xf32>
    %cst_31 = arith.constant 0.000000e+00 : f32
    %48 = vector.broadcast %cst_31 : f32 to vector<256x8xf32>
    %49 = arith.maximumf %47, %48 : vector<256x8xf32>
    %c1_32 = arith.constant 1 : index
    %c0_33 = arith.constant 0 : index
    %c0_34 = arith.constant 0 : index
    %50 = vector.load %arg3[%c1_32, %c0_33, %c0_34] : memref<2x8x4xf32, #tpu.memory_space<vmem>>, vector<1x8x4xf32>
    %51 = vector.shape_cast %50 : vector<1x8x4xf32> to vector<8x4xf32>
    %cst_35 = arith.constant dense<0.000000e+00> : vector<256x4xf32>
    %52 = tpu.matmul %49, %51, %cst_35 {dimension_numbers = #tpu.dot_dimension_numbers<[1], [0], [0], [1], [0, 0, 1, 1], [], []>} : vector<256x8xf32>, vector<8x4xf32>, vector<256x4xf32> -> vector<256x4xf32>
    %53 = arith.addf %28, %52 : vector<256x4xf32>
    %cst_36 = arith.constant 0.000000e+00 : f32
    %54 = vector.broadcast %cst_36 : f32 to vector<256x4xf32>
    %55 = arith.maximumf %53, %54 : vector<256x4xf32>
    %c0_37 = arith.constant 0 : index
    %c0_38 = arith.constant 0 : index
    %c0_39 = arith.constant 0 : index
    %56 = vector.load %arg4[%c0_37, %c0_38, %c0_39] : memref<1x256x4xf32, #tpu.memory_space<vmem>>, vector<1x256x4xf32>
    %57 = vector.shape_cast %56 : vector<1x256x4xf32> to vector<256x4xf32>
    %58 = vector.shape_cast %55 : vector<256x4xf32> to vector<1x256x4xf32>
    tpu.vector_store %arg4[%c0_37, %c0_38, %c0_39], %58 {strides = array<i32>} : memref<1x256x4xf32, #tpu.memory_space<vmem>>, vector<1x256x4xf32>,
    return
  }
  func.func @transform_0(%arg0: i32) -> (i32, i32, i32) {
    %c0_i32 = arith.constant 0 : i32
    %c0_i32_0 = arith.constant 0 : i32
    %c0_i32_1 = arith.constant 0 : i32
    return %arg0, %c0_i32, %c0_i32_0 : i32, i32, i32
  }
  func.func @transform_1(%arg0: i32) -> (i32, i32, i32) {
    %c0_i32 = arith.constant 0 : i32
    %c0_i32_0 = arith.constant 0 : i32
    %c0_i32_1 = arith.constant 0 : i32
    %c0_i32_2 = arith.constant 0 : i32
    return %c0_i32, %c0_i32_0, %c0_i32_1 : i32, i32, i32
  }
  func.func @transform_2(%arg0: i32) -> (i32, i32, i32) {
    %c0_i32 = arith.constant 0 : i32
    %c0_i32_0 = arith.constant 0 : i32
    %c0_i32_1 = arith.constant 0 : i32
    %c0_i32_2 = arith.constant 0 : i32
    return %c0_i32, %c0_i32_0, %c0_i32_1 : i32, i32, i32
  }
  func.func @transform_3(%arg0: i32) -> (i32, i32, i32) {
    %c0_i32 = arith.constant 0 : i32
    %c0_i32_0 = arith.constant 0 : i32
    %c0_i32_1 = arith.constant 0 : i32
    return %arg0, %c0_i32, %c0_i32_0 : i32, i32, i32
  }
}

</mosaic_0001>

<llo_original>
// kernel: tpu_custom_call.1
$region0: #{tpu_custom_call.1}
  #allocation0 [shape = 'u32[]', space=smem, size = 0x4, offset = 0x4, fixed_abs, tag = 'smem constant byte address 0x4 - core index']
  #allocation1 [shape = 'u32[72,128]{1,0:T(1,128)}', space=vmem, size = 0x9000, scoped, tag = 'internal scratch']
  #allocation2 [shape = 'f32[18,18,4]{2,1,0:T(8,128)}', space=vmem, size = 0x36000, scoped, tag = 'scratch operand']
  %s0 = inlined_call_operand.vmem [shape: f32[2,256,4], index: 0, kind: input, shape index: {}]
  %s1 = inlined_call_operand.vmem [shape: f32[2,36,8], index: 1, kind: input, shape index: {}]
  %s2 = inlined_call_operand.vmem [shape: f32[2,8,4], index: 2, kind: input, shape index: {}]
  %s3 = inlined_call_operand.vmem [shape: f32[2,256,4], index: 3, kind: output, shape index: {}]
  %s4 = sld [smem:[#allocation0]]
  $region45: #{tpu_custom_call.1} parent=0
    _
  %s6 = ssub.s32 1, %s4
  %s7 = scalar_select 0, %s6, %s4
  loop: start=0, step=1, limit=4
  $region2: #{tpu_custom_call.1} parent=0 // loop_pre_header
    _
  $region3: #{tpu_custom_call.1} parent=0 // loop_header
    %s9 = sphi 0, %s13
    %p10 = scmp.ge.s32.totalorder %s9, 4
    %s19 = sphi 0, %s21
    %s22 = sphi 0, %s19
    %s23 = sphi 0, %s22
    %s39 = sphi 0, %s23
    %s43 = sphi 0, %s43
    %s45 = sphi 0, %s43
    %s46 = sphi 0, %s45
    %s60 = sphi 0, %s46
    %s64 = sphi 0, %s64
    %s66 = sphi 0, %s64
    %s67 = sphi 0, %s66
    %s81 = sphi 0, %s67
    %s87 = sphi 0, %s89
    %s90 = sphi 0, %s87
    %s91 = sphi 0, %s90
    %s107 = sphi 0, %s91
  $region4: #{tpu_custom_call.1} parent=0 // loop_header_branch
    %12 = sbr.rel (%p10) target = $region8
  $region5: #{tpu_custom_call.1} parent=0 // loop_body
    %s14 = ssub.s32 %s9, 1
    %s15 = ssub.s32 %s9, 2
    %s16 = sadd.s32 %s9, 1
    %s17 = ssub.s32 %s9, %s16
    %p18 = scmp.eq.s32.totalorder %s17, 0
    %s20 = sadd.s32 %s19, 1
    %s21 = scalar_select %p18, %s19, %s20
    %p24 = pneg %p18
    %p25 = scmp.eq.s32.totalorder %s9, 1
    %p26 = por %p24, %p25
    %p27 = scmp.ne.s32.totalorder %s19, %s22
    %p28 = scmp.eq.s32.totalorder %s9, 0
    %p29 = por %p27, %p28
    %p30 = scmp.ne.s32.totalorder %s19, %s22
    %p31 = scmp.eq.s32.totalorder %s14, 1
    %p32 = por %p30, %p31
    %p33 = scmp.ne.s32.totalorder %s22, %s23
    %p34 = scmp.eq.s32.totalorder %s14, 0
    %p35 = por %p33, %p34
    %p36 = scmp.ne.s32.totalorder %s22, %s23
    %p37 = scmp.eq.s32.totalorder %s15, 1
    %p38 = por %p36, %p37
    %p40 = scmp.ne.s32.totalorder %s23, %s39
    %p41 = scmp.eq.s32.totalorder %s15, 0
    %p42 = por %p40, %p41
    %s44 = sadd.s32 %s43, 1
    %p47 = scmp.eq.s32.totalorder %s9, 1
    %p48 = scmp.ne.s32.totalorder %s43, %s45
    %p49 = scmp.eq.s32.totalorder %s9, 0
    %p50 = por %p48, %p49
    %p51 = scmp.ne.s32.totalorder %s43, %s45
    %p52 = scmp.eq.s32.totalorder %s14, 1
    %p53 = por %p51, %p52
    %p54 = scmp.ne.s32.totalorder %s45, %s46
    %p55 = scmp.eq.s32.totalorder %s14, 0
    %p56 = por %p54, %p55
    %p57 = scmp.ne.s32.totalorder %s45, %s46
    %p58 = scmp.eq.s32.totalorder %s15, 1
    %p59 = por %p57, %p58
    %p61 = scmp.ne.s32.totalorder %s46, %s60
    %p62 = scmp.eq.s32.totalorder %s15, 0
    %p63 = por %p61, %p62
    %s65 = sadd.s32 %s64, 1
    %p68 = scmp.eq.s32.totalorder %s9, 1
    %p69 = scmp.ne.s32.totalorder %s64, %s66
    %p70 = scmp.eq.s32.totalorder %s9, 0
    %p71 = por %p69, %p70
    %p72 = scmp.ne.s32.totalorder %s64, %s66
    %p73 = scmp.eq.s32.totalorder %s14, 1
    %p74 = por %p72, %p73
    %p75 = scmp.ne.s32.totalorder %s66, %s67
    %p76 = scmp.eq.s32.totalorder %s14, 0
    %p77 = por %p75, %p76
    %p78 = scmp.ne.s32.totalorder %s66, %s67
    %p79 = scmp.eq.s32.totalorder %s15, 1
    %p80 = por %p78, %p79
    %p82 = scmp.ne.s32.totalorder %s67, %s81
    %p83 = scmp.eq.s32.totalorder %s15, 0
    %p84 = por %p82, %p83
    %s85 = ssub.s32 %s9, %s16
    %p86 = scmp.eq.s32.totalorder %s85, 0
    %s88 = sadd.s32 %s87, 1
    %s89 = scalar_select %p86, %s87, %s88
    %p92 = pneg %p86
    %p93 = scmp.eq.s32.totalorder %s9, 1
    %p94 = por %p92, %p93
    %p95 = scmp.ne.s32.totalorder %s87, %s90
    %p96 = scmp.eq.s32.totalorder %s9, 0
    %p97 = por %p95, %p96
    %p98 = scmp.ne.s32.totalorder %s87, %s90
    %p99 = scmp.eq.s32.totalorder %s14, 1
    %p100 = por %p98, %p99
    %p101 = scmp.ne.s32.totalorder %s90, %s91
    %p102 = scmp.eq.s32.totalorder %s14, 0
    %p103 = por %p101, %p102
    %p104 = scmp.ne.s32.totalorder %s90, %s91
    %p105 = scmp.eq.s32.totalorder %s15, 1
    %p106 = por %p104, %p105
    %p108 = scmp.ne.s32.totalorder %s91, %s107
    %p109 = scmp.eq.s32.totalorder %s15, 0
    %p110 = por %p108, %p109
    %p111 = scmp.le.s32.totalorder 1, %s9
    %p112 = scmp.lt.s32.totalorder %s9, 3
    %p113 = pnand %p111, %p112
    %p114 = pneg %p113
    // Predicated region
    $region9: #{tpu_custom_call.1} parent=5 // pred_check
      _
    $region10: #{tpu_custom_call.1} parent=5 // pred_check_branch
      %116 = sbr.rel (%p113) target = $region12
    $region11: #{tpu_custom_call.1} parent=5 // pred_region
      %s117 = ssub.s32 %s9, 1
      // Predicated region
      $region13: #{tpu_custom_call.1} parent=11 // pred_check
        %p118 = pneg %p56
      $region14: #{tpu_custom_call.1} parent=11 // pred_check_branch
        %120 = sbr.rel (%p118) target = $region16
      $region15: #{tpu_custom_call.1} parent=11 // pred_region
        _
      $region16: #{tpu_custom_call.1} parent=11 // pred_fallthru
        _
      // Predicated region
      $region17: #{tpu_custom_call.1} parent=11 // pred_check
        %p121 = pneg %p77
      $region18: #{tpu_custom_call.1} parent=11 // pred_check_branch
        %123 = sbr.rel (%p121) target = $region20
      $region19: #{tpu_custom_call.1} parent=11 // pred_region
        _
      $region20: #{tpu_custom_call.1} parent=11 // pred_fallthru
        _
    $region12: #{tpu_custom_call.1} parent=5 // pred_fallthru
      _
    %p124 = scmp.lt.s32.totalorder %s9, 2
    // Predicated region
    $region21: #{tpu_custom_call.1} parent=5 // pred_check
      %p125 = pneg %p124
    $region22: #{tpu_custom_call.1} parent=5 // pred_check_branch
      %127 = sbr.rel (%p125) target = $region24
    $region23: #{tpu_custom_call.1} parent=5 // pred_region
      // Predicated region
      $region25: #{tpu_custom_call.1} parent=23 // pred_check
        %p128 = pneg %p29
      $region26: #{tpu_custom_call.1} parent=23 // pred_check_branch
        %130 = sbr.rel (%p128) target = $region28
      $region27: #{tpu_custom_call.1} parent=23 // pred_region
        %p131 = scmp.lt.s32.totalorder %s9, 1
        %s132 = scalar_select %p131, %s9, 1
        %s133 = smul.addr %s132, 32
        %s134 = smul.addr %s133, 8
        %s135 = scalar_lea.vmem %s0, %s134
      $region28: #{tpu_custom_call.1} parent=23 // pred_fallthru
        _
    $region24: #{tpu_custom_call.1} parent=5 // pred_fallthru
      _
    %p136 = scmp.le.s32.totalorder 1, %s9
    %p137 = scmp.lt.s32.totalorder %s9, 3
    %p138 = pnand %p136, %p137
    %p139 = pneg %p138
    // Predicated region
    $region29: #{tpu_custom_call.1} parent=5 // pred_check
      _
    $region30: #{tpu_custom_call.1} parent=5 // pred_check_branch
      %141 = sbr.rel (%p138) target = $region32
    $region31: #{tpu_custom_call.1} parent=5 // pred_region
      %s142 = ssub.s32 %s9, 1
      %p143 = scmp.lt.s32.totalorder %s14, 1
      %s144 = scalar_select %p143, %s14, 1
      %s145 = smul.addr %s144, 32
      %s146 = smul.addr %s145, 8
      %s147 = scalar_lea.vmem %s0, %s146
      %p148 = pneg %p35
      %p149 = pneg %p32
      %p150 = pneg %p56
      %p151 = pneg %p53
      %p152 = pneg %p77
      %p153 = pneg %p74
      %p154 = pneg %p103
      %p155 = pneg %p100
      %p156 = scmp.lt.s32.totalorder %s14, 1
      %s157 = scalar_select %p156, %s14, 1
      %s158 = smul.addr %s157, 32
      %s159 = smul.addr %s158, 8
      %s160 = scalar_lea.vmem %s3, %s159
      %p161 = scmp.lt.s32.totalorder %s14, 1
      %s162 = scalar_select %p161, %s14, 1
      %s163 = smul.addr %s162, 32
      %s164 = smul.addr %s163, 8
      %s165 = scalar_lea.vmem %s0, %s164
      %p166 = scmp.lt.s32.totalorder %s14, 1
      %s167 = scalar_select %p166, %s14, 1
      %s168 = smul.addr %s167, 32
      %s169 = smul.addr %s168, 8
      %s170 = scalar_lea.vmem %s3, %s169
      %vm171 = vcmask 31744
      %172 = vst.msk [vmem:[#allocation2] sm:$0xff] %vm171, 0.0
      %173 = vst.msk [vmem:[#allocation2 + $0x8] sm:$0xff] %vm171, 0.0
      %vm174 = vcmask 25600
      %175 = vst.msk [vmem:[#allocation2 + $0x10] sm:$0x3] %vm174, 0.0
      %176 = vst.msk [vmem:[#allocation2 + $0x18] sm:$0xff] %vm171, 0.0
      %177 = vst.msk [vmem:[#allocation2 + $0x20] sm:$0xff] %vm171, 0.0
      %178 = vst.msk [vmem:[#allocation2 + $0x28] sm:$0x3] %vm174, 0.0
      %179 = vst.msk [vmem:[#allocation2 + $0x30] sm:$0xff] %vm171, 0.0
      %180 = vst.msk [vmem:[#allocation2 + $0x38] sm:$0xff] %vm171, 0.0
      %181 = vst.msk [vmem:[#allocation2 + $0x40] sm:$0x3] %vm174, 0.0
      %182 = vst.msk [vmem:[#allocation2 + $0x48] sm:$0xff] %vm171, 0.0
      %183 = vst.msk [vmem:[#allocation2 + $0x50] sm:$0xff] %vm171, 0.0
      %184 = vst.msk [vmem:[#allocation2 + $0x58] sm:$0x3] %vm174, 0.0
      %185 = vst.msk [vmem:[#allocation2 + $0x60] sm:$0xff] %vm171, 0.0
      %186 = vst.msk [vmem:[#allocation2 + $0x68] sm:$0xff] %vm171, 0.0
      %187 = vst.msk [vmem:[#allocation2 + $0x70] sm:$0x3] %vm174, 0.0
      %188 = vst.msk [vmem:[#allocation2 + $0x78] sm:$0xff] %vm171, 0.0
      %189 = vst.msk [vmem:[#allocation2 + $0x80] sm:$0xff] %vm171, 0.0
      %190 = vst.msk [vmem:[#allocation2 + $0x88] sm:$0x3] %vm174, 0.0
      %191 = vst.msk [vmem:[#allocation2 + $0x90] sm:$0xff] %vm171, 0.0
      %192 = vst.msk [vmem:[#allocation2 + $0x98] sm:$0xff] %vm171, 0.0
      %193 = vst.msk [vmem:[#allocation2 + $0xa0] sm:$0x3] %vm174, 0.0
      %194 = vst.msk [vmem:[#allocation2 + $0xa8] sm:$0xff] %vm171, 0.0
      %195 = vst.msk [vmem:[#allocation2 + $0xb0] sm:$0xff] %vm171, 0.0
      %196 = vst.msk [vmem:[#allocation2 + $0xb8] sm:$0x3] %vm174, 0.0
      %197 = vst.msk [vmem:[#allocation2 + $0xc0] sm:$0xff] %vm171, 0.0
      %198 = vst.msk [vmem:[#allocation2 + $0xc8] sm:$0xff] %vm171, 0.0
      %199 = vst.msk [vmem:[#allocation2 + $0xd0] sm:$0x3] %vm174, 0.0
      %200 = vst.msk [vmem:[#allocation2 + $0xd8] sm:$0xff] %vm171, 0.0
      %201 = vst.msk [vmem:[#allocation2 + $0xe0] sm:$0xff] %vm171, 0.0
      %202 = vst.msk [vmem:[#allocation2 + $0xe8] sm:$0x3] %vm174, 0.0
      %203 = vst.msk [vmem:[#allocation2 + $0xf0] sm:$0xff] %vm171, 0.0
      %204 = vst.msk [vmem:[#allocation2 + $0xf8] sm:$0xff] %vm171, 0.0
      %205 = vst.msk [vmem:[#allocation2 + $0x100] sm:$0x3] %vm174, 0.0
      %206 = vst.msk [vmem:[#allocation2 + $0x108] sm:$0xff] %vm171, 0.0
      %207 = vst.msk [vmem:[#allocation2 + $0x110] sm:$0xff] %vm171, 0.0
      %208 = vst.msk [vmem:[#allocation2 + $0x118] sm:$0x3] %vm174, 0.0
      %209 = vst.msk [vmem:[#allocation2 + $0x120] sm:$0xff] %vm171, 0.0
      %210 = vst.msk [vmem:[#allocation2 + $0x128] sm:$0xff] %vm171, 0.0
      %211 = vst.msk [vmem:[#allocation2 + $0x130] sm:$0x3] %vm174, 0.0
      %212 = vst.msk [vmem:[#allocation2 + $0x138] sm:$0xff] %vm171, 0.0
      %213 = vst.msk [vmem:[#allocation2 + $0x140] sm:$0xff] %vm171, 0.0
      %214 = vst.msk [vmem:[#allocation2 + $0x148] sm:$0x3] %vm174, 0.0
      %215 = vst.msk [vmem:[#allocation2 + $0x150] sm:$0xff] %vm171, 0.0
      %216 = vst.msk [vmem:[#allocation2 + $0x158] sm:$0xff] %vm171, 0.0
      %217 = vst.msk [vmem:[#allocation2 + $0x160] sm:$0x3] %vm174, 0.0
      %218 = vst.msk [vmem:[#allocation2 + $0x168] sm:$0xff] %vm171, 0.0
      %219 = vst.msk [vmem:[#allocation2 + $0x170] sm:$0xff] %vm171, 0.0
      %220 = vst.msk [vmem:[#allocation2 + $0x178] sm:$0x3] %vm174, 0.0
      %221 = vst.msk [vmem:[#allocation2 + $0x180] sm:$0xff] %vm171, 0.0
      %222 = vst.msk [vmem:[#allocation2 + $0x188] sm:$0xff] %vm171, 0.0
      %223 = vst.msk [vmem:[#allocation2 + $0x190] sm:$0x3] %vm174, 0.0
      %224 = vst.msk [vmem:[#allocation2 + $0x198] sm:$0xff] %vm171, 0.0
      %225 = vst.msk [vmem:[#allocation2 + $0x1a0] sm:$0xff] %vm171, 0.0
      %226 = vst.msk [vmem:[#allocation2 + $0x1a8] sm:$0x3] %vm174, 0.0
      %v227 = vld [vmem:[%s165] sm:$0xff]
      %v228 = vld [vmem:[%s165 + $0x8] sm:$0xff]
      %v229 = vld [vmem:[%s165 + $0x10] sm:$0xff]
      %v230 = vld [vmem:[%s165 + $0x18] sm:$0xff]
      %v231 = vld [vmem:[%s165 + $0x20] sm:$0xff]
      %v232 = vld [vmem:[%s165 + $0x28] sm:$0xff]
      %v233 = vld [vmem:[%s165 + $0x30] sm:$0xff]
      %v234 = vld [vmem:[%s165 + $0x38] sm:$0xff]
      %v235 = vld [vmem:[%s165 + $0x40] sm:$0xff]
      %v236 = vld [vmem:[%s165 + $0x48] sm:$0xff]
      %v237 = vld [vmem:[%s165 + $0x50] sm:$0xff]
      %v238 = vld [vmem:[%s165 + $0x58] sm:$0xff]
      %v239 = vld [vmem:[%s165 + $0x60] sm:$0xff]
      %v240 = vld [vmem:[%s165 + $0x68] sm:$0xff]
      %v241 = vld [vmem:[%s165 + $0x70] sm:$0xff]
      %v242 = vld [vmem:[%s165 + $0x78] sm:$0xff]
      %v243 = vld [vmem:[%s165 + $0x80] sm:$0xff]
      %v244 = vld [vmem:[%s165 + $0x88] sm:$0xff]
      %v245 = vld [vmem:[%s165 + $0x90] sm:$0xff]
      %v246 = vld [vmem:[%s165 + $0x98] sm:$0xff]
      %v247 = vld [vmem:[%s165 + $0xa0] sm:$0xff]
      %v248 = vld [vmem:[%s165 + $0xa8] sm:$0xff]
      %v249 = vld [vmem:[%s165 + $0xb0] sm:$0xff]
      %v250 = vld [vmem:[%s165 + $0xb8] sm:$0xff]
      %v251 = vld [vmem:[%s165 + $0xc0] sm:$0xff]
      %v252 = vld [vmem:[%s165 + $0xc8] sm:$0xff]
      %v253 = vld [vmem:[%s165 + $0xd0] sm:$0xff]
      %v254 = vld [vmem:[%s165 + $0xd8] sm:$0xff]
      %v255 = vld [vmem:[%s165 + $0xe0] sm:$0xff]
      %v256 = vld [vmem:[%s165 + $0xe8] sm:$0xff]
      %v257 = vld [vmem:[%s165 + $0xf0] sm:$0xff]
      %v258 = vld [vmem:[%s165 + $0xf8] sm:$0xff]
      %v259 = vmax.f32 %v227, 0.0
      %v260 = vmax.f32 %v228, 0.0
      %v261 = vmax.f32 %v229, 0.0
      %v262 = vmax.f32 %v230, 0.0
      %v263 = vmax.f32 %v231, 0.0
      %v264 = vmax.f32 %v232, 0.0
      %v265 = vmax.f32 %v233, 0.0
      %v266 = vmax.f32 %v234, 0.0
      %v267 = vmax.f32 %v235, 0.0
      %v268 = vmax.f32 %v236, 0.0
      %v269 = vmax.f32 %v237, 0.0
      %v270 = vmax.f32 %v238, 0.0
      %v271 = vmax.f32 %v239, 0.0
      %v272 = vmax.f32 %v240, 0.0
      %v273 = vmax.f32 %v241, 0.0
      %v274 = vmax.f32 %v242, 0.0
      %v275 = vmax.f32 %v243, 0.0
      %v276 = vmax.f32 %v244, 0.0
      %v277 = vmax.f32 %v245, 0.0
      %v278 = vmax.f32 %v246, 0.0
      %v279 = vmax.f32 %v247, 0.0
      %v280 = vmax.f32 %v248, 0.0
      %v281 = vmax.f32 %v249, 0.0
      %v282 = vmax.f32 %v250, 0.0
      %v283 = vmax.f32 %v251, 0.0
      %v284 = vmax.f32 %v252, 0.0
      %v285 = vmax.f32 %v253, 0.0
      %v286 = vmax.f32 %v254, 0.0
      %v287 = vmax.f32 %v255, 0.0
      %v288 = vmax.f32 %v256, 0.0
      %v289 = vmax.f32 %v257, 0.0
      %v290 = vmax.f32 %v258, 0.0
      %s291 = scalar_lea.vmem [#allocation2], 24
      %292 = vst.msk [vmem:[%s291 + $0x1] sm:$0xff] %vm171, %v259
      %293 = vst.msk [vmem:[%s291 + $0x9] sm:$0xff] %vm171, %v260
      %294 = vst.msk [vmem:[%s291 + $0x19] sm:$0xff] %vm171, %v261
      %295 = vst.msk [vmem:[%s291 + $0x21] sm:$0xff] %vm171, %v262
      %296 = vst.msk [vmem:[%s291 + $0x31] sm:$0xff] %vm171, %v263
      %297 = vst.msk [vmem:[%s291 + $0x39] sm:$0xff] %vm171, %v264
      %298 = vst.msk [vmem:[%s291 + $0x49] sm:$0xff] %vm171, %v265
      %299 = vst.msk [vmem:[%s291 + $0x51] sm:$0xff] %vm171, %v266
      %300 = vst.msk [vmem:[%s291 + $0x61] sm:$0xff] %vm171, %v267
      %301 = vst.msk [vmem:[%s291 + $0x69] sm:$0xff] %vm171, %v268
      %302 = vst.msk [vmem:[%s291 + $0x79] sm:$0xff] %vm171, %v269
      %303 = vst.msk [vmem:[%s291 + $0x81] sm:$0xff] %vm171, %v270
      %304 = vst.msk [vmem:[%s291 + $0x91] sm:$0xff] %vm171, %v271
      %305 = vst.msk [vmem:[%s291 + $0x99] sm:$0xff] %vm171, %v272
      %306 = vst.msk [vmem:[%s291 + $0xa9] sm:$0xff] %vm171, %v273
      %307 = vst.msk [vmem:[%s291 + $0xb1] sm:$0xff] %vm171, %v274
      %308 = vst.msk [vmem:[%s291 + $0xc1] sm:$0xff] %vm171, %v275
      %309 = vst.msk [vmem:[%s291 + $0xc9] sm:$0xff] %vm171, %v276
      %310 = vst.msk [vmem:[%s291 + $0xd9] sm:$0xff] %vm171, %v277
      %311 = vst.msk [vmem:[%s291 + $0xe1] sm:$0xff] %vm171, %v278
      %312 = vst.msk [vmem:[%s291 + $0xf1] sm:$0xff] %vm171, %v279
      %313 = vst.msk [vmem:[%s291 + $0xf9] sm:$0xff] %vm171, %v280
      %314 = vst.msk [vmem:[%s291 + $0x109] sm:$0xff] %vm171, %v281
      %315 = vst.msk [vmem:[%s291 + $0x111] sm:$0xff] %vm171, %v282
      %316 = vst.msk [vmem:[%s291 + $0x121] sm:$0xff] %vm171, %v283
      %317 = vst.msk [vmem:[%s291 + $0x129] sm:$0xff] %vm171, %v284
      %318 = vst.msk [vmem:[%s291 + $0x139] sm:$0xff] %vm171, %v285
      %319 = vst.msk [vmem:[%s291 + $0x141] sm:$0xff] %vm171, %v286
      %320 = vst.msk [vmem:[%s291 + $0x151] sm:$0xff] %vm171, %v287
      %321 = vst.msk [vmem:[%s291 + $0x159] sm:$0xff] %vm171, %v288
      %322 = vst.msk [vmem:[%s291 + $0x169] sm:$0xff] %vm171, %v289
      %323 = vst.msk [vmem:[%s291 + $0x171] sm:$0xff] %vm171, %v290
      %v324 = vld [vmem:[#allocation2] sm:$0xff]
      %v325 = vld [vmem:[#allocation2 + $0x8] sm:$0xff]
      %v326 = vld [vmem:[#allocation2 + $0x10] sm:$0x3]
      %v327 = vld [vmem:[#allocation2 + $0x18] sm:$0xff]
      %v328 = vld [vmem:[#allocation2 + $0x20] sm:$0xff]
      %v329 = vld [vmem:[#allocation2 + $0x28] sm:$0x3]
      %v330 = vld [vmem:[#allocation2 + $0x30] sm:$0xff]
      %v331 = vld [vmem:[#allocation2 + $0x38] sm:$0xff]
      %v332 = vld [vmem:[#allocation2 + $0x40] sm:$0x3]
      %v333 = vld [vmem:[#allocation2 + $0x48] sm:$0xff]
      %v334 = vld [vmem:[#allocation2 + $0x50] sm:$0xff]
      %v335 = vld [vmem:[#allocation2 + $0x58] sm:$0x3]
      %v336 = vld [vmem:[#allocation2 + $0x60] sm:$0xff]
      %v337 = vld [vmem:[#allocation2 + $0x68] sm:$0xff]
      %v338 = vld [vmem:[#allocation2 + $0x70] sm:$0x3]
      %v339 = vld [vmem:[#allocation2 + $0x78] sm:$0xff]
      %v340 = vld [vmem:[#allocation2 + $0x80] sm:$0xff]
      %v341 = vld [vmem:[#allocation2 + $0x88] sm:$0x3]
      %v342 = vld [vmem:[#allocation2 + $0x90] sm:$0xff]
      %v343 = vld [vmem:[#allocation2 + $0x98] sm:$0xff]
      %v344 = vld [vmem:[#allocation2 + $0xa0] sm:$0x3]
      %v345 = vld [vmem:[#allocation2 + $0xa8] sm:$0xff]
      %v346 = vld [vmem:[#allocation2 + $0xb0] sm:$0xff]
      %v347 = vld [vmem:[#allocation2 + $0xb8] sm:$0x3]
      %v348 = vld [vmem:[#allocation2 + $0xc0] sm:$0xff]
      %v349 = vld [vmem:[#allocation2 + $0xc8] sm:$0xff]
      %v350 = vld [vmem:[#allocation2 + $0xd0] sm:$0x3]
      %v351 = vld [vmem:[#allocation2 + $0xd8] sm:$0xff]
      %v352 = vld [vmem:[#allocation2 + $0xe0] sm:$0xff]
      %v353 = vld [vmem:[#allocation2 + $0xe8] sm:$0x3]
      %v354 = vld [vmem:[#allocation2 + $0xf0] sm:$0xff]
      %v355 = vld [vmem:[#allocation2 + $0xf8] sm:$0xff]
      %v356 = vld [vmem:[#allocation2 + $0x100] sm:$0x3]
      %v357 = vld [vmem:[#allocation2 + $0x108] sm:$0xff]
      %v358 = vld [vmem:[#allocation2 + $0x110] sm:$0xff]
      %v359 = vld [vmem:[#allocation2 + $0x118] sm:$0x3]
      %v360 = vld [vmem:[#allocation2 + $0x120] sm:$0xff]
      %v361 = vld [vmem:[#allocation2 + $0x128] sm:$0xff]
      %v362 = vld [vmem:[#allocation2 + $0x130] sm:$0x3]
      %v363 = vld [vmem:[#allocation2 + $0x138] sm:$0xff]
      %v364 = vld [vmem:[#allocation2 + $0x140] sm:$0xff]
      %v365 = vld [vmem:[#allocation2 + $0x148] sm:$0x3]
      %v366 = vld [vmem:[#allocation2 + $0x150] sm:$0xff]
      %v367 = vld [vmem:[#allocation2 + $0x158] sm:$0xff]
      %v368 = vld [vmem:[#allocation2 + $0x160] sm:$0x3]
      %v369 = vld [vmem:[#allocation2 + $0x168] sm:$0xff]
      %v370 = vld [vmem:[#allocation2 + $0x170] sm:$0xff]
      %v371 = vld [vmem:[#allocation2 + $0x178] sm:$0x3]
      %v372 = vld [vmem:[#allocation2 + $0x180] sm:$0xff]
      %v373 = vld [vmem:[#allocation2 + $0x188] sm:$0xff]
      %v374 = vld [vmem:[#allocation2 + $0x190] sm:$0x3]
      %v375 = vld [vmem:[#allocation2 + $0x198] sm:$0xff]
      %v376 = vld [vmem:[#allocation2 + $0x1a0] sm:$0xff]
      %v377 = vld [vmem:[#allocation2 + $0x1a8] sm:$0x3]
      %vm426 = vcmask 1046528
      %v427 = vrot.slane %v324, 1
      %v428 = vrot.slane %v325, 1
      %v429 = vsel %vm426, %v427, %v428
      %v430 = vrot.slane %v326, 1
      %v431 = vsel %vm426, %v428, %v430
      %v432 = vrot.slane %v327, 1
      %v433 = vrot.slane %v328, 1
      %v434 = vsel %vm426, %v432, %v433
      %v435 = vrot.slane %v329, 1
      %v436 = vsel %vm426, %v433, %v435
      %v437 = vrot.slane %v330, 1
      %v438 = vrot.slane %v331, 1
      %v439 = vsel %vm426, %v437, %v438
      %v440 = vrot.slane %v332, 1
      %v441 = vsel %vm426, %v438, %v440
      %v442 = vrot.slane %v333, 1
      %v443 = vrot.slane %v334, 1
      %v444 = vsel %vm426, %v442, %v443
      %v445 = vrot.slane %v335, 1
      %v446 = vsel %vm426, %v443, %v445
      %v447 = vrot.slane %v336, 1
      %v448 = vrot.slane %v337, 1
      %v449 = vsel %vm426, %v447, %v448
      %v450 = vrot.slane %v338, 1
      %v451 = vsel %vm426, %v448, %v450
      %v452 = vrot.slane %v339, 1
      %v453 = vrot.slane %v340, 1
      %v454 = vsel %vm426, %v452, %v453
      %v455 = vrot.slane %v341, 1
      %v456 = vsel %vm426, %v453, %v455
      %v457 = vrot.slane %v342, 1
      %v458 = vrot.slane %v343, 1
      %v459 = vsel %vm426, %v457, %v458
      %v460 = vrot.slane %v344, 1
      %v461 = vsel %vm426, %v458, %v460
      %v462 = vrot.slane %v345, 1
      %v463 = vrot.slane %v346, 1
      %v464 = vsel %vm426, %v462, %v463
      %v465 = vrot.slane %v347, 1
      %v466 = vsel %vm426, %v463, %v465
      %v467 = vrot.slane %v348, 1
      %v468 = vrot.slane %v349, 1
      %v469 = vsel %vm426, %v467, %v468
      %v470 = vrot.slane %v350, 1
      %v471 = vsel %vm426, %v468, %v470
      %v472 = vrot.slane %v351, 1
      %v473 = vrot.slane %v352, 1
      %v474 = vsel %vm426, %v472, %v473
      %v475 = vrot.slane %v353, 1
      %v476 = vsel %vm426, %v473, %v475
      %v477 = vrot.slane %v354, 1
      %v478 = vrot.slane %v355, 1
      %v479 = vsel %vm426, %v477, %v478
      %v480 = vrot.slane %v356, 1
      %v481 = vsel %vm426, %v478, %v480
      %v482 = vrot.slane %v357, 1
      %v483 = vrot.slane %v358, 1
      %v484 = vsel %vm426, %v482, %v483
      %v485 = vrot.slane %v359, 1
      %v486 = vsel %vm426, %v483, %v485
      %v487 = vrot.slane %v360, 1
      %v488 = vrot.slane %v361, 1
      %v489 = vsel %vm426, %v487, %v488
      %v490 = vrot.slane %v362, 1
      %v491 = vsel %vm426, %v488, %v490
      %v492 = vrot.slane %v363, 1
      %v493 = vrot.slane %v364, 1
      %v494 = vsel %vm426, %v492, %v493
      %v495 = vrot.slane %v365, 1
      %v496 = vsel %vm426, %v493, %v495
      %v497 = vrot.slane %v366, 1
      %v498 = vrot.slane %v367, 1
      %v499 = vsel %vm426, %v497, %v498
      %v500 = vrot.slane %v368, 1
      %v501 = vsel %vm426, %v498, %v500
      %v502 = vrot.slane %v369, 1
      %v503 = vrot.slane %v370, 1
      %v504 = vsel %vm426, %v502, %v503
      %v505 = vrot.slane %v371, 1
      %v506 = vsel %vm426, %v503, %v505
      %507 = vrot.lane.b32.xlu0 %v429, 4
      %v508 = vpop.permute.xlu0 %507
      %509 = vrot.lane.b32.xlu0 %v431, 4
      %v510 = vpop.permute.xlu0 %509
      %511 = vrot.lane.b32.xlu0 %v434, 4
      %v512 = vpop.permute.xlu0 %511
      %513 = vrot.lane.b32.xlu0 %v436, 4
      %v514 = vpop.permute.xlu0 %513
      %515 = vrot.lane.b32.xlu0 %v439, 4
      %v516 = vpop.permute.xlu0 %515
      %517 = vrot.lane.b32.xlu0 %v441, 4
      %v518 = vpop.permute.xlu0 %517
      %519 = vrot.lane.b32.xlu0 %v444, 4
      %v520 = vpop.permute.xlu0 %519
      %521 = vrot.lane.b32.xlu0 %v446, 4
      %v522 = vpop.permute.xlu0 %521
      %523 = vrot.lane.b32.xlu0 %v449, 4
      %v524 = vpop.permute.xlu0 %523
      %525 = vrot.lane.b32.xlu0 %v451, 4
      %v526 = vpop.permute.xlu0 %525
      %527 = vrot.lane.b32.xlu0 %v454, 4
      %v528 = vpop.permute.xlu0 %527
      %529 = vrot.lane.b32.xlu0 %v456, 4
      %v530 = vpop.permute.xlu0 %529
      %531 = vrot.lane.b32.xlu0 %v459, 4
      %v532 = vpop.permute.xlu0 %531
      %533 = vrot.lane.b32.xlu0 %v461, 4
      %v534 = vpop.permute.xlu0 %533
      %535 = vrot.lane.b32.xlu0 %v464, 4
      %v536 = vpop.permute.xlu0 %535
      %537 = vrot.lane.b32.xlu0 %v466, 4
      %v538 = vpop.permute.xlu0 %537
      %539 = vrot.lane.b32.xlu0 %v469, 4
      %v540 = vpop.permute.xlu0 %539
      %541 = vrot.lane.b32.xlu0 %v471, 4
      %v542 = vpop.permute.xlu0 %541
      %543 = vrot.lane.b32.xlu0 %v474, 4
      %v544 = vpop.permute.xlu0 %543
      %545 = vrot.lane.b32.xlu0 %v476, 4
      %v546 = vpop.permute.xlu0 %545
      %547 = vrot.lane.b32.xlu0 %v479, 4
      %v548 = vpop.permute.xlu0 %547
      %549 = vrot.lane.b32.xlu0 %v481, 4
      %v550 = vpop.permute.xlu0 %549
      %551 = vrot.lane.b32.xlu0 %v484, 4
      %v552 = vpop.permute.xlu0 %551
      %553 = vrot.lane.b32.xlu0 %v486, 4
      %v554 = vpop.permute.xlu0 %553
      %555 = vrot.lane.b32.xlu0 %v489, 4
      %v556 = vpop.permute.xlu0 %555
      %557 = vrot.lane.b32.xlu0 %v491, 4
      %v558 = vpop.permute.xlu0 %557
      %559 = vrot.lane.b32.xlu0 %v494, 4
      %v560 = vpop.permute.xlu0 %559
      %561 = vrot.lane.b32.xlu0 %v496, 4
      %v562 = vpop.permute.xlu0 %561
      %563 = vrot.lane.b32.xlu0 %v499, 4
      %v564 = vpop.permute.xlu0 %563
      %565 = vrot.lane.b32.xlu0 %v501, 4
      %v566 = vpop.permute.xlu0 %565
      %567 = vrot.lane.b32.xlu0 %v504, 4
      %v568 = vpop.permute.xlu0 %567
      %569 = vrot.lane.b32.xlu0 %v506, 4
      %v570 = vpop.permute.xlu0 %569
      %vm603 = vcmask 1045504
      %v604 = vrot.slane %v324, 2
      %v605 = vrot.slane %v325, 2
      %v606 = vsel %vm603, %v604, %v605
      %v607 = vrot.slane %v326, 2
      %v608 = vsel %vm603, %v605, %v607
      %v609 = vrot.slane %v327, 2
      %v610 = vrot.slane %v328, 2
      %v611 = vsel %vm603, %v609, %v610
      %v612 = vrot.slane %v329, 2
      %v613 = vsel %vm603, %v610, %v612
      %v614 = vrot.slane %v330, 2
      %v615 = vrot.slane %v331, 2
      %v616 = vsel %vm603, %v614, %v615
      %v617 = vrot.slane %v332, 2
      %v618 = vsel %vm603, %v615, %v617
      %v619 = vrot.slane %v333, 2
      %v620 = vrot.slane %v334, 2
      %v621 = vsel %vm603, %v619, %v620
      %v622 = vrot.slane %v335, 2
      %v623 = vsel %vm603, %v620, %v622
      %v624 = vrot.slane %v336, 2
      %v625 = vrot.slane %v337, 2
      %v626 = vsel %vm603, %v624, %v625
      %v627 = vrot.slane %v338, 2
      %v628 = vsel %vm603, %v625, %v627
      %v629 = vrot.slane %v339, 2
      %v630 = vrot.slane %v340, 2
      %v631 = vsel %vm603, %v629, %v630
      %v632 = vrot.slane %v341, 2
      %v633 = vsel %vm603, %v630, %v632
      %v634 = vrot.slane %v342, 2
      %v635 = vrot.slane %v343, 2
      %v636 = vsel %vm603, %v634, %v635
      %v637 = vrot.slane %v344, 2
      %v638 = vsel %vm603, %v635, %v637
      %v639 = vrot.slane %v345, 2
      %v640 = vrot.slane %v346, 2
      %v641 = vsel %vm603, %v639, %v640
      %v642 = vrot.slane %v347, 2
      %v643 = vsel %vm603, %v640, %v642
      %v644 = vrot.slane %v348, 2
      %v645 = vrot.slane %v349, 2
      %v646 = vsel %vm603, %v644, %v645
      %v647 = vrot.slane %v350, 2
      %v648 = vsel %vm603, %v645, %v647
      %v649 = vrot.slane %v351, 2
      %v650 = vrot.slane %v352, 2
      %v651 = vsel %vm603, %v649, %v650
      %v652 = vrot.slane %v353, 2
      %v653 = vsel %vm603, %v650, %v652
      %v654 = vrot.slane %v354, 2
      %v655 = vrot.slane %v355, 2
      %v656 = vsel %vm603, %v654, %v655
      %v657 = vrot.slane %v356, 2
      %v658 = vsel %vm603, %v655, %v657
      %v659 = vrot.slane %v357, 2
      %v660 = vrot.slane %v358, 2
      %v661 = vsel %vm603, %v659, %v660
      %v662 = vrot.slane %v359, 2
      %v663 = vsel %vm603, %v660, %v662
      %v664 = vrot.slane %v360, 2
      %v665 = vrot.slane %v361, 2
      %v666 = vsel %vm603, %v664, %v665
      %v667 = vrot.slane %v362, 2
      %v668 = vsel %vm603, %v665, %v667
      %v669 = vrot.slane %v363, 2
      %v670 = vrot.slane %v364, 2
      %v671 = vsel %vm603, %v669, %v670
      %v672 = vrot.slane %v365, 2
      %v673 = vsel %vm603, %v670, %v672
      %v674 = vrot.slane %v366, 2
      %v675 = vrot.slane %v367, 2
      %v676 = vsel %vm603, %v674, %v675
      %v677 = vrot.slane %v368, 2
      %v678 = vsel %vm603, %v675, %v677
      %v679 = vrot.slane %v369, 2
      %v680 = vrot.slane %v370, 2
      %v681 = vsel %vm603, %v679, %v680
      %v682 = vrot.slane %v371, 2
      %v683 = vsel %vm603, %v680, %v682
      %684 = vrot.lane.b32.xlu0 %v606, 8
      %v685 = vpop.permute.xlu0 %684
      %686 = vrot.lane.b32.xlu0 %v608, 8
      %v687 = vpop.permute.xlu0 %686
      %688 = vrot.lane.b32.xlu0 %v611, 8
      %v689 = vpop.permute.xlu0 %688
      %690 = vrot.lane.b32.xlu0 %v613, 8
      %v691 = vpop.permute.xlu0 %690
      %692 = vrot.lane.b32.xlu0 %v616, 8
      %v693 = vpop.permute.xlu0 %692
      %694 = vrot.lane.b32.xlu0 %v618, 8
      %v695 = vpop.permute.xlu0 %694
      %696 = vrot.lane.b32.xlu0 %v621, 8
      %v697 = vpop.permute.xlu0 %696
      %698 = vrot.lane.b32.xlu0 %v623, 8
      %v699 = vpop.permute.xlu0 %698
      %700 = vrot.lane.b32.xlu0 %v626, 8
      %v701 = vpop.permute.xlu0 %700
      %702 = vrot.lane.b32.xlu0 %v628, 8
      %v703 = vpop.permute.xlu0 %702
      %704 = vrot.lane.b32.xlu0 %v631, 8
      %v705 = vpop.permute.xlu0 %704
      %706 = vrot.lane.b32.xlu0 %v633, 8
      %v707 = vpop.permute.xlu0 %706
      %708 = vrot.lane.b32.xlu0 %v636, 8
      %v709 = vpop.permute.xlu0 %708
      %710 = vrot.lane.b32.xlu0 %v638, 8
      %v711 = vpop.permute.xlu0 %710
      %712 = vrot.lane.b32.xlu0 %v641, 8
      %v713 = vpop.permute.xlu0 %712
      %714 = vrot.lane.b32.xlu0 %v643, 8
      %v715 = vpop.permute.xlu0 %714
      %716 = vrot.lane.b32.xlu0 %v646, 8
      %v717 = vpop.permute.xlu0 %716
      %718 = vrot.lane.b32.xlu0 %v648, 8
      %v719 = vpop.permute.xlu0 %718
      %720 = vrot.lane.b32.xlu0 %v651, 8
      %v721 = vpop.permute.xlu0 %720
      %722 = vrot.lane.b32.xlu0 %v653, 8
      %v723 = vpop.permute.xlu0 %722
      %724 = vrot.lane.b32.xlu0 %v656, 8
      %v725 = vpop.permute.xlu0 %724
      %726 = vrot.lane.b32.xlu0 %v658, 8
      %v727 = vpop.permute.xlu0 %726
      %728 = vrot.lane.b32.xlu0 %v661, 8
      %v729 = vpop.permute.xlu0 %728
      %730 = vrot.lane.b32.xlu0 %v663, 8
      %v731 = vpop.permute.xlu0 %730
      %732 = vrot.lane.b32.xlu0 %v666, 8
      %v733 = vpop.permute.xlu0 %732
      %734 = vrot.lane.b32.xlu0 %v668, 8
      %v735 = vpop.permute.xlu0 %734
      %736 = vrot.lane.b32.xlu0 %v671, 8
      %v737 = vpop.permute.xlu0 %736
      %738 = vrot.lane.b32.xlu0 %v673, 8
      %v739 = vpop.permute.xlu0 %738
      %740 = vrot.lane.b32.xlu0 %v676, 8
      %v741 = vpop.permute.xlu0 %740
      %742 = vrot.lane.b32.xlu0 %v678, 8
      %v743 = vpop.permute.xlu0 %742
      %744 = vrot.lane.b32.xlu0 %v681, 8
      %v745 = vpop.permute.xlu0 %744
      %746 = vrot.lane.b32.xlu0 %v683, 8
      %v747 = vpop.permute.xlu0 %746
      %782 = vrot.lane.b32.xlu0 %v327, 12
      %v783 = vpop.permute.xlu0 %782
      %784 = vrot.lane.b32.xlu0 %v328, 12
      %v785 = vpop.permute.xlu0 %784
      %786 = vrot.lane.b32.xlu0 %v330, 12
      %v787 = vpop.permute.xlu0 %786
      %788 = vrot.lane.b32.xlu0 %v331, 12
      %v789 = vpop.permute.xlu0 %788
      %790 = vrot.lane.b32.xlu0 %v333, 12
      %v791 = vpop.permute.xlu0 %790
      %792 = vrot.lane.b32.xlu0 %v334, 12
      %v793 = vpop.permute.xlu0 %792
      %794 = vrot.lane.b32.xlu0 %v336, 12
      %v795 = vpop.permute.xlu0 %794
      %796 = vrot.lane.b32.xlu0 %v337, 12
      %v797 = vpop.permute.xlu0 %796
      %798 = vrot.lane.b32.xlu0 %v339, 12
      %v799 = vpop.permute.xlu0 %798
      %800 = vrot.lane.b32.xlu0 %v340, 12
      %v801 = vpop.permute.xlu0 %800
      %802 = vrot.lane.b32.xlu0 %v342, 12
      %v803 = vpop.permute.xlu0 %802
      %804 = vrot.lane.b32.xlu0 %v343, 12
      %v805 = vpop.permute.xlu0 %804
      %806 = vrot.lane.b32.xlu0 %v345, 12
      %v807 = vpop.permute.xlu0 %806
      %808 = vrot.lane.b32.xlu0 %v346, 12
      %v809 = vpop.permute.xlu0 %808
      %810 = vrot.lane.b32.xlu0 %v348, 12
      %v811 = vpop.permute.xlu0 %810
      %812 = vrot.lane.b32.xlu0 %v349, 12
      %v813 = vpop.permute.xlu0 %812
      %814 = vrot.lane.b32.xlu0 %v351, 12
      %v815 = vpop.permute.xlu0 %814
      %816 = vrot.lane.b32.xlu0 %v352, 12
      %v817 = vpop.permute.xlu0 %816
      %818 = vrot.lane.b32.xlu0 %v354, 12
      %v819 = vpop.permute.xlu0 %818
      %820 = vrot.lane.b32.xlu0 %v355, 12
      %v821 = vpop.permute.xlu0 %820
      %822 = vrot.lane.b32.xlu0 %v357, 12
      %v823 = vpop.permute.xlu0 %822
      %824 = vrot.lane.b32.xlu0 %v358, 12
      %v825 = vpop.permute.xlu0 %824
      %826 = vrot.lane.b32.xlu0 %v360, 12
      %v827 = vpop.permute.xlu0 %826
      %828 = vrot.lane.b32.xlu0 %v361, 12
      %v829 = vpop.permute.xlu0 %828
      %830 = vrot.lane.b32.xlu0 %v363, 12
      %v831 = vpop.permute.xlu0 %830
      %832 = vrot.lane.b32.xlu0 %v364, 12
      %v833 = vpop.permute.xlu0 %832
      %834 = vrot.lane.b32.xlu0 %v366, 12
      %v835 = vpop.permute.xlu0 %834
      %836 = vrot.lane.b32.xlu0 %v367, 12
      %v837 = vpop.permute.xlu0 %836
      %838 = vrot.lane.b32.xlu0 %v369, 12
      %v839 = vpop.permute.xlu0 %838
      %840 = vrot.lane.b32.xlu0 %v370, 12
      %v841 = vpop.permute.xlu0 %840
      %842 = vrot.lane.b32.xlu0 %v372, 12
      %v843 = vpop.permute.xlu0 %842
      %844 = vrot.lane.b32.xlu0 %v373, 12
      %v845 = vpop.permute.xlu0 %844
      %v879 = vrot.slane %v372, 1
      %v880 = vrot.slane %v373, 1
      %v881 = vsel %vm426, %v879, %v880
      %v882 = vrot.slane %v374, 1
      %v883 = vsel %vm426, %v880, %v882
      %884 = vrot.lane.b32.xlu0 %v434, 16
      %v885 = vpop.permute.xlu0 %884
      %886 = vrot.lane.b32.xlu0 %v436, 16
      %v887 = vpop.permute.xlu0 %886
      %888 = vrot.lane.b32.xlu0 %v439, 16
      %v889 = vpop.permute.xlu0 %888
      %890 = vrot.lane.b32.xlu0 %v441, 16
      %v891 = vpop.permute.xlu0 %890
      %892 = vrot.lane.b32.xlu0 %v444, 16
      %v893 = vpop.permute.xlu0 %892
      %894 = vrot.lane.b32.xlu0 %v446, 16
      %v895 = vpop.permute.xlu0 %894
      %896 = vrot.lane.b32.xlu0 %v449, 16
      %v897 = vpop.permute.xlu0 %896
      %898 = vrot.lane.b32.xlu0 %v451, 16
      %v899 = vpop.permute.xlu0 %898
      %900 = vrot.lane.b32.xlu0 %v454, 16
      %v901 = vpop.permute.xlu0 %900
      %902 = vrot.lane.b32.xlu0 %v456, 16
      %v903 = vpop.permute.xlu0 %902
      %904 = vrot.lane.b32.xlu0 %v459, 16
      %v905 = vpop.permute.xlu0 %904
      %906 = vrot.lane.b32.xlu0 %v461, 16
      %v907 = vpop.permute.xlu0 %906
      %908 = vrot.lane.b32.xlu0 %v464, 16
      %v909 = vpop.permute.xlu0 %908
      %910 = vrot.lane.b32.xlu0 %v466, 16
      %v911 = vpop.permute.xlu0 %910
      %912 = vrot.lane.b32.xlu0 %v469, 16
      %v913 = vpop.permute.xlu0 %912
      %914 = vrot.lane.b32.xlu0 %v471, 16
      %v915 = vpop.permute.xlu0 %914
      %916 = vrot.lane.b32.xlu0 %v474, 16
      %v917 = vpop.permute.xlu0 %916
      %918 = vrot.lane.b32.xlu0 %v476, 16
      %v919 = vpop.permute.xlu0 %918
      %920 = vrot.lane.b32.xlu0 %v479, 16
      %v921 = vpop.permute.xlu0 %920
      %922 = vrot.lane.b32.xlu0 %v481, 16
      %v923 = vpop.permute.xlu0 %922
      %924 = vrot.lane.b32.xlu0 %v484, 16
      %v925 = vpop.permute.xlu0 %924
      %926 = vrot.lane.b32.xlu0 %v486, 16
      %v927 = vpop.permute.xlu0 %926
      %928 = vrot.lane.b32.xlu0 %v489, 16
      %v929 = vpop.permute.xlu0 %928
      %930 = vrot.lane.b32.xlu0 %v491, 16
      %v931 = vpop.permute.xlu0 %930
      %932 = vrot.lane.b32.xlu0 %v494, 16
      %v933 = vpop.permute.xlu0 %932
      %934 = vrot.lane.b32.xlu0 %v496, 16
      %v935 = vpop.permute.xlu0 %934
      %936 = vrot.lane.b32.xlu0 %v499, 16
      %v937 = vpop.permute.xlu0 %936
      %938 = vrot.lane.b32.xlu0 %v501, 16
      %v939 = vpop.permute.xlu0 %938
      %940 = vrot.lane.b32.xlu0 %v504, 16
      %v941 = vpop.permute.xlu0 %940
      %942 = vrot.lane.b32.xlu0 %v506, 16
      %v943 = vpop.permute.xlu0 %942
      %944 = vrot.lane.b32.xlu0 %v881, 16
      %v945 = vpop.permute.xlu0 %944
      %946 = vrot.lane.b32.xlu0 %v883, 16
      %v947 = vpop.permute.xlu0 %946
      %v980 = vrot.slane %v372, 2
      %v981 = vrot.slane %v373, 2
      %v982 = vsel %vm603, %v980, %v981
      %v983 = vrot.slane %v374, 2
      %v984 = vsel %vm603, %v981, %v983
      %985 = vrot.lane.b32.xlu0 %v611, 20
      %v986 = vpop.permute.xlu0 %985
      %987 = vrot.lane.b32.xlu0 %v613, 20
      %v988 = vpop.permute.xlu0 %987
      %989 = vrot.lane.b32.xlu0 %v616, 20
      %v990 = vpop.permute.xlu0 %989
      %991 = vrot.lane.b32.xlu0 %v618, 20
      %v992 = vpop.permute.xlu0 %991
      %993 = vrot.lane.b32.xlu0 %v621, 20
      %v994 = vpop.permute.xlu0 %993
      %995 = vrot.lane.b32.xlu0 %v623, 20
      %v996 = vpop.permute.xlu0 %995
      %997 = vrot.lane.b32.xlu0 %v626, 20
      %v998 = vpop.permute.xlu0 %997
      %999 = vrot.lane.b32.xlu0 %v628, 20
      %v1000 = vpop.permute.xlu0 %999
      %1001 = vrot.lane.b32.xlu0 %v631, 20
      %v1002 = vpop.permute.xlu0 %1001
      %1003 = vrot.lane.b32.xlu0 %v633, 20
      %v1004 = vpop.permute.xlu0 %1003
      %1005 = vrot.lane.b32.xlu0 %v636, 20
      %v1006 = vpop.permute.xlu0 %1005
      %1007 = vrot.lane.b32.xlu0 %v638, 20
      %v1008 = vpop.permute.xlu0 %1007
      %1009 = vrot.lane.b32.xlu0 %v641, 20
      %v1010 = vpop.permute.xlu0 %1009
      %1011 = vrot.lane.b32.xlu0 %v643, 20
      %v1012 = vpop.permute.xlu0 %1011
      %1013 = vrot.lane.b32.xlu0 %v646, 20
      %v1014 = vpop.permute.xlu0 %1013
      %1015 = vrot.lane.b32.xlu0 %v648, 20
      %v1016 = vpop.permute.xlu0 %1015
      %1017 = vrot.lane.b32.xlu0 %v651, 20
      %v1018 = vpop.permute.xlu0 %1017
      %1019 = vrot.lane.b32.xlu0 %v653, 20
      %v1020 = vpop.permute.xlu0 %1019
      %1021 = vrot.lane.b32.xlu0 %v656, 20
      %v1022 = vpop.permute.xlu0 %1021
      %1023 = vrot.lane.b32.xlu0 %v658, 20
      %v1024 = vpop.permute.xlu0 %1023
      %1025 = vrot.lane.b32.xlu0 %v661, 20
      %v1026 = vpop.permute.xlu0 %1025
      %1027 = vrot.lane.b32.xlu0 %v663, 20
      %v1028 = vpop.permute.xlu0 %1027
      %1029 = vrot.lane.b32.xlu0 %v666, 20
      %v1030 = vpop.permute.xlu0 %1029
      %1031 = vrot.lane.b32.xlu0 %v668, 20
      %v1032 = vpop.permute.xlu0 %1031
      %1033 = vrot.lane.b32.xlu0 %v671, 20
      %v1034 = vpop.permute.xlu0 %1033
      %1035 = vrot.lane.b32.xlu0 %v673, 20
      %v1036 = vpop.permute.xlu0 %1035
      %1037 = vrot.lane.b32.xlu0 %v676, 20
      %v1038 = vpop.permute.xlu0 %1037
      %1039 = vrot.lane.b32.xlu0 %v678, 20
      %v1040 = vpop.permute.xlu0 %1039
      %1041 = vrot.lane.b32.xlu0 %v681, 20
      %v1042 = vpop.permute.xlu0 %1041
      %1043 = vrot.lane.b32.xlu0 %v683, 20
      %v1044 = vpop.permute.xlu0 %1043
      %1045 = vrot.lane.b32.xlu0 %v982, 20
      %v1046 = vpop.permute.xlu0 %1045
      %1047 = vrot.lane.b32.xlu0 %v984, 20
      %v1048 = vpop.permute.xlu0 %1047
      %1083 = vrot.lane.b32.xlu0 %v330, 24
      %v1084 = vpop.permute.xlu0 %1083
      %1085 = vrot.lane.b32.xlu0 %v331, 24
      %v1086 = vpop.permute.xlu0 %1085
      %1087 = vrot.lane.b32.xlu0 %v333, 24
      %v1088 = vpop.permute.xlu0 %1087
      %1089 = vrot.lane.b32.xlu0 %v334, 24
      %v1090 = vpop.permute.xlu0 %1089
      %1091 = vrot.lane.b32.xlu0 %v336, 24
      %v1092 = vpop.permute.xlu0 %1091
      %1093 = vrot.lane.b32.xlu0 %v337, 24
      %v1094 = vpop.permute.xlu0 %1093
      %1095 = vrot.lane.b32.xlu0 %v339, 24
      %v1096 = vpop.permute.xlu0 %1095
      %1097 = vrot.lane.b32.xlu0 %v340, 24
      %v1098 = vpop.permute.xlu0 %1097
      %1099 = vrot.lane.b32.xlu0 %v342, 24
      %v1100 = vpop.permute.xlu0 %1099
      %1101 = vrot.lane.b32.xlu0 %v343, 24
      %v1102 = vpop.permute.xlu0 %1101
      %1103 = vrot.lane.b32.xlu0 %v345, 24
      %v1104 = vpop.permute.xlu0 %1103
      %1105 = vrot.lane.b32.xlu0 %v346, 24
      %v1106 = vpop.permute.xlu0 %1105
      %1107 = vrot.lane.b32.xlu0 %v348, 24
      %v1108 = vpop.permute.xlu0 %1107
      %1109 = vrot.lane.b32.xlu0 %v349, 24
      %v1110 = vpop.permute.xlu0 %1109
      %1111 = vrot.lane.b32.xlu0 %v351, 24
      %v1112 = vpop.permute.xlu0 %1111
      %1113 = vrot.lane.b32.xlu0 %v352, 24
      %v1114 = vpop.permute.xlu0 %1113
      %1115 = vrot.lane.b32.xlu0 %v354, 24
      %v1116 = vpop.permute.xlu0 %1115
      %1117 = vrot.lane.b32.xlu0 %v355, 24
      %v1118 = vpop.permute.xlu0 %1117
      %1119 = vrot.lane.b32.xlu0 %v357, 24
      %v1120 = vpop.permute.xlu0 %1119
      %1121 = vrot.lane.b32.xlu0 %v358, 24
      %v1122 = vpop.permute.xlu0 %1121
      %1123 = vrot.lane.b32.xlu0 %v360, 24
      %v1124 = vpop.permute.xlu0 %1123
      %1125 = vrot.lane.b32.xlu0 %v361, 24
      %v1126 = vpop.permute.xlu0 %1125
      %1127 = vrot.lane.b32.xlu0 %v363, 24
      %v1128 = vpop.permute.xlu0 %1127
      %1129 = vrot.lane.b32.xlu0 %v364, 24
      %v1130 = vpop.permute.xlu0 %1129
      %1131 = vrot.lane.b32.xlu0 %v366, 24
      %v1132 = vpop.permute.xlu0 %1131
      %1133 = vrot.lane.b32.xlu0 %v367, 24
      %v1134 = vpop.permute.xlu0 %1133
      %1135 = vrot.lane.b32.xlu0 %v369, 24
      %v1136 = vpop.permute.xlu0 %1135
      %1137 = vrot.lane.b32.xlu0 %v370, 24
      %v1138 = vpop.permute.xlu0 %1137
      %1139 = vrot.lane.b32.xlu0 %v372, 24
      %v1140 = vpop.permute.xlu0 %1139
      %1141 = vrot.lane.b32.xlu0 %v373, 24
      %v1142 = vpop.permute.xlu0 %1141
      %1143 = vrot.lane.b32.xlu0 %v375, 24
      %v1144 = vpop.permute.xlu0 %1143
      %1145 = vrot.lane.b32.xlu0 %v376, 24
      %v1146 = vpop.permute.xlu0 %1145
      %v1180 = vrot.slane %v375, 1
      %v1181 = vrot.slane %v376, 1
      %v1182 = vsel %vm426, %v1180, %v1181
      %v1183 = vrot.slane %v377, 1
      %v1184 = vsel %vm426, %v1181, %v1183
      %1185 = vrot.lane.b32.xlu0 %v439, 28
      %v1186 = vpop.permute.xlu0 %1185
      %1187 = vrot.lane.b32.xlu0 %v441, 28
      %v1188 = vpop.permute.xlu0 %1187
      %1189 = vrot.lane.b32.xlu0 %v444, 28
      %v1190 = vpop.permute.xlu0 %1189
      %1191 = vrot.lane.b32.xlu0 %v446, 28
      %v1192 = vpop.permute.xlu0 %1191
      %1193 = vrot.lane.b32.xlu0 %v449, 28
      %v1194 = vpop.permute.xlu0 %1193
      %1195 = vrot.lane.b32.xlu0 %v451, 28
      %v1196 = vpop.permute.xlu0 %1195
      %1197 = vrot.lane.b32.xlu0 %v454, 28
      %v1198 = vpop.permute.xlu0 %1197
      %1199 = vrot.lane.b32.xlu0 %v456, 28
      %v1200 = vpop.permute.xlu0 %1199
      %1201 = vrot.lane.b32.xlu0 %v459, 28
      %v1202 = vpop.permute.xlu0 %1201
      %1203 = vrot.lane.b32.xlu0 %v461, 28
      %v1204 = vpop.permute.xlu0 %1203
      %1205 = vrot.lane.b32.xlu0 %v464, 28
      %v1206 = vpop.permute.xlu0 %1205
      %1207 = vrot.lane.b32.xlu0 %v466, 28
      %v1208 = vpop.permute.xlu0 %1207
      %1209 = vrot.lane.b32.xlu0 %v469, 28
      %v1210 = vpop.permute.xlu0 %1209
      %1211 = vrot.lane.b32.xlu0 %v471, 28
      %v1212 = vpop.permute.xlu0 %1211
      %1213 = vrot.lane.b32.xlu0 %v474, 28
      %v1214 = vpop.permute.xlu0 %1213
      %1215 = vrot.lane.b32.xlu0 %v476, 28
      %v1216 = vpop.permute.xlu0 %1215
      %1217 = vrot.lane.b32.xlu0 %v479, 28
      %v1218 = vpop.permute.xlu0 %1217
      %1219 = vrot.lane.b32.xlu0 %v481, 28
      %v1220 = vpop.permute.xlu0 %1219
      %1221 = vrot.lane.b32.xlu0 %v484, 28
      %v1222 = vpop.permute.xlu0 %1221
      %1223 = vrot.lane.b32.xlu0 %v486, 28
      %v1224 = vpop.permute.xlu0 %1223
      %1225 = vrot.lane.b32.xlu0 %v489, 28
      %v1226 = vpop.permute.xlu0 %1225
      %1227 = vrot.lane.b32.xlu0 %v491, 28
      %v1228 = vpop.permute.xlu0 %1227
      %1229 = vrot.lane.b32.xlu0 %v494, 28
      %v1230 = vpop.permute.xlu0 %1229
      %1231 = vrot.lane.b32.xlu0 %v496, 28
      %v1232 = vpop.permute.xlu0 %1231
      %1233 = vrot.lane.b32.xlu0 %v499, 28
      %v1234 = vpop.permute.xlu0 %1233
      %1235 = vrot.lane.b32.xlu0 %v501, 28
      %v1236 = vpop.permute.xlu0 %1235
      %1237 = vrot.lane.b32.xlu0 %v504, 28
      %v1238 = vpop.permute.xlu0 %1237
      %1239 = vrot.lane.b32.xlu0 %v506, 28
      %v1240 = vpop.permute.xlu0 %1239
      %1241 = vrot.lane.b32.xlu0 %v881, 28
      %v1242 = vpop.permute.xlu0 %1241
      %1243 = vrot.lane.b32.xlu0 %v883, 28
      %v1244 = vpop.permute.xlu0 %1243
      %1245 = vrot.lane.b32.xlu0 %v1182, 28
      %v1246 = vpop.permute.xlu0 %1245
      %1247 = vrot.lane.b32.xlu0 %v1184, 28
      %v1248 = vpop.permute.xlu0 %1247
      %v1281 = vrot.slane %v375, 2
      %v1282 = vrot.slane %v376, 2
      %v1283 = vsel %vm603, %v1281, %v1282
      %v1284 = vrot.slane %v377, 2
      %v1285 = vsel %vm603, %v1282, %v1284
      %1286 = vrot.lane.b32.xlu0 %v616, 32
      %v1287 = vpop.permute.xlu0 %1286
      %1288 = vrot.lane.b32.xlu0 %v618, 32
      %v1289 = vpop.permute.xlu0 %1288
      %1290 = vrot.lane.b32.xlu0 %v621, 32
      %v1291 = vpop.permute.xlu0 %1290
      %1292 = vrot.lane.b32.xlu0 %v623, 32
      %v1293 = vpop.permute.xlu0 %1292
      %1294 = vrot.lane.b32.xlu0 %v626, 32
      %v1295 = vpop.permute.xlu0 %1294
      %1296 = vrot.lane.b32.xlu0 %v628, 32
      %v1297 = vpop.permute.xlu0 %1296
      %1298 = vrot.lane.b32.xlu0 %v631, 32
      %v1299 = vpop.permute.xlu0 %1298
      %1300 = vrot.lane.b32.xlu0 %v633, 32
      %v1301 = vpop.permute.xlu0 %1300
      %1302 = vrot.lane.b32.xlu0 %v636, 32
      %v1303 = vpop.permute.xlu0 %1302
      %1304 = vrot.lane.b32.xlu0 %v638, 32
      %v1305 = vpop.permute.xlu0 %1304
      %1306 = vrot.lane.b32.xlu0 %v641, 32
      %v1307 = vpop.permute.xlu0 %1306
      %1308 = vrot.lane.b32.xlu0 %v643, 32
      %v1309 = vpop.permute.xlu0 %1308
      %1310 = vrot.lane.b32.xlu0 %v646, 32
      %v1311 = vpop.permute.xlu0 %1310
      %1312 = vrot.lane.b32.xlu0 %v648, 32
      %v1313 = vpop.permute.xlu0 %1312
      %1314 = vrot.lane.b32.xlu0 %v651, 32
      %v1315 = vpop.permute.xlu0 %1314
      %1316 = vrot.lane.b32.xlu0 %v653, 32
      %v1317 = vpop.permute.xlu0 %1316
      %1318 = vrot.lane.b32.xlu0 %v656, 32
      %v1319 = vpop.permute.xlu0 %1318
      %1320 = vrot.lane.b32.xlu0 %v658, 32
      %v1321 = vpop.permute.xlu0 %1320
      %1322 = vrot.lane.b32.xlu0 %v661, 32
      %v1323 = vpop.permute.xlu0 %1322
      %1324 = vrot.lane.b32.xlu0 %v663, 32
      %v1325 = vpop.permute.xlu0 %1324
      %1326 = vrot.lane.b32.xlu0 %v666, 32
      %v1327 = vpop.permute.xlu0 %1326
      %1328 = vrot.lane.b32.xlu0 %v668, 32
      %v1329 = vpop.permute.xlu0 %1328
      %1330 = vrot.lane.b32.xlu0 %v671, 32
      %v1331 = vpop.permute.xlu0 %1330
      %1332 = vrot.lane.b32.xlu0 %v673, 32
      %v1333 = vpop.permute.xlu0 %1332
      %1334 = vrot.lane.b32.xlu0 %v676, 32
      %v1335 = vpop.permute.xlu0 %1334
      %1336 = vrot.lane.b32.xlu0 %v678, 32
      %v1337 = vpop.permute.xlu0 %1336
      %1338 = vrot.lane.b32.xlu0 %v681, 32
      %v1339 = vpop.permute.xlu0 %1338
      %1340 = vrot.lane.b32.xlu0 %v683, 32
      %v1341 = vpop.permute.xlu0 %1340
      %1342 = vrot.lane.b32.xlu0 %v982, 32
      %v1343 = vpop.permute.xlu0 %1342
      %1344 = vrot.lane.b32.xlu0 %v984, 32
      %v1345 = vpop.permute.xlu0 %1344
      %1346 = vrot.lane.b32.xlu0 %v1283, 32
      %v1347 = vpop.permute.xlu0 %1346
      %1348 = vrot.lane.b32.xlu0 %v1285, 32
      %v1349 = vpop.permute.xlu0 %1348
      %v1382 = vsel %vm171, %v324, %v508
      %v1383 = vsel %vm171, %v325, %v510
      %v1384 = vsel %vm171, %v327, %v512
      %v1385 = vsel %vm171, %v328, %v514
      %v1386 = vsel %vm171, %v330, %v516
      %v1387 = vsel %vm171, %v331, %v518
      %v1388 = vsel %vm171, %v333, %v520
      %v1389 = vsel %vm171, %v334, %v522
      %v1390 = vsel %vm171, %v336, %v524
      %v1391 = vsel %vm171, %v337, %v526
      %v1392 = vsel %vm171, %v339, %v528
      %v1393 = vsel %vm171, %v340, %v530
      %v1394 = vsel %vm171, %v342, %v532
      %v1395 = vsel %vm171, %v343, %v534
      %v1396 = vsel %vm171, %v345, %v536
      %v1397 = vsel %vm171, %v346, %v538
      %v1398 = vsel %vm171, %v348, %v540
      %v1399 = vsel %vm171, %v349, %v542
      %v1400 = vsel %vm171, %v351, %v544
      %v1401 = vsel %vm171, %v352, %v546
      %v1402 = vsel %vm171, %v354, %v548
      %v1403 = vsel %vm171, %v355, %v550
      %v1404 = vsel %vm171, %v357, %v552
      %v1405 = vsel %vm171, %v358, %v554
      %v1406 = vsel %vm171, %v360, %v556
      %v1407 = vsel %vm171, %v361, %v558
      %v1408 = vsel %vm171, %v363, %v560
      %v1409 = vsel %vm171, %v364, %v562
      %v1410 = vsel %vm171, %v366, %v564
      %v1411 = vsel %vm171, %v367, %v566
      %v1412 = vsel %vm171, %v369, %v568
      %v1413 = vsel %vm171, %v370, %v570
      %vm1414 = vcmask 64512
      %v1415 = vsel %vm1414, %v1382, %v685
      %v1416 = vsel %vm1414, %v1383, %v687
      %v1417 = vsel %vm1414, %v1384, %v689
      %v1418 = vsel %vm1414, %v1385, %v691
      %v1419 = vsel %vm1414, %v1386, %v693
      %v1420 = vsel %vm1414, %v1387, %v695
      %v1421 = vsel %vm1414, %v1388, %v697
      %v1422 = vsel %vm1414, %v1389, %v699
      %v1423 = vsel %vm1414, %v1390, %v701
      %v1424 = vsel %vm1414, %v1391, %v703
      %v1425 = vsel %vm1414, %v1392, %v705
      %v1426 = vsel %vm1414, %v1393, %v707
      %v1427 = vsel %vm1414, %v1394, %v709
      %v1428 = vsel %vm1414, %v1395, %v711
      %v1429 = vsel %vm1414, %v1396, %v713
      %v1430 = vsel %vm1414, %v1397, %v715
      %v1431 = vsel %vm1414, %v1398, %v717
      %v1432 = vsel %vm1414, %v1399, %v719
      %v1433 = vsel %vm1414, %v1400, %v721
      %v1434 = vsel %vm1414, %v1401, %v723
      %v1435 = vsel %vm1414, %v1402, %v725
      %v1436 = vsel %vm1414, %v1403, %v727
      %v1437 = vsel %vm1414, %v1404, %v729
      %v1438 = vsel %vm1414, %v1405, %v731
      %v1439 = vsel %vm1414, %v1406, %v733
      %v1440 = vsel %vm1414, %v1407, %v735
      %v1441 = vsel %vm1414, %v1408, %v737
      %v1442 = vsel %vm1414, %v1409, %v739
      %v1443 = vsel %vm1414, %v1410, %v741
      %v1444 = vsel %vm1414, %v1411, %v743
      %v1445 = vsel %vm1414, %v1412, %v745
      %v1446 = vsel %vm1414, %v1413, %v747
      %vm1447 = vcmask 97280
      %v1448 = vsel %vm1447, %v1415, %v783
      %v1449 = vsel %vm1447, %v1416, %v785
      %v1450 = vsel %vm1447, %v1417, %v787
      %v1451 = vsel %vm1447, %v1418, %v789
      %v1452 = vsel %vm1447, %v1419, %v791
      %v1453 = vsel %vm1447, %v1420, %v793
      %v1454 = vsel %vm1447, %v1421, %v795
      %v1455 = vsel %vm1447, %v1422, %v797
      %v1456 = vsel %vm1447, %v1423, %v799
      %v1457 = vsel %vm1447, %v1424, %v801
      %v1458 = vsel %vm1447, %v1425, %v803
      %v1459 = vsel %vm1447, %v1426, %v805
      %v1460 = vsel %vm1447, %v1427, %v807
      %v1461 = vsel %vm1447, %v1428, %v809
      %v1462 = vsel %vm1447, %v1429, %v811
      %v1463 = vsel %vm1447, %v1430, %v813
      %v1464 = vsel %vm1447, %v1431, %v815
      %v1465 = vsel %vm1447, %v1432, %v817
      %v1466 = vsel %vm1447, %v1433, %v819
      %v1467 = vsel %vm1447, %v1434, %v821
      %v1468 = vsel %vm1447, %v1435, %v823
      %v1469 = vsel %vm1447, %v1436, %v825
      %v1470 = vsel %vm1447, %v1437, %v827
      %v1471 = vsel %vm1447, %v1438, %v829
      %v1472 = vsel %vm1447, %v1439, %v831
      %v1473 = vsel %vm1447, %v1440, %v833
      %v1474 = vsel %vm1447, %v1441, %v835
      %v1475 = vsel %vm1447, %v1442, %v837
      %v1476 = vsel %vm1447, %v1443, %v839
      %v1477 = vsel %vm1447, %v1444, %v841
      %v1478 = vsel %vm1447, %v1445, %v843
      %v1479 = vsel %vm1447, %v1446, %v845
      %vm1480 = vcmask 130048
      %v1481 = vsel %vm1480, %v1448, %v885
      %v1482 = vsel %vm1480, %v1449, %v887
      %v1483 = vsel %vm1480, %v1450, %v889
      %v1484 = vsel %vm1480, %v1451, %v891
      %v1485 = vsel %vm1480, %v1452, %v893
      %v1486 = vsel %vm1480, %v1453, %v895
      %v1487 = vsel %vm1480, %v1454, %v897
      %v1488 = vsel %vm1480, %v1455, %v899
      %v1489 = vsel %vm1480, %v1456, %v901
      %v1490 = vsel %vm1480, %v1457, %v903
      %v1491 = vsel %vm1480, %v1458, %v905
      %v1492 = vsel %vm1480, %v1459, %v907
      %v1493 = vsel %vm1480, %v1460, %v909
      %v1494 = vsel %vm1480, %v1461, %v911
      %v1495 = vsel %vm1480, %v1462, %v913
      %v1496 = vsel %vm1480, %v1463, %v915
      %v1497 = vsel %vm1480, %v1464, %v917
      %v1498 = vsel %vm1480, %v1465, %v919
      %v1499 = vsel %vm1480, %v1466, %v921
      %v1500 = vsel %vm1480, %v1467, %v923
      %v1501 = vsel %vm1480, %v1468, %v925
      %v1502 = vsel %vm1480, %v1469, %v927
      %v1503 = vsel %vm1480, %v1470, %v929
      %v1504 = vsel %vm1480, %v1471, %v931
      %v1505 = vsel %vm1480, %v1472, %v933
      %v1506 = vsel %vm1480, %v1473, %v935
      %v1507 = vsel %vm1480, %v1474, %v937
      %v1508 = vsel %vm1480, %v1475, %v939
      %v1509 = vsel %vm1480, %v1476, %v941
      %v1510 = vsel %vm1480, %v1477, %v943
      %v1511 = vsel %vm1480, %v1478, %v945
      %v1512 = vsel %vm1480, %v1479, %v947
      %vm1513 = vcmask 162816
      %v1514 = vsel %vm1513, %v1481, %v986
      %v1515 = vsel %vm1513, %v1482, %v988
      %v1516 = vsel %vm1513, %v1483, %v990
      %v1517 = vsel %vm1513, %v1484, %v992
      %v1518 = vsel %vm1513, %v1485, %v994
      %v1519 = vsel %vm1513, %v1486, %v996
      %v1520 = vsel %vm1513, %v1487, %v998
      %v1521 = vsel %vm1513, %v1488, %v1000
      %v1522 = vsel %vm1513, %v1489, %v1002
      %v1523 = vsel %vm1513, %v1490, %v1004
      %v1524 = vsel %vm1513, %v1491, %v1006
      %v1525 = vsel %vm1513, %v1492, %v1008
      %v1526 = vsel %vm1513, %v1493, %v1010
      %v1527 = vsel %vm1513, %v1494, %v1012
      %v1528 = vsel %vm1513, %v1495, %v1014
      %v1529 = vsel %vm1513, %v1496, %v1016
      %v1530 = vsel %vm1513, %v1497, %v1018
      %v1531 = vsel %vm1513, %v1498, %v1020
      %v1532 = vsel %vm1513, %v1499, %v1022
      %v1533 = vsel %vm1513, %v1500, %v1024
      %v1534 = vsel %vm1513, %v1501, %v1026
      %v1535 = vsel %vm1513, %v1502, %v1028
      %v1536 = vsel %vm1513, %v1503, %v1030
      %v1537 = vsel %vm1513, %v1504, %v1032
      %v1538 = vsel %vm1513, %v1505, %v1034
      %v1539 = vsel %vm1513, %v1506, %v1036
      %v1540 = vsel %vm1513, %v1507, %v1038
      %v1541 = vsel %vm1513, %v1508, %v1040
      %v1542 = vsel %vm1513, %v1509, %v1042
      %v1543 = vsel %vm1513, %v1510, %v1044
      %v1544 = vsel %vm1513, %v1511, %v1046
      %v1545 = vsel %vm1513, %v1512, %v1048
      %vm1546 = vcmask 195584
      %v1547 = vsel %vm1546, %v1514, %v1084
      %v1548 = vsel %vm1546, %v1515, %v1086
      %v1549 = vsel %vm1546, %v1516, %v1088
      %v1550 = vsel %vm1546, %v1517, %v1090
      %v1551 = vsel %vm1546, %v1518, %v1092
      %v1552 = vsel %vm1546, %v1519, %v1094
      %v1553 = vsel %vm1546, %v1520, %v1096
      %v1554 = vsel %vm1546, %v1521, %v1098
      %v1555 = vsel %vm1546, %v1522, %v1100
      %v1556 = vsel %vm1546, %v1523, %v1102
      %v1557 = vsel %vm1546, %v1524, %v1104
      %v1558 = vsel %vm1546, %v1525, %v1106
      %v1559 = vsel %vm1546, %v1526, %v1108
      %v1560 = vsel %vm1546, %v1527, %v1110
      %v1561 = vsel %vm1546, %v1528, %v1112
      %v1562 = vsel %vm1546, %v1529, %v1114
      %v1563 = vsel %vm1546, %v1530, %v1116
      %v1564 = vsel %vm1546, %v1531, %v1118
      %v1565 = vsel %vm1546, %v1532, %v1120
      %v1566 = vsel %vm1546, %v1533, %v1122
      %v1567 = vsel %vm1546, %v1534, %v1124
      %v1568 = vsel %vm1546, %v1535, %v1126
      %v1569 = vsel %vm1546, %v1536, %v1128
      %v1570 = vsel %vm1546, %v1537, %v1130
      %v1571 = vsel %vm1546, %v1538, %v1132
      %v1572 = vsel %vm1546, %v1539, %v1134
      %v1573 = vsel %vm1546, %v1540, %v1136
      %v1574 = vsel %vm1546, %v1541, %v1138
      %v1575 = vsel %vm1546, %v1542, %v1140
      %v1576 = vsel %vm1546, %v1543, %v1142
      %v1577 = vsel %vm1546, %v1544, %v1144
      %v1578 = vsel %vm1546, %v1545, %v1146
      %vm1579 = vcmask 228352
      %v1580 = vsel %vm1579, %v1547, %v1186
      %v1581 = vsel %vm1579, %v1548, %v1188
      %v1582 = vsel %vm1579, %v1549, %v1190
      %v1583 = vsel %vm1579, %v1550, %v1192
      %v1584 = vsel %vm1579, %v1551, %v1194
      %v1585 = vsel %vm1579, %v1552, %v1196
      %v1586 = vsel %vm1579, %v1553, %v1198
      %v1587 = vsel %vm1579, %v1554, %v1200
      %v1588 = vsel %vm1579, %v1555, %v1202
      %v1589 = vsel %vm1579, %v1556, %v1204
      %v1590 = vsel %vm1579, %v1557, %v1206
      %v1591 = vsel %vm1579, %v1558, %v1208
      %v1592 = vsel %vm1579, %v1559, %v1210
      %v1593 = vsel %vm1579, %v1560, %v1212
      %v1594 = vsel %vm1579, %v1561, %v1214
      %v1595 = vsel %vm1579, %v1562, %v1216
      %v1596 = vsel %vm1579, %v1563, %v1218
      %v1597 = vsel %vm1579, %v1564, %v1220
      %v1598 = vsel %vm1579, %v1565, %v1222
      %v1599 = vsel %vm1579, %v1566, %v1224
      %v1600 = vsel %vm1579, %v1567, %v1226
      %v1601 = vsel %vm1579, %v1568, %v1228
      %v1602 = vsel %vm1579, %v1569, %v1230
      %v1603 = vsel %vm1579, %v1570, %v1232
      %v1604 = vsel %vm1579, %v1571, %v1234
      %v1605 = vsel %vm1579, %v1572, %v1236
      %v1606 = vsel %vm1579, %v1573, %v1238
      %v1607 = vsel %vm1579, %v1574, %v1240
      %v1608 = vsel %vm1579, %v1575, %v1242
      %v1609 = vsel %vm1579, %v1576, %v1244
      %v1610 = vsel %vm1579, %v1577, %v1246
      %v1611 = vsel %vm1579, %v1578, %v1248
      %vm1612 = vcmask 261120
      %v1613 = vsel %vm1612, %v1580, %v1287
      %v1614 = vsel %vm1612, %v1581, %v1289
      %v1615 = vsel %vm1612, %v1582, %v1291
      %v1616 = vsel %vm1612, %v1583, %v1293
      %v1617 = vsel %vm1612, %v1584, %v1295
      %v1618 = vsel %vm1612, %v1585, %v1297
      %v1619 = vsel %vm1612, %v1586, %v1299
      %v1620 = vsel %vm1612, %v1587, %v1301
      %v1621 = vsel %vm1612, %v1588, %v1303
      %v1622 = vsel %vm1612, %v1589, %v1305
      %v1623 = vsel %vm1612, %v1590, %v1307
      %v1624 = vsel %vm1612, %v1591, %v1309
      %v1625 = vsel %vm1612, %v1592, %v1311
      %v1626 = vsel %vm1612, %v1593, %v1313
      %v1627 = vsel %vm1612, %v1594, %v1315
      %v1628 = vsel %vm1612, %v1595, %v1317
      %v1629 = vsel %vm1612, %v1596, %v1319
      %v1630 = vsel %vm1612, %v1597, %v1321
      %v1631 = vsel %vm1612, %v1598, %v1323
      %v1632 = vsel %vm1612, %v1599, %v1325
      %v1633 = vsel %vm1612, %v1600, %v1327
      %v1634 = vsel %vm1612, %v1601, %v1329
      %v1635 = vsel %vm1612, %v1602, %v1331
      %v1636 = vsel %vm1612, %v1603, %v1333
      %v1637 = vsel %vm1612, %v1604, %v1335
      %v1638 = vsel %vm1612, %v1605, %v1337
      %v1639 = vsel %vm1612, %v1606, %v1339
      %v1640 = vsel %vm1612, %v1607, %v1341
      %v1641 = vsel %vm1612, %v1608, %v1343
      %v1642 = vsel %vm1612, %v1609, %v1345
      %v1643 = vsel %vm1612, %v1610, %v1347
      %v1644 = vsel %vm1612, %v1611, %v1349
      %v1645 = vld [vmem:[%s1] sm:$0xff]
      %v1646 = vld [vmem:[%s1 + $0x8] sm:$0xff]
      %v1647 = vld [vmem:[%s1 + $0x10] sm:$0xff]
      %v1648 = vld [vmem:[%s1 + $0x18] sm:$0xff]
      %v1649 = vld [vmem:[%s1 + $0x20] sm:$0xf]
      %vm1650 = vcmask 293888
      %v1652 = vsel %vm1650, %v1613, 0
      %v1655 = vsel %vm1650, %v1614, 0
      %v1658 = vsel %vm1650, %v1615, 0
      %v1661 = vsel %vm1650, %v1616, 0
      %v1664 = vsel %vm1650, %v1617, 0
      %v1667 = vsel %vm1650, %v1618, 0
      %v1670 = vsel %vm1650, %v1619, 0
      %v1673 = vsel %vm1650, %v1620, 0
      %v1676 = vsel %vm1650, %v1621, 0
      %v1679 = vsel %vm1650, %v1622, 0
      %v1682 = vsel %vm1650, %v1623, 0
      %v1685 = vsel %vm1650, %v1624, 0
      %v1688 = vsel %vm1650, %v1625, 0
      %v1691 = vsel %vm1650, %v1626, 0
      %v1694 = vsel %vm1650, %v1627, 0
      %v1697 = vsel %vm1650, %v1628, 0
      %v1700 = vsel %vm1650, %v1629, 0
      %v1703 = vsel %vm1650, %v1630, 0
      %v1706 = vsel %vm1650, %v1631, 0
      %v1709 = vsel %vm1650, %v1632, 0
      %v1712 = vsel %vm1650, %v1633, 0
      %v1715 = vsel %vm1650, %v1634, 0
      %v1718 = vsel %vm1650, %v1635, 0
      %v1721 = vsel %vm1650, %v1636, 0
      %v1724 = vsel %vm1650, %v1637, 0
      %v1727 = vsel %vm1650, %v1638, 0
      %v1730 = vsel %vm1650, %v1639, 0
      %v1733 = vsel %vm1650, %v1640, 0
      %v1736 = vsel %vm1650, %v1641, 0
      %v1739 = vsel %vm1650, %v1642, 0
      %v1742 = vsel %vm1650, %v1643, 0
      %v1745 = vsel %vm1650, %v1644, 0
      %vm1747 = vcmask 1043456
      %v1749 = vsel %vm1747, %v1649, 0
      %1751 = vmatpush.msra.mxu0 0.0
      %1752 = vmatpush.msra.mxu0 0.0
      %1753 = vmatpush.msra.mxu0 0.0
      %1754 = vmatpush.msra.mxu0 0.0
      %1755 = vmatpush.msra.mxu0 0.0
      %1756 = vmatpush.msra.mxu0 0.0
      %1757 = vmatpush.msra.mxu0 0.0
      %1758 = vmatpush.msra.mxu0 0.0
      %1759 = vmatpush.msra.mxu0 0.0
      %1760 = vmatpush.msra.mxu0 0.0
      %1761 = vmatpush.msra.mxu0 0.0
      %1762 = vmatpush.msra.mxu0 %v1749
      %1763 = vmatpush.msra.mxu0 %v1648
      %1764 = vmatpush.msra.mxu0 %v1647
      %1765 = vmatpush.msra.mxu0 %v1646
      %1766 = vmatpush.msra.mxu0 %v1645
      %1767 = vmatmul.f32.gmra.mxu0 %v1652
      %v1768 = vpop.f32.mrf.mxu0
      %v1769 = vadd.f32 0.0, %v1768
      %1770 = vmatmul.f32.gmra.mxu0 %v1655
      %v1771 = vpop.f32.mrf.mxu0
      %v1772 = vadd.f32 0.0, %v1771
      %1773 = vmatmul.f32.gmra.mxu0 %v1658
      %v1774 = vpop.f32.mrf.mxu0
      %v1775 = vadd.f32 0.0, %v1774
      %1776 = vmatmul.f32.gmra.mxu0 %v1661
      %v1777 = vpop.f32.mrf.mxu0
      %v1778 = vadd.f32 0.0, %v1777
      %1779 = vmatmul.f32.gmra.mxu0 %v1664
      %v1780 = vpop.f32.mrf.mxu0
      %v1781 = vadd.f32 0.0, %v1780
      %1782 = vmatmul.f32.gmra.mxu0 %v1667
      %v1783 = vpop.f32.mrf.mxu0
      %v1784 = vadd.f32 0.0, %v1783
      %1785 = vmatmul.f32.gmra.mxu0 %v1670
      %v1786 = vpop.f32.mrf.mxu0
      %v1787 = vadd.f32 0.0, %v1786
      %1788 = vmatmul.f32.gmra.mxu0 %v1673
      %v1789 = vpop.f32.mrf.mxu0
      %v1790 = vadd.f32 0.0, %v1789
      %1791 = vmatmul.f32.gmra.mxu0 %v1676
      %v1792 = vpop.f32.mrf.mxu0
      %v1793 = vadd.f32 0.0, %v1792
      %1794 = vmatmul.f32.gmra.mxu0 %v1679
      %v1795 = vpop.f32.mrf.mxu0
      %v1796 = vadd.f32 0.0, %v1795
      %1797 = vmatmul.f32.gmra.mxu0 %v1682
      %v1798 = vpop.f32.mrf.mxu0
      %v1799 = vadd.f32 0.0, %v1798
      %1800 = vmatmul.f32.gmra.mxu0 %v1685
      %v1801 = vpop.f32.mrf.mxu0
      %v1802 = vadd.f32 0.0, %v1801
      %1803 = vmatmul.f32.gmra.mxu0 %v1688
      %v1804 = vpop.f32.mrf.mxu0
      %v1805 = vadd.f32 0.0, %v1804
      %1806 = vmatmul.f32.gmra.mxu0 %v1691
      %v1807 = vpop.f32.mrf.mxu0
      %v1808 = vadd.f32 0.0, %v1807
      %1809 = vmatmul.f32.gmra.mxu0 %v1694
      %v1810 = vpop.f32.mrf.mxu0
      %v1811 = vadd.f32 0.0, %v1810
      %1812 = vmatmul.f32.gmra.mxu0 %v1697
      %v1813 = vpop.f32.mrf.mxu0
      %v1814 = vadd.f32 0.0, %v1813
      %1815 = vmatmul.f32.gmra.mxu0 %v1700
      %v1816 = vpop.f32.mrf.mxu0
      %v1817 = vadd.f32 0.0, %v1816
      %1818 = vmatmul.f32.gmra.mxu0 %v1703
      %v1819 = vpop.f32.mrf.mxu0
      %v1820 = vadd.f32 0.0, %v1819
      %1821 = vmatmul.f32.gmra.mxu0 %v1706
      %v1822 = vpop.f32.mrf.mxu0
      %v1823 = vadd.f32 0.0, %v1822
      %1824 = vmatmul.f32.gmra.mxu0 %v1709
      %v1825 = vpop.f32.mrf.mxu0
      %v1826 = vadd.f32 0.0, %v1825
      %1827 = vmatmul.f32.gmra.mxu0 %v1712
      %v1828 = vpop.f32.mrf.mxu0
      %v1829 = vadd.f32 0.0, %v1828
      %1830 = vmatmul.f32.gmra.mxu0 %v1715
      %v1831 = vpop.f32.mrf.mxu0
      %v1832 = vadd.f32 0.0, %v1831
      %1833 = vmatmul.f32.gmra.mxu0 %v1718
      %v1834 = vpop.f32.mrf.mxu0
      %v1835 = vadd.f32 0.0, %v1834
      %1836 = vmatmul.f32.gmra.mxu0 %v1721
      %v1837 = vpop.f32.mrf.mxu0
      %v1838 = vadd.f32 0.0, %v1837
      %1839 = vmatmul.f32.gmra.mxu0 %v1724
      %v1840 = vpop.f32.mrf.mxu0
      %v1841 = vadd.f32 0.0, %v1840
      %1842 = vmatmul.f32.gmra.mxu0 %v1727
      %v1843 = vpop.f32.mrf.mxu0
      %v1844 = vadd.f32 0.0, %v1843
      %1845 = vmatmul.f32.gmra.mxu0 %v1730
      %v1846 = vpop.f32.mrf.mxu0
      %v1847 = vadd.f32 0.0, %v1846
      %1848 = vmatmul.f32.gmra.mxu0 %v1733
      %v1849 = vpop.f32.mrf.mxu0
      %v1850 = vadd.f32 0.0, %v1849
      %1851 = vmatmul.f32.gmra.mxu0 %v1736
      %v1852 = vpop.f32.mrf.mxu0
      %v1853 = vadd.f32 0.0, %v1852
      %1854 = vmatmul.f32.gmra.mxu0 %v1739
      %v1855 = vpop.f32.mrf.mxu0
      %v1856 = vadd.f32 0.0, %v1855
      %1857 = vmatmul.f32.gmra.mxu0 %v1742
      %v1858 = vpop.f32.mrf.mxu0
      %v1859 = vadd.f32 0.0, %v1858
      %1860 = vmatmul.f32.gmra.mxu0 %v1745
      %v1861 = vpop.f32.mrf.mxu0
      %v1862 = vadd.f32 0.0, %v1861
      %1863 = vdwg.mxu0
      %v1864 = vmax.f32 %v1769, 0.0
      %v1865 = vmax.f32 %v1772, 0.0
      %v1866 = vmax.f32 %v1775, 0.0
      %v1867 = vmax.f32 %v1778, 0.0
      %v1868 = vmax.f32 %v1781, 0.0
      %v1869 = vmax.f32 %v1784, 0.0
      %v1870 = vmax.f32 %v1787, 0.0
      %v1871 = vmax.f32 %v1790, 0.0
      %v1872 = vmax.f32 %v1793, 0.0
      %v1873 = vmax.f32 %v1796, 0.0
      %v1874 = vmax.f32 %v1799, 0.0
      %v1875 = vmax.f32 %v1802, 0.0
      %v1876 = vmax.f32 %v1805, 0.0
      %v1877 = vmax.f32 %v1808, 0.0
      %v1878 = vmax.f32 %v1811, 0.0
      %v1879 = vmax.f32 %v1814, 0.0
      %v1880 = vmax.f32 %v1817, 0.0
      %v1881 = vmax.f32 %v1820, 0.0
      %v1882 = vmax.f32 %v1823, 0.0
      %v1883 = vmax.f32 %v1826, 0.0
      %v1884 = vmax.f32 %v1829, 0.0
      %v1885 = vmax.f32 %v1832, 0.0
      %v1886 = vmax.f32 %v1835, 0.0
      %v1887 = vmax.f32 %v1838, 0.0
      %v1888 = vmax.f32 %v1841, 0.0
      %v1889 = vmax.f32 %v1844, 0.0
      %v1890 = vmax.f32 %v1847, 0.0
      %v1891 = vmax.f32 %v1850, 0.0
      %v1892 = vmax.f32 %v1853, 0.0
      %v1893 = vmax.f32 %v1856, 0.0
      %v1894 = vmax.f32 %v1859, 0.0
      %v1895 = vmax.f32 %v1862, 0.0
      %v1896 = vld [vmem:[%s2] sm:$0xff]
      %v1898 = vsel %vm1414, %v1864, 0
      %v1901 = vsel %vm1414, %v1865, 0
      %v1904 = vsel %vm1414, %v1866, 0
      %v1907 = vsel %vm1414, %v1867, 0
      %v1910 = vsel %vm1414, %v1868, 0
      %v1913 = vsel %vm1414, %v1869, 0
      %v1916 = vsel %vm1414, %v1870, 0
      %v1919 = vsel %vm1414, %v1871, 0
      %v1922 = vsel %vm1414, %v1872, 0
      %v1925 = vsel %vm1414, %v1873, 0
      %v1928 = vsel %vm1414, %v1874, 0
      %v1931 = vsel %vm1414, %v1875, 0
      %v1934 = vsel %vm1414, %v1876, 0
      %v1937 = vsel %vm1414, %v1877, 0
      %v1940 = vsel %vm1414, %v1878, 0
      %v1943 = vsel %vm1414, %v1879, 0
      %v1946 = vsel %vm1414, %v1880, 0
      %v1949 = vsel %vm1414, %v1881, 0
      %v1952 = vsel %vm1414, %v1882, 0
      %v1955 = vsel %vm1414, %v1883, 0
      %v1958 = vsel %vm1414, %v1884, 0
      %v1961 = vsel %vm1414, %v1885, 0
      %v1964 = vsel %vm1414, %v1886, 0
      %v1967 = vsel %vm1414, %v1887, 0
      %v1970 = vsel %vm1414, %v1888, 0
      %v1973 = vsel %vm1414, %v1889, 0
      %v1976 = vsel %vm1414, %v1890, 0
      %v1979 = vsel %vm1414, %v1891, 0
      %v1982 = vsel %vm1414, %v1892, 0
      %v1985 = vsel %vm1414, %v1893, 0
      %v1988 = vsel %vm1414, %v1894, 0
      %v1991 = vsel %vm1414, %v1895, 0
      %1993 = vmatpush.msra.mxu0 0.0
      %1994 = vmatpush.msra.mxu0 0.0
      %1995 = vmatpush.msra.mxu0 0.0
      %1996 = vmatpush.msra.mxu0 0.0
      %1997 = vmatpush.msra.mxu0 0.0
      %1998 = vmatpush.msra.mxu0 0.0
      %1999 = vmatpush.msra.mxu0 0.0
      %2000 = vmatpush.msra.mxu0 0.0
      %2001 = vmatpush.msra.mxu0 0.0
      %2002 = vmatpush.msra.mxu0 0.0
      %2003 = vmatpush.msra.mxu0 0.0
      %2004 = vmatpush.msra.mxu0 0.0
      %2005 = vmatpush.msra.mxu0 0.0
      %2006 = vmatpush.msra.mxu0 0.0
      %2007 = vmatpush.msra.mxu0 0.0
      %2008 = vmatpush.msra.mxu0 %v1896
      %2009 = vmatmul.f32.gmra.mxu0 %v1898
      %v2010 = vpop.f32.mrf.mxu0
      %v2011 = vadd.f32 0.0, %v2010
      %2012 = vmatmul.f32.gmra.mxu0 %v1901
      %v2013 = vpop.f32.mrf.mxu0
      %v2014 = vadd.f32 0.0, %v2013
      %2015 = vmatmul.f32.gmra.mxu0 %v1904
      %v2016 = vpop.f32.mrf.mxu0
      %v2017 = vadd.f32 0.0, %v2016
      %2018 = vmatmul.f32.gmra.mxu0 %v1907
      %v2019 = vpop.f32.mrf.mxu0
      %v2020 = vadd.f32 0.0, %v2019
      %2021 = vmatmul.f32.gmra.mxu0 %v1910
      %v2022 = vpop.f32.mrf.mxu0
      %v2023 = vadd.f32 0.0, %v2022
      %2024 = vmatmul.f32.gmra.mxu0 %v1913
      %v2025 = vpop.f32.mrf.mxu0
      %v2026 = vadd.f32 0.0, %v2025
      %2027 = vmatmul.f32.gmra.mxu0 %v1916
      %v2028 = vpop.f32.mrf.mxu0
      %v2029 = vadd.f32 0.0, %v2028
      %2030 = vmatmul.f32.gmra.mxu0 %v1919
      %v2031 = vpop.f32.mrf.mxu0
      %v2032 = vadd.f32 0.0, %v2031
      %2033 = vmatmul.f32.gmra.mxu0 %v1922
      %v2034 = vpop.f32.mrf.mxu0
      %v2035 = vadd.f32 0.0, %v2034
      %2036 = vmatmul.f32.gmra.mxu0 %v1925
      %v2037 = vpop.f32.mrf.mxu0
      %v2038 = vadd.f32 0.0, %v2037
      %2039 = vmatmul.f32.gmra.mxu0 %v1928
      %v2040 = vpop.f32.mrf.mxu0
      %v2041 = vadd.f32 0.0, %v2040
      %2042 = vmatmul.f32.gmra.mxu0 %v1931
      %v2043 = vpop.f32.mrf.mxu0
      %v2044 = vadd.f32 0.0, %v2043
      %2045 = vmatmul.f32.gmra.mxu0 %v1934
      %v2046 = vpop.f32.mrf.mxu0
      %v2047 = vadd.f32 0.0, %v2046
      %2048 = vmatmul.f32.gmra.mxu0 %v1937
      %v2049 = vpop.f32.mrf.mxu0
      %v2050 = vadd.f32 0.0, %v2049
      %2051 = vmatmul.f32.gmra.mxu0 %v1940
      %v2052 = vpop.f32.mrf.mxu0
      %v2053 = vadd.f32 0.0, %v2052
      %2054 = vmatmul.f32.gmra.mxu0 %v1943
      %v2055 = vpop.f32.mrf.mxu0
      %v2056 = vadd.f32 0.0, %v2055
      %2057 = vmatmul.f32.gmra.mxu0 %v1946
      %v2058 = vpop.f32.mrf.mxu0
      %v2059 = vadd.f32 0.0, %v2058
      %2060 = vmatmul.f32.gmra.mxu0 %v1949
      %v2061 = vpop.f32.mrf.mxu0
      %v2062 = vadd.f32 0.0, %v2061
      %2063 = vmatmul.f32.gmra.mxu0 %v1952
      %v2064 = vpop.f32.mrf.mxu0
      %v2065 = vadd.f32 0.0, %v2064
      %2066 = vmatmul.f32.gmra.mxu0 %v1955
      %v2067 = vpop.f32.mrf.mxu0
      %v2068 = vadd.f32 0.0, %v2067
      %2069 = vmatmul.f32.gmra.mxu0 %v1958
      %v2070 = vpop.f32.mrf.mxu0
      %v2071 = vadd.f32 0.0, %v2070
      %2072 = vmatmul.f32.gmra.mxu0 %v1961
      %v2073 = vpop.f32.mrf.mxu0
      %v2074 = vadd.f32 0.0, %v2073
      %2075 = vmatmul.f32.gmra.mxu0 %v1964
      %v2076 = vpop.f32.mrf.mxu0
      %v2077 = vadd.f32 0.0, %v2076
      %2078 = vmatmul.f32.gmra.mxu0 %v1967
      %v2079 = vpop.f32.mrf.mxu0
      %v2080 = vadd.f32 0.0, %v2079
      %2081 = vmatmul.f32.gmra.mxu0 %v1970
      %v2082 = vpop.f32.mrf.mxu0
      %v2083 = vadd.f32 0.0, %v2082
      %2084 = vmatmul.f32.gmra.mxu0 %v1973
      %v2085 = vpop.f32.mrf.mxu0
      %v2086 = vadd.f32 0.0, %v2085
      %2087 = vmatmul.f32.gmra.mxu0 %v1976
      %v2088 = vpop.f32.mrf.mxu0
      %v2089 = vadd.f32 0.0, %v2088
      %2090 = vmatmul.f32.gmra.mxu0 %v1979
      %v2091 = vpop.f32.mrf.mxu0
      %v2092 = vadd.f32 0.0, %v2091
      %2093 = vmatmul.f32.gmra.mxu0 %v1982
      %v2094 = vpop.f32.mrf.mxu0
      %v2095 = vadd.f32 0.0, %v2094
      %2096 = vmatmul.f32.gmra.mxu0 %v1985
      %v2097 = vpop.f32.mrf.mxu0
      %v2098 = vadd.f32 0.0, %v2097
      %2099 = vmatmul.f32.gmra.mxu0 %v1988
      %v2100 = vpop.f32.mrf.mxu0
      %v2101 = vadd.f32 0.0, %v2100
      %2102 = vmatmul.f32.gmra.mxu0 %v1991
      %v2103 = vpop.f32.mrf.mxu0
      %v2104 = vadd.f32 0.0, %v2103
      %2105 = vdwg.mxu0
      %v2106 = vadd.f32 %v227, %v2011
      %v2107 = vadd.f32 %v228, %v2014
      %v2108 = vadd.f32 %v229, %v2017
      %v2109 = vadd.f32 %v230, %v2020
      %v2110 = vadd.f32 %v231, %v2023
      %v2111 = vadd.f32 %v232, %v2026
      %v2112 = vadd.f32 %v233, %v2029
      %v2113 = vadd.f32 %v234, %v2032
      %v2114 = vadd.f32 %v235, %v2035
      %v2115 = vadd.f32 %v236, %v2038
      %v2116 = vadd.f32 %v237, %v2041
      %v2117 = vadd.f32 %v238, %v2044
      %v2118 = vadd.f32 %v239, %v2047
      %v2119 = vadd.f32 %v240, %v2050
      %v2120 = vadd.f32 %v241, %v2053
      %v2121 = vadd.f32 %v242, %v2056
      %v2122 = vadd.f32 %v243, %v2059
      %v2123 = vadd.f32 %v244, %v2062
      %v2124 = vadd.f32 %v245, %v2065
      %v2125 = vadd.f32 %v246, %v2068
      %v2126 = vadd.f32 %v247, %v2071
      %v2127 = vadd.f32 %v248, %v2074
      %v2128 = vadd.f32 %v249, %v2077
      %v2129 = vadd.f32 %v250, %v2080
      %v2130 = vadd.f32 %v251, %v2083
      %v2131 = vadd.f32 %v252, %v2086
      %v2132 = vadd.f32 %v253, %v2089
      %v2133 = vadd.f32 %v254, %v2092
      %v2134 = vadd.f32 %v255, %v2095
      %v2135 = vadd.f32 %v256, %v2098
      %v2136 = vadd.f32 %v257, %v2101
      %v2137 = vadd.f32 %v258, %v2104
      %v2138 = vmax.f32 %v2106, 0.0
      %v2139 = vmax.f32 %v2107, 0.0
      %v2140 = vmax.f32 %v2108, 0.0
      %v2141 = vmax.f32 %v2109, 0.0
      %v2142 = vmax.f32 %v2110, 0.0
      %v2143 = vmax.f32 %v2111, 0.0
      %v2144 = vmax.f32 %v2112, 0.0
      %v2145 = vmax.f32 %v2113, 0.0
      %v2146 = vmax.f32 %v2114, 0.0
      %v2147 = vmax.f32 %v2115, 0.0
      %v2148 = vmax.f32 %v2116, 0.0
      %v2149 = vmax.f32 %v2117, 0.0
      %v2150 = vmax.f32 %v2118, 0.0
      %v2151 = vmax.f32 %v2119, 0.0
      %v2152 = vmax.f32 %v2120, 0.0
      %v2153 = vmax.f32 %v2121, 0.0
      %v2154 = vmax.f32 %v2122, 0.0
      %v2155 = vmax.f32 %v2123, 0.0
      %v2156 = vmax.f32 %v2124, 0.0
      %v2157 = vmax.f32 %v2125, 0.0
      %v2158 = vmax.f32 %v2126, 0.0
      %v2159 = vmax.f32 %v2127, 0.0
      %v2160 = vmax.f32 %v2128, 0.0
      %v2161 = vmax.f32 %v2129, 0.0
      %v2162 = vmax.f32 %v2130, 0.0
      %v2163 = vmax.f32 %v2131, 0.0
      %v2164 = vmax.f32 %v2132, 0.0
      %v2165 = vmax.f32 %v2133, 0.0
      %v2166 = vmax.f32 %v2134, 0.0
      %v2167 = vmax.f32 %v2135, 0.0
      %v2168 = vmax.f32 %v2136, 0.0
      %v2169 = vmax.f32 %v2137, 0.0
      %2170 = vst.msk [vmem:[%s291 + $0x1] sm:$0xff] %vm171, %v2138
      %2171 = vst.msk [vmem:[%s291 + $0x9] sm:$0xff] %vm171, %v2139
      %2172 = vst.msk [vmem:[%s291 + $0x19] sm:$0xff] %vm171, %v2140
      %2173 = vst.msk [vmem:[%s291 + $0x21] sm:$0xff] %vm171, %v2141
      %2174 = vst.msk [vmem:[%s291 + $0x31] sm:$0xff] %vm171, %v2142
      %2175 = vst.msk [vmem:[%s291 + $0x39] sm:$0xff] %vm171, %v2143
      %2176 = vst.msk [vmem:[%s291 + $0x49] sm:$0xff] %vm171, %v2144
      %2177 = vst.msk [vmem:[%s291 + $0x51] sm:$0xff] %vm171, %v2145
      %2178 = vst.msk [vmem:[%s291 + $0x61] sm:$0xff] %vm171, %v2146
      %2179 = vst.msk [vmem:[%s291 + $0x69] sm:$0xff] %vm171, %v2147
      %2180 = vst.msk [vmem:[%s291 + $0x79] sm:$0xff] %vm171, %v2148
      %2181 = vst.msk [vmem:[%s291 + $0x81] sm:$0xff] %vm171, %v2149
      %2182 = vst.msk [vmem:[%s291 + $0x91] sm:$0xff] %vm171, %v2150
      %2183 = vst.msk [vmem:[%s291 + $0x99] sm:$0xff] %vm171, %v2151
      %2184 = vst.msk [vmem:[%s291 + $0xa9] sm:$0xff] %vm171, %v2152
      %2185 = vst.msk [vmem:[%s291 + $0xb1] sm:$0xff] %vm171, %v2153
      %2186 = vst.msk [vmem:[%s291 + $0xc1] sm:$0xff] %vm171, %v2154
      %2187 = vst.msk [vmem:[%s291 + $0xc9] sm:$0xff] %vm171, %v2155
      %2188 = vst.msk [vmem:[%s291 + $0xd9] sm:$0xff] %vm171, %v2156
      %2189 = vst.msk [vmem:[%s291 + $0xe1] sm:$0xff] %vm171, %v2157
      %2190 = vst.msk [vmem:[%s291 + $0xf1] sm:$0xff] %vm171, %v2158
      %2191 = vst.msk [vmem:[%s291 + $0xf9] sm:$0xff] %vm171, %v2159
      %2192 = vst.msk [vmem:[%s291 + $0x109] sm:$0xff] %vm171, %v2160
      %2193 = vst.msk [vmem:[%s291 + $0x111] sm:$0xff] %vm171, %v2161
      %2194 = vst.msk [vmem:[%s291 + $0x121] sm:$0xff] %vm171, %v2162
      %2195 = vst.msk [vmem:[%s291 + $0x129] sm:$0xff] %vm171, %v2163
      %2196 = vst.msk [vmem:[%s291 + $0x139] sm:$0xff] %vm171, %v2164
      %2197 = vst.msk [vmem:[%s291 + $0x141] sm:$0xff] %vm171, %v2165
      %2198 = vst.msk [vmem:[%s291 + $0x151] sm:$0xff] %vm171, %v2166
      %2199 = vst.msk [vmem:[%s291 + $0x159] sm:$0xff] %vm171, %v2167
      %2200 = vst.msk [vmem:[%s291 + $0x169] sm:$0xff] %vm171, %v2168
      %2201 = vst.msk [vmem:[%s291 + $0x171] sm:$0xff] %vm171, %v2169
      %v2202 = vld [vmem:[#allocation2] sm:$0xff]
      %v2203 = vld [vmem:[#allocation2 + $0x8] sm:$0xff]
      %v2204 = vld [vmem:[#allocation2 + $0x10] sm:$0x3]
      %v2205 = vld [vmem:[#allocation2 + $0x18] sm:$0xff]
      %v2206 = vld [vmem:[#allocation2 + $0x20] sm:$0xff]
      %v2207 = vld [vmem:[#allocation2 + $0x28] sm:$0x3]
      %v2208 = vld [vmem:[#allocation2 + $0x30] sm:$0xff]
      %v2209 = vld [vmem:[#allocation2 + $0x38] sm:$0xff]
      %v2210 = vld [vmem:[#allocation2 + $0x40] sm:$0x3]
      %v2211 = vld [vmem:[#allocation2 + $0x48] sm:$0xff]
      %v2212 = vld [vmem:[#allocation2 + $0x50] sm:$0xff]
      %v2213 = vld [vmem:[#allocation2 + $0x58] sm:$0x3]
      %v2214 = vld [vmem:[#allocation2 + $0x60] sm:$0xff]
      %v2215 = vld [vmem:[#allocation2 + $0x68] sm:$0xff]
      %v2216 = vld [vmem:[#allocation2 + $0x70] sm:$0x3]
      %v2217 = vld [vmem:[#allocation2 + $0x78] sm:$0xff]
      %v2218 = vld [vmem:[#allocation2 + $0x80] sm:$0xff]
      %v2219 = vld [vmem:[#allocation2 + $0x88] sm:$0x3]
      %v2220 = vld [vmem:[#allocation2 + $0x90] sm:$0xff]
      %v2221 = vld [vmem:[#allocation2 + $0x98] sm:$0xff]
      %v2222 = vld [vmem:[#allocation2 + $0xa0] sm:$0x3]
      %v2223 = vld [vmem:[#allocation2 + $0xa8] sm:$0xff]
      %v2224 = vld [vmem:[#allocation2 + $0xb0] sm:$0xff]
      %v2225 = vld [vmem:[#allocation2 + $0xb8] sm:$0x3]
      %v2226 = vld [vmem:[#allocation2 + $0xc0] sm:$0xff]
      %v2227 = vld [vmem:[#allocation2 + $0xc8] sm:$0xff]
      %v2228 = vld [vmem:[#allocation2 + $0xd0] sm:$0x3]
      %v2229 = vld [vmem:[#allocation2 + $0xd8] sm:$0xff]
      %v2230 = vld [vmem:[#allocation2 + $0xe0] sm:$0xff]
      %v2231 = vld [vmem:[#allocation2 + $0xe8] sm:$0x3]
      %v2232 = vld [vmem:[#allocation2 + $0xf0] sm:$0xff]
      %v2233 = vld [vmem:[#allocation2 + $0xf8] sm:$0xff]
      %v2234 = vld [vmem:[#allocation2 + $0x100] sm:$0x3]
      %v2235 = vld [vmem:[#allocation2 + $0x108] sm:$0xff]
      %v2236 = vld [vmem:[#allocation2 + $0x110] sm:$0xff]
      %v2237 = vld [vmem:[#allocation2 + $0x118] sm:$0x3]
      %v2238 = vld [vmem:[#allocation2 + $0x120] sm:$0xff]
      %v2239 = vld [vmem:[#allocation2 + $0x128] sm:$0xff]
      %v2240 = vld [vmem:[#allocation2 + $0x130] sm:$0x3]
      %v2241 = vld [vmem:[#allocation2 + $0x138] sm:$0xff]
      %v2242 = vld [vmem:[#allocation2 + $0x140] sm:$0xff]
      %v2243 = vld [vmem:[#allocation2 + $0x148] sm:$0x3]
      %v2244 = vld [vmem:[#allocation2 + $0x150] sm:$0xff]
      %v2245 = vld [vmem:[#allocation2 + $0x158] sm:$0xff]
      %v2246 = vld [vmem:[#allocation2 + $0x160] sm:$0x3]
      %v2247 = vld [vmem:[#allocation2 + $0x168] sm:$0xff]
      %v2248 = vld [vmem:[#allocation2 + $0x170] sm:$0xff]
      %v2249 = vld [vmem:[#allocation2 + $0x178] sm:$0x3]
      %v2250 = vld [vmem:[#allocation2 + $0x180] sm:$0xff]
      %v2251 = vld [vmem:[#allocation2 + $0x188] sm:$0xff]
      %v2252 = vld [vmem:[#allocation2 + $0x190] sm:$0x3]
      %v2253 = vld [vmem:[#allocation2 + $0x198] sm:$0xff]
      %v2254 = vld [vmem:[#allocation2 + $0x1a0] sm:$0xff]
      %v2255 = vld [vmem:[#allocation2 + $0x1a8] sm:$0x3]
      %v2304 = vrot.slane %v2202, 1
      %v2305 = vrot.slane %v2203, 1
      %v2306 = vsel %vm426, %v2304, %v2305
      %v2307 = vrot.slane %v2204, 1
      %v2308 = vsel %vm426, %v2305, %v2307
      %v2309 = vrot.slane %v2205, 1
      %v2310 = vrot.slane %v2206, 1
      %v2311 = vsel %vm426, %v2309, %v2310
      %v2312 = vrot.slane %v2207, 1
      %v2313 = vsel %vm426, %v2310, %v2312
      %v2314 = vrot.slane %v2208, 1
      %v2315 = vrot.slane %v2209, 1
      %v2316 = vsel %vm426, %v2314, %v2315
      %v2317 = vrot.slane %v2210, 1
      %v2318 = vsel %vm426, %v2315, %v2317
      %v2319 = vrot.slane %v2211, 1
      %v2320 = vrot.slane %v2212, 1
      %v2321 = vsel %vm426, %v2319, %v2320
      %v2322 = vrot.slane %v2213, 1
      %v2323 = vsel %vm426, %v2320, %v2322
      %v2324 = vrot.slane %v2214, 1
      %v2325 = vrot.slane %v2215, 1
      %v2326 = vsel %vm426, %v2324, %v2325
      %v2327 = vrot.slane %v2216, 1
      %v2328 = vsel %vm426, %v2325, %v2327
      %v2329 = vrot.slane %v2217, 1
      %v2330 = vrot.slane %v2218, 1
      %v2331 = vsel %vm426, %v2329, %v2330
      %v2332 = vrot.slane %v2219, 1
      %v2333 = vsel %vm426, %v2330, %v2332
      %v2334 = vrot.slane %v2220, 1
      %v2335 = vrot.slane %v2221, 1
      %v2336 = vsel %vm426, %v2334, %v2335
      %v2337 = vrot.slane %v2222, 1
      %v2338 = vsel %vm426, %v2335, %v2337
      %v2339 = vrot.slane %v2223, 1
      %v2340 = vrot.slane %v2224, 1
      %v2341 = vsel %vm426, %v2339, %v2340
      %v2342 = vrot.slane %v2225, 1
      %v2343 = vsel %vm426, %v2340, %v2342
      %v2344 = vrot.slane %v2226, 1
      %v2345 = vrot.slane %v2227, 1
      %v2346 = vsel %vm426, %v2344, %v2345
      %v2347 = vrot.slane %v2228, 1
      %v2348 = vsel %vm426, %v2345, %v2347
      %v2349 = vrot.slane %v2229, 1
      %v2350 = vrot.slane %v2230, 1
      %v2351 = vsel %vm426, %v2349, %v2350
      %v2352 = vrot.slane %v2231, 1
      %v2353 = vsel %vm426, %v2350, %v2352
      %v2354 = vrot.slane %v2232, 1
      %v2355 = vrot.slane %v2233, 1
      %v2356 = vsel %vm426, %v2354, %v2355
      %v2357 = vrot.slane %v2234, 1
      %v2358 = vsel %vm426, %v2355, %v2357
      %v2359 = vrot.slane %v2235, 1
      %v2360 = vrot.slane %v2236, 1
      %v2361 = vsel %vm426, %v2359, %v2360
      %v2362 = vrot.slane %v2237, 1
      %v2363 = vsel %vm426, %v2360, %v2362
      %v2364 = vrot.slane %v2238, 1
      %v2365 = vrot.slane %v2239, 1
      %v2366 = vsel %vm426, %v2364, %v2365
      %v2367 = vrot.slane %v2240, 1
      %v2368 = vsel %vm426, %v2365, %v2367
      %v2369 = vrot.slane %v2241, 1
      %v2370 = vrot.slane %v2242, 1
      %v2371 = vsel %vm426, %v2369, %v2370
      %v2372 = vrot.slane %v2243, 1
      %v2373 = vsel %vm426, %v2370, %v2372
      %v2374 = vrot.slane %v2244, 1
      %v2375 = vrot.slane %v2245, 1
      %v2376 = vsel %vm426, %v2374, %v2375
      %v2377 = vrot.slane %v2246, 1
      %v2378 = vsel %vm426, %v2375, %v2377
      %v2379 = vrot.slane %v2247, 1
      %v2380 = vrot.slane %v2248, 1
      %v2381 = vsel %vm426, %v2379, %v2380
      %v2382 = vrot.slane %v2249, 1
      %v2383 = vsel %vm426, %v2380, %v2382
      %2384 = vrot.lane.b32.xlu0 %v2306, 4
      %v2385 = vpop.permute.xlu0 %2384
      %2386 = vrot.lane.b32.xlu0 %v2308, 4
      %v2387 = vpop.permute.xlu0 %2386
      %2388 = vrot.lane.b32.xlu0 %v2311, 4
      %v2389 = vpop.permute.xlu0 %2388
      %2390 = vrot.lane.b32.xlu0 %v2313, 4
      %v2391 = vpop.permute.xlu0 %2390
      %2392 = vrot.lane.b32.xlu0 %v2316, 4
      %v2393 = vpop.permute.xlu0 %2392
      %2394 = vrot.lane.b32.xlu0 %v2318, 4
      %v2395 = vpop.permute.xlu0 %2394
      %2396 = vrot.lane.b32.xlu0 %v2321, 4
      %v2397 = vpop.permute.xlu0 %2396
      %2398 = vrot.lane.b32.xlu0 %v2323, 4
      %v2399 = vpop.permute.xlu0 %2398
      %2400 = vrot.lane.b32.xlu0 %v2326, 4
      %v2401 = vpop.permute.xlu0 %2400
      %2402 = vrot.lane.b32.xlu0 %v2328, 4
      %v2403 = vpop.permute.xlu0 %2402
      %2404 = vrot.lane.b32.xlu0 %v2331, 4
      %v2405 = vpop.permute.xlu0 %2404
      %2406 = vrot.lane.b32.xlu0 %v2333, 4
      %v2407 = vpop.permute.xlu0 %2406
      %2408 = vrot.lane.b32.xlu0 %v2336, 4
      %v2409 = vpop.permute.xlu0 %2408
      %2410 = vrot.lane.b32.xlu0 %v2338, 4
      %v2411 = vpop.permute.xlu0 %2410
      %2412 = vrot.lane.b32.xlu0 %v2341, 4
      %v2413 = vpop.permute.xlu0 %2412
      %2414 = vrot.lane.b32.xlu0 %v2343, 4
      %v2415 = vpop.permute.xlu0 %2414
      %2416 = vrot.lane.b32.xlu0 %v2346, 4
      %v2417 = vpop.permute.xlu0 %2416
      %2418 = vrot.lane.b32.xlu0 %v2348, 4
      %v2419 = vpop.permute.xlu0 %2418
      %2420 = vrot.lane.b32.xlu0 %v2351, 4
      %v2421 = vpop.permute.xlu0 %2420
      %2422 = vrot.lane.b32.xlu0 %v2353, 4
      %v2423 = vpop.permute.xlu0 %2422
      %2424 = vrot.lane.b32.xlu0 %v2356, 4
      %v2425 = vpop.permute.xlu0 %2424
      %2426 = vrot.lane.b32.xlu0 %v2358, 4
      %v2427 = vpop.permute.xlu0 %2426
      %2428 = vrot.lane.b32.xlu0 %v2361, 4
      %v2429 = vpop.permute.xlu0 %2428
      %2430 = vrot.lane.b32.xlu0 %v2363, 4
      %v2431 = vpop.permute.xlu0 %2430
      %2432 = vrot.lane.b32.xlu0 %v2366, 4
      %v2433 = vpop.permute.xlu0 %2432
      %2434 = vrot.lane.b32.xlu0 %v2368, 4
      %v2435 = vpop.permute.xlu0 %2434
      %2436 = vrot.lane.b32.xlu0 %v2371, 4
      %v2437 = vpop.permute.xlu0 %2436
      %2438 = vrot.lane.b32.xlu0 %v2373, 4
      %v2439 = vpop.permute.xlu0 %2438
      %2440 = vrot.lane.b32.xlu0 %v2376, 4
      %v2441 = vpop.permute.xlu0 %2440
      %2442 = vrot.lane.b32.xlu0 %v2378, 4
      %v2443 = vpop.permute.xlu0 %2442
      %2444 = vrot.lane.b32.xlu0 %v2381, 4
      %v2445 = vpop.permute.xlu0 %2444
      %2446 = vrot.lane.b32.xlu0 %v2383, 4
      %v2447 = vpop.permute.xlu0 %2446
      %v2480 = vrot.slane %v2202, 2
      %v2481 = vrot.slane %v2203, 2
      %v2482 = vsel %vm603, %v2480, %v2481
      %v2483 = vrot.slane %v2204, 2
      %v2484 = vsel %vm603, %v2481, %v2483
      %v2485 = vrot.slane %v2205, 2
      %v2486 = vrot.slane %v2206, 2
      %v2487 = vsel %vm603, %v2485, %v2486
      %v2488 = vrot.slane %v2207, 2
      %v2489 = vsel %vm603, %v2486, %v2488
      %v2490 = vrot.slane %v2208, 2
      %v2491 = vrot.slane %v2209, 2
      %v2492 = vsel %vm603, %v2490, %v2491
      %v2493 = vrot.slane %v2210, 2
      %v2494 = vsel %vm603, %v2491, %v2493
      %v2495 = vrot.slane %v2211, 2
      %v2496 = vrot.slane %v2212, 2
      %v2497 = vsel %vm603, %v2495, %v2496
      %v2498 = vrot.slane %v2213, 2
      %v2499 = vsel %vm603, %v2496, %v2498
      %v2500 = vrot.slane %v2214, 2
      %v2501 = vrot.slane %v2215, 2
      %v2502 = vsel %vm603, %v2500, %v2501
      %v2503 = vrot.slane %v2216, 2
      %v2504 = vsel %vm603, %v2501, %v2503
      %v2505 = vrot.slane %v2217, 2
      %v2506 = vrot.slane %v2218, 2
      %v2507 = vsel %vm603, %v2505, %v2506
      %v2508 = vrot.slane %v2219, 2
      %v2509 = vsel %vm603, %v2506, %v2508
      %v2510 = vrot.slane %v2220, 2
      %v2511 = vrot.slane %v2221, 2
      %v2512 = vsel %vm603, %v2510, %v2511
      %v2513 = vrot.slane %v2222, 2
      %v2514 = vsel %vm603, %v2511, %v2513
      %v2515 = vrot.slane %v2223, 2
      %v2516 = vrot.slane %v2224, 2
      %v2517 = vsel %vm603, %v2515, %v2516
      %v2518 = vrot.slane %v2225, 2
      %v2519 = vsel %vm603, %v2516, %v2518
      %v2520 = vrot.slane %v2226, 2
      %v2521 = vrot.slane %v2227, 2
      %v2522 = vsel %vm603, %v2520, %v2521
      %v2523 = vrot.slane %v2228, 2
      %v2524 = vsel %vm603, %v2521, %v2523
      %v2525 = vrot.slane %v2229, 2
      %v2526 = vrot.slane %v2230, 2
      %v2527 = vsel %vm603, %v2525, %v2526
      %v2528 = vrot.slane %v2231, 2
      %v2529 = vsel %vm603, %v2526, %v2528
      %v2530 = vrot.slane %v2232, 2
      %v2531 = vrot.slane %v2233, 2
      %v2532 = vsel %vm603, %v2530, %v2531
      %v2533 = vrot.slane %v2234, 2
      %v2534 = vsel %vm603, %v2531, %v2533
      %v2535 = vrot.slane %v2235, 2
      %v2536 = vrot.slane %v2236, 2
      %v2537 = vsel %vm603, %v2535, %v2536
      %v2538 = vrot.slane %v2237, 2
      %v2539 = vsel %vm603, %v2536, %v2538
      %v2540 = vrot.slane %v2238, 2
      %v2541 = vrot.slane %v2239, 2
      %v2542 = vsel %vm603, %v2540, %v2541
      %v2543 = vrot.slane %v2240, 2
      %v2544 = vsel %vm603, %v2541, %v2543
      %v2545 = vrot.slane %v2241, 2
      %v2546 = vrot.slane %v2242, 2
      %v2547 = vsel %vm603, %v2545, %v2546
      %v2548 = vrot.slane %v2243, 2
      %v2549 = vsel %vm603, %v2546, %v2548
      %v2550 = vrot.slane %v2244, 2
      %v2551 = vrot.slane %v2245, 2
      %v2552 = vsel %vm603, %v2550, %v2551
      %v2553 = vrot.slane %v2246, 2
      %v2554 = vsel %vm603, %v2551, %v2553
      %v2555 = vrot.slane %v2247, 2
      %v2556 = vrot.slane %v2248, 2
      %v2557 = vsel %vm603, %v2555, %v2556
      %v2558 = vrot.slane %v2249, 2
      %v2559 = vsel %vm603, %v2556, %v2558
      %2560 = vrot.lane.b32.xlu0 %v2482, 8
      %v2561 = vpop.permute.xlu0 %2560
      %2562 = vrot.lane.b32.xlu0 %v2484, 8
      %v2563 = vpop.permute.xlu0 %2562
      %2564 = vrot.lane.b32.xlu0 %v2487, 8
      %v2565 = vpop.permute.xlu0 %2564
      %2566 = vrot.lane.b32.xlu0 %v2489, 8
      %v2567 = vpop.permute.xlu0 %2566
      %2568 = vrot.lane.b32.xlu0 %v2492, 8
      %v2569 = vpop.permute.xlu0 %2568
      %2570 = vrot.lane.b32.xlu0 %v2494, 8
      %v2571 = vpop.permute.xlu0 %2570
      %2572 = vrot.lane.b32.xlu0 %v2497, 8
      %v2573 = vpop.permute.xlu0 %2572
      %2574 = vrot.lane.b32.xlu0 %v2499, 8
      %v2575 = vpop.permute.xlu0 %2574
      %2576 = vrot.lane.b32.xlu0 %v2502, 8
      %v2577 = vpop.permute.xlu0 %2576
      %2578 = vrot.lane.b32.xlu0 %v2504, 8
      %v2579 = vpop.permute.xlu0 %2578
      %2580 = vrot.lane.b32.xlu0 %v2507, 8
      %v2581 = vpop.permute.xlu0 %2580
      %2582 = vrot.lane.b32.xlu0 %v2509, 8
      %v2583 = vpop.permute.xlu0 %2582
      %2584 = vrot.lane.b32.xlu0 %v2512, 8
      %v2585 = vpop.permute.xlu0 %2584
      %2586 = vrot.lane.b32.xlu0 %v2514, 8
      %v2587 = vpop.permute.xlu0 %2586
      %2588 = vrot.lane.b32.xlu0 %v2517, 8
      %v2589 = vpop.permute.xlu0 %2588
      %2590 = vrot.lane.b32.xlu0 %v2519, 8
      %v2591 = vpop.permute.xlu0 %2590
      %2592 = vrot.lane.b32.xlu0 %v2522, 8
      %v2593 = vpop.permute.xlu0 %2592
      %2594 = vrot.lane.b32.xlu0 %v2524, 8
      %v2595 = vpop.permute.xlu0 %2594
      %2596 = vrot.lane.b32.xlu0 %v2527, 8
      %v2597 = vpop.permute.xlu0 %2596
      %2598 = vrot.lane.b32.xlu0 %v2529, 8
      %v2599 = vpop.permute.xlu0 %2598
      %2600 = vrot.lane.b32.xlu0 %v2532, 8
      %v2601 = vpop.permute.xlu0 %2600
      %2602 = vrot.lane.b32.xlu0 %v2534, 8
      %v2603 = vpop.permute.xlu0 %2602
      %2604 = vrot.lane.b32.xlu0 %v2537, 8
      %v2605 = vpop.permute.xlu0 %2604
      %2606 = vrot.lane.b32.xlu0 %v2539, 8
      %v2607 = vpop.permute.xlu0 %2606
      %2608 = vrot.lane.b32.xlu0 %v2542, 8
      %v2609 = vpop.permute.xlu0 %2608
      %2610 = vrot.lane.b32.xlu0 %v2544, 8
      %v2611 = vpop.permute.xlu0 %2610
      %2612 = vrot.lane.b32.xlu0 %v2547, 8
      %v2613 = vpop.permute.xlu0 %2612
      %2614 = vrot.lane.b32.xlu0 %v2549, 8
      %v2615 = vpop.permute.xlu0 %2614
      %2616 = vrot.lane.b32.xlu0 %v2552, 8
      %v2617 = vpop.permute.xlu0 %2616
      %2618 = vrot.lane.b32.xlu0 %v2554, 8
      %v2619 = vpop.permute.xlu0 %2618
      %2620 = vrot.lane.b32.xlu0 %v2557, 8
      %v2621 = vpop.permute.xlu0 %2620
      %2622 = vrot.lane.b32.xlu0 %v2559, 8
      %v2623 = vpop.permute.xlu0 %2622
      %2658 = vrot.lane.b32.xlu0 %v2205, 12
      %v2659 = vpop.permute.xlu0 %2658
      %2660 = vrot.lane.b32.xlu0 %v2206, 12
      %v2661 = vpop.permute.xlu0 %2660
      %2662 = vrot.lane.b32.xlu0 %v2208, 12
      %v2663 = vpop.permute.xlu0 %2662
      %2664 = vrot.lane.b32.xlu0 %v2209, 12
      %v2665 = vpop.permute.xlu0 %2664
      %2666 = vrot.lane.b32.xlu0 %v2211, 12
      %v2667 = vpop.permute.xlu0 %2666
      %2668 = vrot.lane.b32.xlu0 %v2212, 12
      %v2669 = vpop.permute.xlu0 %2668
      %2670 = vrot.lane.b32.xlu0 %v2214, 12
      %v2671 = vpop.permute.xlu0 %2670
      %2672 = vrot.lane.b32.xlu0 %v2215, 12
      %v2673 = vpop.permute.xlu0 %2672
      %2674 = vrot.lane.b32.xlu0 %v2217, 12
      %v2675 = vpop.permute.xlu0 %2674
      %2676 = vrot.lane.b32.xlu0 %v2218, 12
      %v2677 = vpop.permute.xlu0 %2676
      %2678 = vrot.lane.b32.xlu0 %v2220, 12
      %v2679 = vpop.permute.xlu0 %2678
      %2680 = vrot.lane.b32.xlu0 %v2221, 12
      %v2681 = vpop.permute.xlu0 %2680
      %2682 = vrot.lane.b32.xlu0 %v2223, 12
      %v2683 = vpop.permute.xlu0 %2682
      %2684 = vrot.lane.b32.xlu0 %v2224, 12
      %v2685 = vpop.permute.xlu0 %2684
      %2686 = vrot.lane.b32.xlu0 %v2226, 12
      %v2687 = vpop.permute.xlu0 %2686
      %2688 = vrot.lane.b32.xlu0 %v2227, 12
      %v2689 = vpop.permute.xlu0 %2688
      %2690 = vrot.lane.b32.xlu0 %v2229, 12
      %v2691 = vpop.permute.xlu0 %2690
      %2692 = vrot.lane.b32.xlu0 %v2230, 12
      %v2693 = vpop.permute.xlu0 %2692
      %2694 = vrot.lane.b32.xlu0 %v2232, 12
      %v2695 = vpop.permute.xlu0 %2694
      %2696 = vrot.lane.b32.xlu0 %v2233, 12
      %v2697 = vpop.permute.xlu0 %2696
      %2698 = vrot.lane.b32.xlu0 %v2235, 12
      %v2699 = vpop.permute.xlu0 %2698
      %2700 = vrot.lane.b32.xlu0 %v2236, 12
      %v2701 = vpop.permute.xlu0 %2700
      %2702 = vrot.lane.b32.xlu0 %v2238, 12
      %v2703 = vpop.permute.xlu0 %2702
      %2704 = vrot.lane.b32.xlu0 %v2239, 12
      %v2705 = vpop.permute.xlu0 %2704
      %2706 = vrot.lane.b32.xlu0 %v2241, 12
      %v2707 = vpop.permute.xlu0 %2706
      %2708 = vrot.lane.b32.xlu0 %v2242, 12
      %v2709 = vpop.permute.xlu0 %2708
      %2710 = vrot.lane.b32.xlu0 %v2244, 12
      %v2711 = vpop.permute.xlu0 %2710
      %2712 = vrot.lane.b32.xlu0 %v2245, 12
      %v2713 = vpop.permute.xlu0 %2712
      %2714 = vrot.lane.b32.xlu0 %v2247, 12
      %v2715 = vpop.permute.xlu0 %2714
      %2716 = vrot.lane.b32.xlu0 %v2248, 12
      %v2717 = vpop.permute.xlu0 %2716
      %2718 = vrot.lane.b32.xlu0 %v2250, 12
      %v2719 = vpop.permute.xlu0 %2718
      %2720 = vrot.lane.b32.xlu0 %v2251, 12
      %v2721 = vpop.permute.xlu0 %2720
      %v2755 = vrot.slane %v2250, 1
      %v2756 = vrot.slane %v2251, 1
      %v2757 = vsel %vm426, %v2755, %v2756
      %v2758 = vrot.slane %v2252, 1
      %v2759 = vsel %vm426, %v2756, %v2758
      %2760 = vrot.lane.b32.xlu0 %v2311, 16
      %v2761 = vpop.permute.xlu0 %2760
      %2762 = vrot.lane.b32.xlu0 %v2313, 16
      %v2763 = vpop.permute.xlu0 %2762
      %2764 = vrot.lane.b32.xlu0 %v2316, 16
      %v2765 = vpop.permute.xlu0 %2764
      %2766 = vrot.lane.b32.xlu0 %v2318, 16
      %v2767 = vpop.permute.xlu0 %2766
      %2768 = vrot.lane.b32.xlu0 %v2321, 16
      %v2769 = vpop.permute.xlu0 %2768
      %2770 = vrot.lane.b32.xlu0 %v2323, 16
      %v2771 = vpop.permute.xlu0 %2770
      %2772 = vrot.lane.b32.xlu0 %v2326, 16
      %v2773 = vpop.permute.xlu0 %2772
      %2774 = vrot.lane.b32.xlu0 %v2328, 16
      %v2775 = vpop.permute.xlu0 %2774
      %2776 = vrot.lane.b32.xlu0 %v2331, 16
      %v2777 = vpop.permute.xlu0 %2776
      %2778 = vrot.lane.b32.xlu0 %v2333, 16
      %v2779 = vpop.permute.xlu0 %2778
      %2780 = vrot.lane.b32.xlu0 %v2336, 16
      %v2781 = vpop.permute.xlu0 %2780
      %2782 = vrot.lane.b32.xlu0 %v2338, 16
      %v2783 = vpop.permute.xlu0 %2782
      %2784 = vrot.lane.b32.xlu0 %v2341, 16
      %v2785 = vpop.permute.xlu0 %2784
      %2786 = vrot.lane.b32.xlu0 %v2343, 16
      %v2787 = vpop.permute.xlu0 %2786
      %2788 = vrot.lane.b32.xlu0 %v2346, 16
      %v2789 = vpop.permute.xlu0 %2788
      %2790 = vrot.lane.b32.xlu0 %v2348, 16
      %v2791 = vpop.permute.xlu0 %2790
      %2792 = vrot.lane.b32.xlu0 %v2351, 16
      %v2793 = vpop.permute.xlu0 %2792
      %2794 = vrot.lane.b32.xlu0 %v2353, 16
      %v2795 = vpop.permute.xlu0 %2794
      %2796 = vrot.lane.b32.xlu0 %v2356, 16
      %v2797 = vpop.permute.xlu0 %2796
      %2798 = vrot.lane.b32.xlu0 %v2358, 16
      %v2799 = vpop.permute.xlu0 %2798
      %2800 = vrot.lane.b32.xlu0 %v2361, 16
      %v2801 = vpop.permute.xlu0 %2800
      %2802 = vrot.lane.b32.xlu0 %v2363, 16
      %v2803 = vpop.permute.xlu0 %2802
      %2804 = vrot.lane.b32.xlu0 %v2366, 16
      %v2805 = vpop.permute.xlu0 %2804
      %2806 = vrot.lane.b32.xlu0 %v2368, 16
      %v2807 = vpop.permute.xlu0 %2806
      %2808 = vrot.lane.b32.xlu0 %v2371, 16
      %v2809 = vpop.permute.xlu0 %2808
      %2810 = vrot.lane.b32.xlu0 %v2373, 16
      %v2811 = vpop.permute.xlu0 %2810
      %2812 = vrot.lane.b32.xlu0 %v2376, 16
      %v2813 = vpop.permute.xlu0 %2812
      %2814 = vrot.lane.b32.xlu0 %v2378, 16
      %v2815 = vpop.permute.xlu0 %2814
      %2816 = vrot.lane.b32.xlu0 %v2381, 16
      %v2817 = vpop.permute.xlu0 %2816
      %2818 = vrot.lane.b32.xlu0 %v2383, 16
      %v2819 = vpop.permute.xlu0 %2818
      %2820 = vrot.lane.b32.xlu0 %v2757, 16
      %v2821 = vpop.permute.xlu0 %2820
      %2822 = vrot.lane.b32.xlu0 %v2759, 16
      %v2823 = vpop.permute.xlu0 %2822
      %v2856 = vrot.slane %v2250, 2
      %v2857 = vrot.slane %v2251, 2
      %v2858 = vsel %vm603, %v2856, %v2857
      %v2859 = vrot.slane %v2252, 2
      %v2860 = vsel %vm603, %v2857, %v2859
      %2861 = vrot.lane.b32.xlu0 %v2487, 20
      %v2862 = vpop.permute.xlu0 %2861
      %2863 = vrot.lane.b32.xlu0 %v2489, 20
      %v2864 = vpop.permute.xlu0 %2863
      %2865 = vrot.lane.b32.xlu0 %v2492, 20
      %v2866 = vpop.permute.xlu0 %2865
      %2867 = vrot.lane.b32.xlu0 %v2494, 20
      %v2868 = vpop.permute.xlu0 %2867
      %2869 = vrot.lane.b32.xlu0 %v2497, 20
      %v2870 = vpop.permute.xlu0 %2869
      %2871 = vrot.lane.b32.xlu0 %v2499, 20
      %v2872 = vpop.permute.xlu0 %2871
      %2873 = vrot.lane.b32.xlu0 %v2502, 20
      %v2874 = vpop.permute.xlu0 %2873
      %2875 = vrot.lane.b32.xlu0 %v2504, 20
      %v2876 = vpop.permute.xlu0 %2875
      %2877 = vrot.lane.b32.xlu0 %v2507, 20
      %v2878 = vpop.permute.xlu0 %2877
      %2879 = vrot.lane.b32.xlu0 %v2509, 20
      %v2880 = vpop.permute.xlu0 %2879
      %2881 = vrot.lane.b32.xlu0 %v2512, 20
      %v2882 = vpop.permute.xlu0 %2881
      %2883 = vrot.lane.b32.xlu0 %v2514, 20
      %v2884 = vpop.permute.xlu0 %2883
      %2885 = vrot.lane.b32.xlu0 %v2517, 20
      %v2886 = vpop.permute.xlu0 %2885
      %2887 = vrot.lane.b32.xlu0 %v2519, 20
      %v2888 = vpop.permute.xlu0 %2887
      %2889 = vrot.lane.b32.xlu0 %v2522, 20
      %v2890 = vpop.permute.xlu0 %2889
      %2891 = vrot.lane.b32.xlu0 %v2524, 20
      %v2892 = vpop.permute.xlu0 %2891
      %2893 = vrot.lane.b32.xlu0 %v2527, 20
      %v2894 = vpop.permute.xlu0 %2893
      %2895 = vrot.lane.b32.xlu0 %v2529, 20
      %v2896 = vpop.permute.xlu0 %2895
      %2897 = vrot.lane.b32.xlu0 %v2532, 20
      %v2898 = vpop.permute.xlu0 %2897
      %2899 = vrot.lane.b32.xlu0 %v2534, 20
      %v2900 = vpop.permute.xlu0 %2899
      %2901 = vrot.lane.b32.xlu0 %v2537, 20
      %v2902 = vpop.permute.xlu0 %2901
      %2903 = vrot.lane.b32.xlu0 %v2539, 20
      %v2904 = vpop.permute.xlu0 %2903
      %2905 = vrot.lane.b32.xlu0 %v2542, 20
      %v2906 = vpop.permute.xlu0 %2905
      %2907 = vrot.lane.b32.xlu0 %v2544, 20
      %v2908 = vpop.permute.xlu0 %2907
      %2909 = vrot.lane.b32.xlu0 %v2547, 20
      %v2910 = vpop.permute.xlu0 %2909
      %2911 = vrot.lane.b32.xlu0 %v2549, 20
      %v2912 = vpop.permute.xlu0 %2911
      %2913 = vrot.lane.b32.xlu0 %v2552, 20
      %v2914 = vpop.permute.xlu0 %2913
      %2915 = vrot.lane.b32.xlu0 %v2554, 20
      %v2916 = vpop.permute.xlu0 %2915
      %2917 = vrot.lane.b32.xlu0 %v2557, 20
      %v2918 = vpop.permute.xlu0 %2917
      %2919 = vrot.lane.b32.xlu0 %v2559, 20
      %v2920 = vpop.permute.xlu0 %2919
      %2921 = vrot.lane.b32.xlu0 %v2858, 20
      %v2922 = vpop.permute.xlu0 %2921
      %2923 = vrot.lane.b32.xlu0 %v2860, 20
      %v2924 = vpop.permute.xlu0 %2923
      %2959 = vrot.lane.b32.xlu0 %v2208, 24
      %v2960 = vpop.permute.xlu0 %2959
      %2961 = vrot.lane.b32.xlu0 %v2209, 24
      %v2962 = vpop.permute.xlu0 %2961
      %2963 = vrot.lane.b32.xlu0 %v2211, 24
      %v2964 = vpop.permute.xlu0 %2963
      %2965 = vrot.lane.b32.xlu0 %v2212, 24
      %v2966 = vpop.permute.xlu0 %2965
      %2967 = vrot.lane.b32.xlu0 %v2214, 24
      %v2968 = vpop.permute.xlu0 %2967
      %2969 = vrot.lane.b32.xlu0 %v2215, 24
      %v2970 = vpop.permute.xlu0 %2969
      %2971 = vrot.lane.b32.xlu0 %v2217, 24
      %v2972 = vpop.permute.xlu0 %2971
      %2973 = vrot.lane.b32.xlu0 %v2218, 24
      %v2974 = vpop.permute.xlu0 %2973
      %2975 = vrot.lane.b32.xlu0 %v2220, 24
      %v2976 = vpop.permute.xlu0 %2975
      %2977 = vrot.lane.b32.xlu0 %v2221, 24
      %v2978 = vpop.permute.xlu0 %2977
      %2979 = vrot.lane.b32.xlu0 %v2223, 24
      %v2980 = vpop.permute.xlu0 %2979
      %2981 = vrot.lane.b32.xlu0 %v2224, 24
      %v2982 = vpop.permute.xlu0 %2981
      %2983 = vrot.lane.b32.xlu0 %v2226, 24
      %v2984 = vpop.permute.xlu0 %2983
      %2985 = vrot.lane.b32.xlu0 %v2227, 24
      %v2986 = vpop.permute.xlu0 %2985
      %2987 = vrot.lane.b32.xlu0 %v2229, 24
      %v2988 = vpop.permute.xlu0 %2987
      %2989 = vrot.lane.b32.xlu0 %v2230, 24
      %v2990 = vpop.permute.xlu0 %2989
      %2991 = vrot.lane.b32.xlu0 %v2232, 24
      %v2992 = vpop.permute.xlu0 %2991
      %2993 = vrot.lane.b32.xlu0 %v2233, 24
      %v2994 = vpop.permute.xlu0 %2993
      %2995 = vrot.lane.b32.xlu0 %v2235, 24
      %v2996 = vpop.permute.xlu0 %2995
      %2997 = vrot.lane.b32.xlu0 %v2236, 24
      %v2998 = vpop.permute.xlu0 %2997
      %2999 = vrot.lane.b32.xlu0 %v2238, 24
      %v3000 = vpop.permute.xlu0 %2999
      %3001 = vrot.lane.b32.xlu0 %v2239, 24
      %v3002 = vpop.permute.xlu0 %3001
      %3003 = vrot.lane.b32.xlu0 %v2241, 24
      %v3004 = vpop.permute.xlu0 %3003
      %3005 = vrot.lane.b32.xlu0 %v2242, 24
      %v3006 = vpop.permute.xlu0 %3005
      %3007 = vrot.lane.b32.xlu0 %v2244, 24
      %v3008 = vpop.permute.xlu0 %3007
      %3009 = vrot.lane.b32.xlu0 %v2245, 24
      %v3010 = vpop.permute.xlu0 %3009
      %3011 = vrot.lane.b32.xlu0 %v2247, 24
      %v3012 = vpop.permute.xlu0 %3011
      %3013 = vrot.lane.b32.xlu0 %v2248, 24
      %v3014 = vpop.permute.xlu0 %3013
      %3015 = vrot.lane.b32.xlu0 %v2250, 24
      %v3016 = vpop.permute.xlu0 %3015
      %3017 = vrot.lane.b32.xlu0 %v2251, 24
      %v3018 = vpop.permute.xlu0 %3017
      %3019 = vrot.lane.b32.xlu0 %v2253, 24
      %v3020 = vpop.permute.xlu0 %3019
      %3021 = vrot.lane.b32.xlu0 %v2254, 24
      %v3022 = vpop.permute.xlu0 %3021
      %v3056 = vrot.slane %v2253, 1
      %v3057 = vrot.slane %v2254, 1
      %v3058 = vsel %vm426, %v3056, %v3057
      %v3059 = vrot.slane %v2255, 1
      %v3060 = vsel %vm426, %v3057, %v3059
      %3061 = vrot.lane.b32.xlu0 %v2316, 28
      %v3062 = vpop.permute.xlu0 %3061
      %3063 = vrot.lane.b32.xlu0 %v2318, 28
      %v3064 = vpop.permute.xlu0 %3063
      %3065 = vrot.lane.b32.xlu0 %v2321, 28
      %v3066 = vpop.permute.xlu0 %3065
      %3067 = vrot.lane.b32.xlu0 %v2323, 28
      %v3068 = vpop.permute.xlu0 %3067
      %3069 = vrot.lane.b32.xlu0 %v2326, 28
      %v3070 = vpop.permute.xlu0 %3069
      %3071 = vrot.lane.b32.xlu0 %v2328, 28
      %v3072 = vpop.permute.xlu0 %3071
      %3073 = vrot.lane.b32.xlu0 %v2331, 28
      %v3074 = vpop.permute.xlu0 %3073
      %3075 = vrot.lane.b32.xlu0 %v2333, 28
      %v3076 = vpop.permute.xlu0 %3075
      %3077 = vrot.lane.b32.xlu0 %v2336, 28
      %v3078 = vpop.permute.xlu0 %3077
      %3079 = vrot.lane.b32.xlu0 %v2338, 28
      %v3080 = vpop.permute.xlu0 %3079
      %3081 = vrot.lane.b32.xlu0 %v2341, 28
      %v3082 = vpop.permute.xlu0 %3081
      %3083 = vrot.lane.b32.xlu0 %v2343, 28
      %v3084 = vpop.permute.xlu0 %3083
      %3085 = vrot.lane.b32.xlu0 %v2346, 28
      %v3086 = vpop.permute.xlu0 %3085
      %3087 = vrot.lane.b32.xlu0 %v2348, 28
      %v3088 = vpop.permute.xlu0 %3087
      %3089 = vrot.lane.b32.xlu0 %v2351, 28
      %v3090 = vpop.permute.xlu0 %3089
      %3091 = vrot.lane.b32.xlu0 %v2353, 28
      %v3092 = vpop.permute.xlu0 %3091
      %3093 = vrot.lane.b32.xlu0 %v2356, 28
      %v3094 = vpop.permute.xlu0 %3093
      %3095 = vrot.lane.b32.xlu0 %v2358, 28
      %v3096 = vpop.permute.xlu0 %3095
      %3097 = vrot.lane.b32.xlu0 %v2361, 28
      %v3098 = vpop.permute.xlu0 %3097
      %3099 = vrot.lane.b32.xlu0 %v2363, 28
      %v3100 = vpop.permute.xlu0 %3099
      %3101 = vrot.lane.b32.xlu0 %v2366, 28
      %v3102 = vpop.permute.xlu0 %3101
      %3103 = vrot.lane.b32.xlu0 %v2368, 28
      %v3104 = vpop.permute.xlu0 %3103
      %3105 = vrot.lane.b32.xlu0 %v2371, 28
      %v3106 = vpop.permute.xlu0 %3105
      %3107 = vrot.lane.b32.xlu0 %v2373, 28
      %v3108 = vpop.permute.xlu0 %3107
      %3109 = vrot.lane.b32.xlu0 %v2376, 28
      %v3110 = vpop.permute.xlu0 %3109
      %3111 = vrot.lane.b32.xlu0 %v2378, 28
      %v3112 = vpop.permute.xlu0 %3111
      %3113 = vrot.lane.b32.xlu0 %v2381, 28
      %v3114 = vpop.permute.xlu0 %3113
      %3115 = vrot.lane.b32.xlu0 %v2383, 28
      %v3116 = vpop.permute.xlu0 %3115
      %3117 = vrot.lane.b32.xlu0 %v2757, 28
      %v3118 = vpop.permute.xlu0 %3117
      %3119 = vrot.lane.b32.xlu0 %v2759, 28
      %v3120 = vpop.permute.xlu0 %3119
      %3121 = vrot.lane.b32.xlu0 %v3058, 28
      %v3122 = vpop.permute.xlu0 %3121
      %3123 = vrot.lane.b32.xlu0 %v3060, 28
      %v3124 = vpop.permute.xlu0 %3123
      %v3157 = vrot.slane %v2253, 2
      %v3158 = vrot.slane %v2254, 2
      %v3159 = vsel %vm603, %v3157, %v3158
      %v3160 = vrot.slane %v2255, 2
      %v3161 = vsel %vm603, %v3158, %v3160
      %3162 = vrot.lane.b32.xlu0 %v2492, 32
      %v3163 = vpop.permute.xlu0 %3162
      %3164 = vrot.lane.b32.xlu0 %v2494, 32
      %v3165 = vpop.permute.xlu0 %3164
      %3166 = vrot.lane.b32.xlu0 %v2497, 32
      %v3167 = vpop.permute.xlu0 %3166
      %3168 = vrot.lane.b32.xlu0 %v2499, 32
      %v3169 = vpop.permute.xlu0 %3168
      %3170 = vrot.lane.b32.xlu0 %v2502, 32
      %v3171 = vpop.permute.xlu0 %3170
      %3172 = vrot.lane.b32.xlu0 %v2504, 32
      %v3173 = vpop.permute.xlu0 %3172
      %3174 = vrot.lane.b32.xlu0 %v2507, 32
      %v3175 = vpop.permute.xlu0 %3174
      %3176 = vrot.lane.b32.xlu0 %v2509, 32
      %v3177 = vpop.permute.xlu0 %3176
      %3178 = vrot.lane.b32.xlu0 %v2512, 32
      %v3179 = vpop.permute.xlu0 %3178
      %3180 = vrot.lane.b32.xlu0 %v2514, 32
      %v3181 = vpop.permute.xlu0 %3180
      %3182 = vrot.lane.b32.xlu0 %v2517, 32
      %v3183 = vpop.permute.xlu0 %3182
      %3184 = vrot.lane.b32.xlu0 %v2519, 32
      %v3185 = vpop.permute.xlu0 %3184
      %3186 = vrot.lane.b32.xlu0 %v2522, 32
      %v3187 = vpop.permute.xlu0 %3186
      %3188 = vrot.lane.b32.xlu0 %v2524, 32
      %v3189 = vpop.permute.xlu0 %3188
      %3190 = vrot.lane.b32.xlu0 %v2527, 32
      %v3191 = vpop.permute.xlu0 %3190
      %3192 = vrot.lane.b32.xlu0 %v2529, 32
      %v3193 = vpop.permute.xlu0 %3192
      %3194 = vrot.lane.b32.xlu0 %v2532, 32
      %v3195 = vpop.permute.xlu0 %3194
      %3196 = vrot.lane.b32.xlu0 %v2534, 32
      %v3197 = vpop.permute.xlu0 %3196
      %3198 = vrot.lane.b32.xlu0 %v2537, 32
      %v3199 = vpop.permute.xlu0 %3198
      %3200 = vrot.lane.b32.xlu0 %v2539, 32
      %v3201 = vpop.permute.xlu0 %3200
      %3202 = vrot.lane.b32.xlu0 %v2542, 32
      %v3203 = vpop.permute.xlu0 %3202
      %3204 = vrot.lane.b32.xlu0 %v2544, 32
      %v3205 = vpop.permute.xlu0 %3204
      %3206 = vrot.lane.b32.xlu0 %v2547, 32
      %v3207 = vpop.permute.xlu0 %3206
      %3208 = vrot.lane.b32.xlu0 %v2549, 32
      %v3209 = vpop.permute.xlu0 %3208
      %3210 = vrot.lane.b32.xlu0 %v2552, 32
      %v3211 = vpop.permute.xlu0 %3210
      %3212 = vrot.lane.b32.xlu0 %v2554, 32
      %v3213 = vpop.permute.xlu0 %3212
      %3214 = vrot.lane.b32.xlu0 %v2557, 32
      %v3215 = vpop.permute.xlu0 %3214
      %3216 = vrot.lane.b32.xlu0 %v2559, 32
      %v3217 = vpop.permute.xlu0 %3216
      %3218 = vrot.lane.b32.xlu0 %v2858, 32
      %v3219 = vpop.permute.xlu0 %3218
      %3220 = vrot.lane.b32.xlu0 %v2860, 32
      %v3221 = vpop.permute.xlu0 %3220
      %3222 = vrot.lane.b32.xlu0 %v3159, 32
      %v3223 = vpop.permute.xlu0 %3222
      %3224 = vrot.lane.b32.xlu0 %v3161, 32
      %v3225 = vpop.permute.xlu0 %3224
      %v3258 = vsel %vm171, %v2202, %v2385
      %v3259 = vsel %vm171, %v2203, %v2387
      %v3260 = vsel %vm171, %v2205, %v2389
      %v3261 = vsel %vm171, %v2206, %v2391
      %v3262 = vsel %vm171, %v2208, %v2393
      %v3263 = vsel %vm171, %v2209, %v2395
      %v3264 = vsel %vm171, %v2211, %v2397
      %v3265 = vsel %vm171, %v2212, %v2399
      %v3266 = vsel %vm171, %v2214, %v2401
      %v3267 = vsel %vm171, %v2215, %v2403
      %v3268 = vsel %vm171, %v2217, %v2405
      %v3269 = vsel %vm171, %v2218, %v2407
      %v3270 = vsel %vm171, %v2220, %v2409
      %v3271 = vsel %vm171, %v2221, %v2411
      %v3272 = vsel %vm171, %v2223, %v2413
      %v3273 = vsel %vm171, %v2224, %v2415
      %v3274 = vsel %vm171, %v2226, %v2417
      %v3275 = vsel %vm171, %v2227, %v2419
      %v3276 = vsel %vm171, %v2229, %v2421
      %v3277 = vsel %vm171, %v2230, %v2423
      %v3278 = vsel %vm171, %v2232, %v2425
      %v3279 = vsel %vm171, %v2233, %v2427
      %v3280 = vsel %vm171, %v2235, %v2429
      %v3281 = vsel %vm171, %v2236, %v2431
      %v3282 = vsel %vm171, %v2238, %v2433
      %v3283 = vsel %vm171, %v2239, %v2435
      %v3284 = vsel %vm171, %v2241, %v2437
      %v3285 = vsel %vm171, %v2242, %v2439
      %v3286 = vsel %vm171, %v2244, %v2441
      %v3287 = vsel %vm171, %v2245, %v2443
      %v3288 = vsel %vm171, %v2247, %v2445
      %v3289 = vsel %vm171, %v2248, %v2447
      %v3290 = vsel %vm1414, %v3258, %v2561
      %v3291 = vsel %vm1414, %v3259, %v2563
      %v3292 = vsel %vm1414, %v3260, %v2565
      %v3293 = vsel %vm1414, %v3261, %v2567
      %v3294 = vsel %vm1414, %v3262, %v2569
      %v3295 = vsel %vm1414, %v3263, %v2571
      %v3296 = vsel %vm1414, %v3264, %v2573
      %v3297 = vsel %vm1414, %v3265, %v2575
      %v3298 = vsel %vm1414, %v3266, %v2577
      %v3299 = vsel %vm1414, %v3267, %v2579
      %v3300 = vsel %vm1414, %v3268, %v2581
      %v3301 = vsel %vm1414, %v3269, %v2583
      %v3302 = vsel %vm1414, %v3270, %v2585
      %v3303 = vsel %vm1414, %v3271, %v2587
      %v3304 = vsel %vm1414, %v3272, %v2589
      %v3305 = vsel %vm1414, %v3273, %v2591
      %v3306 = vsel %vm1414, %v3274, %v2593
      %v3307 = vsel %vm1414, %v3275, %v2595
      %v3308 = vsel %vm1414, %v3276, %v2597
      %v3309 = vsel %vm1414, %v3277, %v2599
      %v3310 = vsel %vm1414, %v3278, %v2601
      %v3311 = vsel %vm1414, %v3279, %v2603
      %v3312 = vsel %vm1414, %v3280, %v2605
      %v3313 = vsel %vm1414, %v3281, %v2607
      %v3314 = vsel %vm1414, %v3282, %v2609
      %v3315 = vsel %vm1414, %v3283, %v2611
      %v3316 = vsel %vm1414, %v3284, %v2613
      %v3317 = vsel %vm1414, %v3285, %v2615
      %v3318 = vsel %vm1414, %v3286, %v2617
      %v3319 = vsel %vm1414, %v3287, %v2619
      %v3320 = vsel %vm1414, %v3288, %v2621
      %v3321 = vsel %vm1414, %v3289, %v2623
      %v3322 = vsel %vm1447, %v3290, %v2659
      %v3323 = vsel %vm1447, %v3291, %v2661
      %v3324 = vsel %vm1447, %v3292, %v2663
      %v3325 = vsel %vm1447, %v3293, %v2665
      %v3326 = vsel %vm1447, %v3294, %v2667
      %v3327 = vsel %vm1447, %v3295, %v2669
      %v3328 = vsel %vm1447, %v3296, %v2671
      %v3329 = vsel %vm1447, %v3297, %v2673
      %v3330 = vsel %vm1447, %v3298, %v2675
      %v3331 = vsel %vm1447, %v3299, %v2677
      %v3332 = vsel %vm1447, %v3300, %v2679
      %v3333 = vsel %vm1447, %v3301, %v2681
      %v3334 = vsel %vm1447, %v3302, %v2683
      %v3335 = vsel %vm1447, %v3303, %v2685
      %v3336 = vsel %vm1447, %v3304, %v2687
      %v3337 = vsel %vm1447, %v3305, %v2689
      %v3338 = vsel %vm1447, %v3306, %v2691
      %v3339 = vsel %vm1447, %v3307, %v2693
      %v3340 = vsel %vm1447, %v3308, %v2695
      %v3341 = vsel %vm1447, %v3309, %v2697
      %v3342 = vsel %vm1447, %v3310, %v2699
      %v3343 = vsel %vm1447, %v3311, %v2701
      %v3344 = vsel %vm1447, %v3312, %v2703
      %v3345 = vsel %vm1447, %v3313, %v2705
      %v3346 = vsel %vm1447, %v3314, %v2707
      %v3347 = vsel %vm1447, %v3315, %v2709
      %v3348 = vsel %vm1447, %v3316, %v2711
      %v3349 = vsel %vm1447, %v3317, %v2713
      %v3350 = vsel %vm1447, %v3318, %v2715
      %v3351 = vsel %vm1447, %v3319, %v2717
      %v3352 = vsel %vm1447, %v3320, %v2719
      %v3353 = vsel %vm1447, %v3321, %v2721
      %v3354 = vsel %vm1480, %v3322, %v2761
      %v3355 = vsel %vm1480, %v3323, %v2763
      %v3356 = vsel %vm1480, %v3324, %v2765
      %v3357 = vsel %vm1480, %v3325, %v2767
      %v3358 = vsel %vm1480, %v3326, %v2769
      %v3359 = vsel %vm1480, %v3327, %v2771
      %v3360 = vsel %vm1480, %v3328, %v2773
      %v3361 = vsel %vm1480, %v3329, %v2775
      %v3362 = vsel %vm1480, %v3330, %v2777
      %v3363 = vsel %vm1480, %v3331, %v2779
      %v3364 = vsel %vm1480, %v3332, %v2781
      %v3365 = vsel %vm1480, %v3333, %v2783
      %v3366 = vsel %vm1480, %v3334, %v2785
      %v3367 = vsel %vm1480, %v3335, %v2787
      %v3368 = vsel %vm1480, %v3336, %v2789
      %v3369 = vsel %vm1480, %v3337, %v2791
      %v3370 = vsel %vm1480, %v3338, %v2793
      %v3371 = vsel %vm1480, %v3339, %v2795
      %v3372 = vsel %vm1480, %v3340, %v2797
      %v3373 = vsel %vm1480, %v3341, %v2799
      %v3374 = vsel %vm1480, %v3342, %v2801
      %v3375 = vsel %vm1480, %v3343, %v2803
      %v3376 = vsel %vm1480, %v3344, %v2805
      %v3377 = vsel %vm1480, %v3345, %v2807
      %v3378 = vsel %vm1480, %v3346, %v2809
      %v3379 = vsel %vm1480, %v3347, %v2811
      %v3380 = vsel %vm1480, %v3348, %v2813
      %v3381 = vsel %vm1480, %v3349, %v2815
      %v3382 = vsel %vm1480, %v3350, %v2817
      %v3383 = vsel %vm1480, %v3351, %v2819
      %v3384 = vsel %vm1480, %v3352, %v2821
      %v3385 = vsel %vm1480, %v3353, %v2823
      %v3386 = vsel %vm1513, %v3354, %v2862
      %v3387 = vsel %vm1513, %v3355, %v2864
      %v3388 = vsel %vm1513, %v3356, %v2866
      %v3389 = vsel %vm1513, %v3357, %v2868
      %v3390 = vsel %vm1513, %v3358, %v2870
      %v3391 = vsel %vm1513, %v3359, %v2872
      %v3392 = vsel %vm1513, %v3360, %v2874
      %v3393 = vsel %vm1513, %v3361, %v2876
      %v3394 = vsel %vm1513, %v3362, %v2878
      %v3395 = vsel %vm1513, %v3363, %v2880
      %v3396 = vsel %vm1513, %v3364, %v2882
      %v3397 = vsel %vm1513, %v3365, %v2884
      %v3398 = vsel %vm1513, %v3366, %v2886
      %v3399 = vsel %vm1513, %v3367, %v2888
      %v3400 = vsel %vm1513, %v3368, %v2890
      %v3401 = vsel %vm1513, %v3369, %v2892
      %v3402 = vsel %vm1513, %v3370, %v2894
      %v3403 = vsel %vm1513, %v3371, %v2896
      %v3404 = vsel %vm1513, %v3372, %v2898
      %v3405 = vsel %vm1513, %v3373, %v2900
      %v3406 = vsel %vm1513, %v3374, %v2902
      %v3407 = vsel %vm1513, %v3375, %v2904
      %v3408 = vsel %vm1513, %v3376, %v2906
      %v3409 = vsel %vm1513, %v3377, %v2908
      %v3410 = vsel %vm1513, %v3378, %v2910
      %v3411 = vsel %vm1513, %v3379, %v2912
      %v3412 = vsel %vm1513, %v3380, %v2914
      %v3413 = vsel %vm1513, %v3381, %v2916
      %v3414 = vsel %vm1513, %v3382, %v2918
      %v3415 = vsel %vm1513, %v3383, %v2920
      %v3416 = vsel %vm1513, %v3384, %v2922
      %v3417 = vsel %vm1513, %v3385, %v2924
      %v3418 = vsel %vm1546, %v3386, %v2960
      %v3419 = vsel %vm1546, %v3387, %v2962
      %v3420 = vsel %vm1546, %v3388, %v2964
      %v3421 = vsel %vm1546, %v3389, %v2966
      %v3422 = vsel %vm1546, %v3390, %v2968
      %v3423 = vsel %vm1546, %v3391, %v2970
      %v3424 = vsel %vm1546, %v3392, %v2972
      %v3425 = vsel %vm1546, %v3393, %v2974
      %v3426 = vsel %vm1546, %v3394, %v2976
      %v3427 = vsel %vm1546, %v3395, %v2978
      %v3428 = vsel %vm1546, %v3396, %v2980
      %v3429 = vsel %vm1546, %v3397, %v2982
      %v3430 = vsel %vm1546, %v3398, %v2984
      %v3431 = vsel %vm1546, %v3399, %v2986
      %v3432 = vsel %vm1546, %v3400, %v2988
      %v3433 = vsel %vm1546, %v3401, %v2990
      %v3434 = vsel %vm1546, %v3402, %v2992
      %v3435 = vsel %vm1546, %v3403, %v2994
      %v3436 = vsel %vm1546, %v3404, %v2996
      %v3437 = vsel %vm1546, %v3405, %v2998
      %v3438 = vsel %vm1546, %v3406, %v3000
      %v3439 = vsel %vm1546, %v3407, %v3002
      %v3440 = vsel %vm1546, %v3408, %v3004
      %v3441 = vsel %vm1546, %v3409, %v3006
      %v3442 = vsel %vm1546, %v3410, %v3008
      %v3443 = vsel %vm1546, %v3411, %v3010
      %v3444 = vsel %vm1546, %v3412, %v3012
      %v3445 = vsel %vm1546, %v3413, %v3014
      %v3446 = vsel %vm1546, %v3414, %v3016
      %v3447 = vsel %vm1546, %v3415, %v3018
      %v3448 = vsel %vm1546, %v3416, %v3020
      %v3449 = vsel %vm1546, %v3417, %v3022
      %v3450 = vsel %vm1579, %v3418, %v3062
      %v3451 = vsel %vm1579, %v3419, %v3064
      %v3452 = vsel %vm1579, %v3420, %v3066
      %v3453 = vsel %vm1579, %v3421, %v3068
      %v3454 = vsel %vm1579, %v3422, %v3070
      %v3455 = vsel %vm1579, %v3423, %v3072
      %v3456 = vsel %vm1579, %v3424, %v3074
      %v3457 = vsel %vm1579, %v3425, %v3076
      %v3458 = vsel %vm1579, %v3426, %v3078
      %v3459 = vsel %vm1579, %v3427, %v3080
      %v3460 = vsel %vm1579, %v3428, %v3082
      %v3461 = vsel %vm1579, %v3429, %v3084
      %v3462 = vsel %vm1579, %v3430, %v3086
      %v3463 = vsel %vm1579, %v3431, %v3088
      %v3464 = vsel %vm1579, %v3432, %v3090
      %v3465 = vsel %vm1579, %v3433, %v3092
      %v3466 = vsel %vm1579, %v3434, %v3094
      %v3467 = vsel %vm1579, %v3435, %v3096
      %v3468 = vsel %vm1579, %v3436, %v3098
      %v3469 = vsel %vm1579, %v3437, %v3100
      %v3470 = vsel %vm1579, %v3438, %v3102
      %v3471 = vsel %vm1579, %v3439, %v3104
      %v3472 = vsel %vm1579, %v3440, %v3106
      %v3473 = vsel %vm1579, %v3441, %v3108
      %v3474 = vsel %vm1579, %v3442, %v3110
      %v3475 = vsel %vm1579, %v3443, %v3112
      %v3476 = vsel %vm1579, %v3444, %v3114
      %v3477 = vsel %vm1579, %v3445, %v3116
      %v3478 = vsel %vm1579, %v3446, %v3118
      %v3479 = vsel %vm1579, %v3447, %v3120
      %v3480 = vsel %vm1579, %v3448, %v3122
      %v3481 = vsel %vm1579, %v3449, %v3124
      %v3482 = vsel %vm1612, %v3450, %v3163
      %v3483 = vsel %vm1612, %v3451, %v3165
      %v3484 = vsel %vm1612, %v3452, %v3167
      %v3485 = vsel %vm1612, %v3453, %v3169
      %v3486 = vsel %vm1612, %v3454, %v3171
      %v3487 = vsel %vm1612, %v3455, %v3173
      %v3488 = vsel %vm1612, %v3456, %v3175
      %v3489 = vsel %vm1612, %v3457, %v3177
      %v3490 = vsel %vm1612, %v3458, %v3179
      %v3491 = vsel %vm1612, %v3459, %v3181
      %v3492 = vsel %vm1612, %v3460, %v3183
      %v3493 = vsel %vm1612, %v3461, %v3185
      %v3494 = vsel %vm1612, %v3462, %v3187
      %v3495 = vsel %vm1612, %v3463, %v3189
      %v3496 = vsel %vm1612, %v3464, %v3191
      %v3497 = vsel %vm1612, %v3465, %v3193
      %v3498 = vsel %vm1612, %v3466, %v3195
      %v3499 = vsel %vm1612, %v3467, %v3197
      %v3500 = vsel %vm1612, %v3468, %v3199
      %v3501 = vsel %vm1612, %v3469, %v3201
      %v3502 = vsel %vm1612, %v3470, %v3203
      %v3503 = vsel %vm1612, %v3471, %v3205
      %v3504 = vsel %vm1612, %v3472, %v3207
      %v3505 = vsel %vm1612, %v3473, %v3209
      %v3506 = vsel %vm1612, %v3474, %v3211
      %v3507 = vsel %vm1612, %v3475, %v3213
      %v3508 = vsel %vm1612, %v3476, %v3215
      %v3509 = vsel %vm1612, %v3477, %v3217
      %v3510 = vsel %vm1612, %v3478, %v3219
      %v3511 = vsel %vm1612, %v3479, %v3221
      %v3512 = vsel %vm1612, %v3480, %v3223
      %v3513 = vsel %vm1612, %v3481, %v3225
      %s3514 = scalar_lea.vmem %s1, 40
      %v3515 = vld [vmem:[%s3514] sm:$0xff]
      %v3516 = vld [vmem:[%s3514 + $0x8] sm:$0xff]
      %v3517 = vld [vmem:[%s3514 + $0x10] sm:$0xff]
      %v3518 = vld [vmem:[%s3514 + $0x18] sm:$0xff]
      %v3519 = vld [vmem:[%s3514 + $0x20] sm:$0xf]
      %v3521 = vsel %vm1650, %v3482, 0
      %v3524 = vsel %vm1650, %v3483, 0
      %v3527 = vsel %vm1650, %v3484, 0
      %v3530 = vsel %vm1650, %v3485, 0
      %v3533 = vsel %vm1650, %v3486, 0
      %v3536 = vsel %vm1650, %v3487, 0
      %v3539 = vsel %vm1650, %v3488, 0
      %v3542 = vsel %vm1650, %v3489, 0
      %v3545 = vsel %vm1650, %v3490, 0
      %v3548 = vsel %vm1650, %v3491, 0
      %v3551 = vsel %vm1650, %v3492, 0
      %v3554 = vsel %vm1650, %v3493, 0
      %v3557 = vsel %vm1650, %v3494, 0
      %v3560 = vsel %vm1650, %v3495, 0
      %v3563 = vsel %vm1650, %v3496, 0
      %v3566 = vsel %vm1650, %v3497, 0
      %v3569 = vsel %vm1650, %v3498, 0
      %v3572 = vsel %vm1650, %v3499, 0
      %v3575 = vsel %vm1650, %v3500, 0
      %v3578 = vsel %vm1650, %v3501, 0
      %v3581 = vsel %vm1650, %v3502, 0
      %v3584 = vsel %vm1650, %v3503, 0
      %v3587 = vsel %vm1650, %v3504, 0
      %v3590 = vsel %vm1650, %v3505, 0
      %v3593 = vsel %vm1650, %v3506, 0
      %v3596 = vsel %vm1650, %v3507, 0
      %v3599 = vsel %vm1650, %v3508, 0
      %v3602 = vsel %vm1650, %v3509, 0
      %v3605 = vsel %vm1650, %v3510, 0
      %v3608 = vsel %vm1650, %v3511, 0
      %v3611 = vsel %vm1650, %v3512, 0
      %v3614 = vsel %vm1650, %v3513, 0
      %v3617 = vsel %vm1747, %v3519, 0
      %3619 = vmatpush.msra.mxu0 0.0
      %3620 = vmatpush.msra.mxu0 0.0
      %3621 = vmatpush.msra.mxu0 0.0
      %3622 = vmatpush.msra.mxu0 0.0
      %3623 = vmatpush.msra.mxu0 0.0
      %3624 = vmatpush.msra.mxu0 0.0
      %3625 = vmatpush.msra.mxu0 0.0
      %3626 = vmatpush.msra.mxu0 0.0
      %3627 = vmatpush.msra.mxu0 0.0
      %3628 = vmatpush.msra.mxu0 0.0
      %3629 = vmatpush.msra.mxu0 0.0
      %3630 = vmatpush.msra.mxu0 %v3617
      %3631 = vmatpush.msra.mxu0 %v3518
      %3632 = vmatpush.msra.mxu0 %v3517
      %3633 = vmatpush.msra.mxu0 %v3516
      %3634 = vmatpush.msra.mxu0 %v3515
      %3635 = vmatmul.f32.gmra.mxu0 %v3521
      %v3636 = vpop.f32.mrf.mxu0
      %v3637 = vadd.f32 0.0, %v3636
      %3638 = vmatmul.f32.gmra.mxu0 %v3524
      %v3639 = vpop.f32.mrf.mxu0
      %v3640 = vadd.f32 0.0, %v3639
      %3641 = vmatmul.f32.gmra.mxu0 %v3527
      %v3642 = vpop.f32.mrf.mxu0
      %v3643 = vadd.f32 0.0, %v3642
      %3644 = vmatmul.f32.gmra.mxu0 %v3530
      %v3645 = vpop.f32.mrf.mxu0
      %v3646 = vadd.f32 0.0, %v3645
      %3647 = vmatmul.f32.gmra.mxu0 %v3533
      %v3648 = vpop.f32.mrf.mxu0
      %v3649 = vadd.f32 0.0, %v3648
      %3650 = vmatmul.f32.gmra.mxu0 %v3536
      %v3651 = vpop.f32.mrf.mxu0
      %v3652 = vadd.f32 0.0, %v3651
      %3653 = vmatmul.f32.gmra.mxu0 %v3539
      %v3654 = vpop.f32.mrf.mxu0
      %v3655 = vadd.f32 0.0, %v3654
      %3656 = vmatmul.f32.gmra.mxu0 %v3542
      %v3657 = vpop.f32.mrf.mxu0
      %v3658 = vadd.f32 0.0, %v3657
      %3659 = vmatmul.f32.gmra.mxu0 %v3545
      %v3660 = vpop.f32.mrf.mxu0
      %v3661 = vadd.f32 0.0, %v3660
      %3662 = vmatmul.f32.gmra.mxu0 %v3548
      %v3663 = vpop.f32.mrf.mxu0
      %v3664 = vadd.f32 0.0, %v3663
      %3665 = vmatmul.f32.gmra.mxu0 %v3551
      %v3666 = vpop.f32.mrf.mxu0
      %v3667 = vadd.f32 0.0, %v3666
      %3668 = vmatmul.f32.gmra.mxu0 %v3554
      %v3669 = vpop.f32.mrf.mxu0
      %v3670 = vadd.f32 0.0, %v3669
      %3671 = vmatmul.f32.gmra.mxu0 %v3557
      %v3672 = vpop.f32.mrf.mxu0
      %v3673 = vadd.f32 0.0, %v3672
      %3674 = vmatmul.f32.gmra.mxu0 %v3560
      %v3675 = vpop.f32.mrf.mxu0
      %v3676 = vadd.f32 0.0, %v3675
      %3677 = vmatmul.f32.gmra.mxu0 %v3563
      %v3678 = vpop.f32.mrf.mxu0
      %v3679 = vadd.f32 0.0, %v3678
      %3680 = vmatmul.f32.gmra.mxu0 %v3566
      %v3681 = vpop.f32.mrf.mxu0
      %v3682 = vadd.f32 0.0, %v3681
      %3683 = vmatmul.f32.gmra.mxu0 %v3569
      %v3684 = vpop.f32.mrf.mxu0
      %v3685 = vadd.f32 0.0, %v3684
      %3686 = vmatmul.f32.gmra.mxu0 %v3572
      %v3687 = vpop.f32.mrf.mxu0
      %v3688 = vadd.f32 0.0, %v3687
      %3689 = vmatmul.f32.gmra.mxu0 %v3575
      %v3690 = vpop.f32.mrf.mxu0
      %v3691 = vadd.f32 0.0, %v3690
      %3692 = vmatmul.f32.gmra.mxu0 %v3578
      %v3693 = vpop.f32.mrf.mxu0
      %v3694 = vadd.f32 0.0, %v3693
      %3695 = vmatmul.f32.gmra.mxu0 %v3581
      %v3696 = vpop.f32.mrf.mxu0
      %v3697 = vadd.f32 0.0, %v3696
      %3698 = vmatmul.f32.gmra.mxu0 %v3584
      %v3699 = vpop.f32.mrf.mxu0
      %v3700 = vadd.f32 0.0, %v3699
      %3701 = vmatmul.f32.gmra.mxu0 %v3587
      %v3702 = vpop.f32.mrf.mxu0
      %v3703 = vadd.f32 0.0, %v3702
      %3704 = vmatmul.f32.gmra.mxu0 %v3590
      %v3705 = vpop.f32.mrf.mxu0
      %v3706 = vadd.f32 0.0, %v3705
      %3707 = vmatmul.f32.gmra.mxu0 %v3593
      %v3708 = vpop.f32.mrf.mxu0
      %v3709 = vadd.f32 0.0, %v3708
      %3710 = vmatmul.f32.gmra.mxu0 %v3596
      %v3711 = vpop.f32.mrf.mxu0
      %v3712 = vadd.f32 0.0, %v3711
      %3713 = vmatmul.f32.gmra.mxu0 %v3599
      %v3714 = vpop.f32.mrf.mxu0
      %v3715 = vadd.f32 0.0, %v3714
      %3716 = vmatmul.f32.gmra.mxu0 %v3602
      %v3717 = vpop.f32.mrf.mxu0
      %v3718 = vadd.f32 0.0, %v3717
      %3719 = vmatmul.f32.gmra.mxu0 %v3605
      %v3720 = vpop.f32.mrf.mxu0
      %v3721 = vadd.f32 0.0, %v3720
      %3722 = vmatmul.f32.gmra.mxu0 %v3608
      %v3723 = vpop.f32.mrf.mxu0
      %v3724 = vadd.f32 0.0, %v3723
      %3725 = vmatmul.f32.gmra.mxu0 %v3611
      %v3726 = vpop.f32.mrf.mxu0
      %v3727 = vadd.f32 0.0, %v3726
      %3728 = vmatmul.f32.gmra.mxu0 %v3614
      %v3729 = vpop.f32.mrf.mxu0
      %v3730 = vadd.f32 0.0, %v3729
      %3731 = vdwg.mxu0
      %v3732 = vmax.f32 %v3637, 0.0
      %v3733 = vmax.f32 %v3640, 0.0
      %v3734 = vmax.f32 %v3643, 0.0
      %v3735 = vmax.f32 %v3646, 0.0
      %v3736 = vmax.f32 %v3649, 0.0
      %v3737 = vmax.f32 %v3652, 0.0
      %v3738 = vmax.f32 %v3655, 0.0
      %v3739 = vmax.f32 %v3658, 0.0
      %v3740 = vmax.f32 %v3661, 0.0
      %v3741 = vmax.f32 %v3664, 0.0
      %v3742 = vmax.f32 %v3667, 0.0
      %v3743 = vmax.f32 %v3670, 0.0
      %v3744 = vmax.f32 %v3673, 0.0
      %v3745 = vmax.f32 %v3676, 0.0
      %v3746 = vmax.f32 %v3679, 0.0
      %v3747 = vmax.f32 %v3682, 0.0
      %v3748 = vmax.f32 %v3685, 0.0
      %v3749 = vmax.f32 %v3688, 0.0
      %v3750 = vmax.f32 %v3691, 0.0
      %v3751 = vmax.f32 %v3694, 0.0
      %v3752 = vmax.f32 %v3697, 0.0
      %v3753 = vmax.f32 %v3700, 0.0
      %v3754 = vmax.f32 %v3703, 0.0
      %v3755 = vmax.f32 %v3706, 0.0
      %v3756 = vmax.f32 %v3709, 0.0
      %v3757 = vmax.f32 %v3712, 0.0
      %v3758 = vmax.f32 %v3715, 0.0
      %v3759 = vmax.f32 %v3718, 0.0
      %v3760 = vmax.f32 %v3721, 0.0
      %v3761 = vmax.f32 %v3724, 0.0
      %v3762 = vmax.f32 %v3727, 0.0
      %v3763 = vmax.f32 %v3730, 0.0
      %s3764 = scalar_lea.vmem %s2, 8
      %v3765 = vld [vmem:[%s3764] sm:$0xff]
      %v3767 = vsel %vm1414, %v3732, 0
      %v3770 = vsel %vm1414, %v3733, 0
      %v3773 = vsel %vm1414, %v3734, 0
      %v3776 = vsel %vm1414, %v3735, 0
      %v3779 = vsel %vm1414, %v3736, 0
      %v3782 = vsel %vm1414, %v3737, 0
      %v3785 = vsel %vm1414, %v3738, 0
      %v3788 = vsel %vm1414, %v3739, 0
      %v3791 = vsel %vm1414, %v3740, 0
      %v3794 = vsel %vm1414, %v3741, 0
      %v3797 = vsel %vm1414, %v3742, 0
      %v3800 = vsel %vm1414, %v3743, 0
      %v3803 = vsel %vm1414, %v3744, 0
      %v3806 = vsel %vm1414, %v3745, 0
      %v3809 = vsel %vm1414, %v3746, 0
      %v3812 = vsel %vm1414, %v3747, 0
      %v3815 = vsel %vm1414, %v3748, 0
      %v3818 = vsel %vm1414, %v3749, 0
      %v3821 = vsel %vm1414, %v3750, 0
      %v3824 = vsel %vm1414, %v3751, 0
      %v3827 = vsel %vm1414, %v3752, 0
      %v3830 = vsel %vm1414, %v3753, 0
      %v3833 = vsel %vm1414, %v3754, 0
      %v3836 = vsel %vm1414, %v3755, 0
      %v3839 = vsel %vm1414, %v3756, 0
      %v3842 = vsel %vm1414, %v3757, 0
      %v3845 = vsel %vm1414, %v3758, 0
      %v3848 = vsel %vm1414, %v3759, 0
      %v3851 = vsel %vm1414, %v3760, 0
      %v3854 = vsel %vm1414, %v3761, 0
      %v3857 = vsel %vm1414, %v3762, 0
      %v3860 = vsel %vm1414, %v3763, 0
      %3862 = vmatpush.msra.mxu0 0.0
      %3863 = vmatpush.msra.mxu0 0.0
      %3864 = vmatpush.msra.mxu0 0.0
      %3865 = vmatpush.msra.mxu0 0.0
      %3866 = vmatpush.msra.mxu0 0.0
      %3867 = vmatpush.msra.mxu0 0.0
      %3868 = vmatpush.msra.mxu0 0.0
      %3869 = vmatpush.msra.mxu0 0.0
      %3870 = vmatpush.msra.mxu0 0.0
      %3871 = vmatpush.msra.mxu0 0.0
      %3872 = vmatpush.msra.mxu0 0.0
      %3873 = vmatpush.msra.mxu0 0.0
      %3874 = vmatpush.msra.mxu0 0.0
      %3875 = vmatpush.msra.mxu0 0.0
      %3876 = vmatpush.msra.mxu0 0.0
      %3877 = vmatpush.msra.mxu0 %v3765
      %3878 = vmatmul.f32.gmra.mxu0 %v3767
      %v3879 = vpop.f32.mrf.mxu0
      %v3880 = vadd.f32 0.0, %v3879
      %3881 = vmatmul.f32.gmra.mxu0 %v3770
      %v3882 = vpop.f32.mrf.mxu0
      %v3883 = vadd.f32 0.0, %v3882
      %3884 = vmatmul.f32.gmra.mxu0 %v3773
      %v3885 = vpop.f32.mrf.mxu0
      %v3886 = vadd.f32 0.0, %v3885
      %3887 = vmatmul.f32.gmra.mxu0 %v3776
      %v3888 = vpop.f32.mrf.mxu0
      %v3889 = vadd.f32 0.0, %v3888
      %3890 = vmatmul.f32.gmra.mxu0 %v3779
      %v3891 = vpop.f32.mrf.mxu0
      %v3892 = vadd.f32 0.0, %v3891
      %3893 = vmatmul.f32.gmra.mxu0 %v3782
      %v3894 = vpop.f32.mrf.mxu0
      %v3895 = vadd.f32 0.0, %v3894
      %3896 = vmatmul.f32.gmra.mxu0 %v3785
      %v3897 = vpop.f32.mrf.mxu0
      %v3898 = vadd.f32 0.0, %v3897
      %3899 = vmatmul.f32.gmra.mxu0 %v3788
      %v3900 = vpop.f32.mrf.mxu0
      %v3901 = vadd.f32 0.0, %v3900
      %3902 = vmatmul.f32.gmra.mxu0 %v3791
      %v3903 = vpop.f32.mrf.mxu0
      %v3904 = vadd.f32 0.0, %v3903
      %3905 = vmatmul.f32.gmra.mxu0 %v3794
      %v3906 = vpop.f32.mrf.mxu0
      %v3907 = vadd.f32 0.0, %v3906
      %3908 = vmatmul.f32.gmra.mxu0 %v3797
      %v3909 = vpop.f32.mrf.mxu0
      %v3910 = vadd.f32 0.0, %v3909
      %3911 = vmatmul.f32.gmra.mxu0 %v3800
      %v3912 = vpop.f32.mrf.mxu0
      %v3913 = vadd.f32 0.0, %v3912
      %3914 = vmatmul.f32.gmra.mxu0 %v3803
      %v3915 = vpop.f32.mrf.mxu0
      %v3916 = vadd.f32 0.0, %v3915
      %3917 = vmatmul.f32.gmra.mxu0 %v3806
      %v3918 = vpop.f32.mrf.mxu0
      %v3919 = vadd.f32 0.0, %v3918
      %3920 = vmatmul.f32.gmra.mxu0 %v3809
      %v3921 = vpop.f32.mrf.mxu0
      %v3922 = vadd.f32 0.0, %v3921
      %3923 = vmatmul.f32.gmra.mxu0 %v3812
      %v3924 = vpop.f32.mrf.mxu0
      %v3925 = vadd.f32 0.0, %v3924
      %3926 = vmatmul.f32.gmra.mxu0 %v3815
      %v3927 = vpop.f32.mrf.mxu0
      %v3928 = vadd.f32 0.0, %v3927
      %3929 = vmatmul.f32.gmra.mxu0 %v3818
      %v3930 = vpop.f32.mrf.mxu0
      %v3931 = vadd.f32 0.0, %v3930
      %3932 = vmatmul.f32.gmra.mxu0 %v3821
      %v3933 = vpop.f32.mrf.mxu0
      %v3934 = vadd.f32 0.0, %v3933
      %3935 = vmatmul.f32.gmra.mxu0 %v3824
      %v3936 = vpop.f32.mrf.mxu0
      %v3937 = vadd.f32 0.0, %v3936
      %3938 = vmatmul.f32.gmra.mxu0 %v3827
      %v3939 = vpop.f32.mrf.mxu0
      %v3940 = vadd.f32 0.0, %v3939
      %3941 = vmatmul.f32.gmra.mxu0 %v3830
      %v3942 = vpop.f32.mrf.mxu0
      %v3943 = vadd.f32 0.0, %v3942
      %3944 = vmatmul.f32.gmra.mxu0 %v3833
      %v3945 = vpop.f32.mrf.mxu0
      %v3946 = vadd.f32 0.0, %v3945
      %3947 = vmatmul.f32.gmra.mxu0 %v3836
      %v3948 = vpop.f32.mrf.mxu0
      %v3949 = vadd.f32 0.0, %v3948
      %3950 = vmatmul.f32.gmra.mxu0 %v3839
      %v3951 = vpop.f32.mrf.mxu0
      %v3952 = vadd.f32 0.0, %v3951
      %3953 = vmatmul.f32.gmra.mxu0 %v3842
      %v3954 = vpop.f32.mrf.mxu0
      %v3955 = vadd.f32 0.0, %v3954
      %3956 = vmatmul.f32.gmra.mxu0 %v3845
      %v3957 = vpop.f32.mrf.mxu0
      %v3958 = vadd.f32 0.0, %v3957
      %3959 = vmatmul.f32.gmra.mxu0 %v3848
      %v3960 = vpop.f32.mrf.mxu0
      %v3961 = vadd.f32 0.0, %v3960
      %3962 = vmatmul.f32.gmra.mxu0 %v3851
      %v3963 = vpop.f32.mrf.mxu0
      %v3964 = vadd.f32 0.0, %v3963
      %3965 = vmatmul.f32.gmra.mxu0 %v3854
      %v3966 = vpop.f32.mrf.mxu0
      %v3967 = vadd.f32 0.0, %v3966
      %3968 = vmatmul.f32.gmra.mxu0 %v3857
      %v3969 = vpop.f32.mrf.mxu0
      %v3970 = vadd.f32 0.0, %v3969
      %3971 = vmatmul.f32.gmra.mxu0 %v3860
      %v3972 = vpop.f32.mrf.mxu0
      %v3973 = vadd.f32 0.0, %v3972
      %3974 = vdwg.mxu0
      %v3975 = vadd.f32 %v2106, %v3880
      %v3976 = vadd.f32 %v2107, %v3883
      %v3977 = vadd.f32 %v2108, %v3886
      %v3978 = vadd.f32 %v2109, %v3889
      %v3979 = vadd.f32 %v2110, %v3892
      %v3980 = vadd.f32 %v2111, %v3895
      %v3981 = vadd.f32 %v2112, %v3898
      %v3982 = vadd.f32 %v2113, %v3901
      %v3983 = vadd.f32 %v2114, %v3904
      %v3984 = vadd.f32 %v2115, %v3907
      %v3985 = vadd.f32 %v2116, %v3910
      %v3986 = vadd.f32 %v2117, %v3913
      %v3987 = vadd.f32 %v2118, %v3916
      %v3988 = vadd.f32 %v2119, %v3919
      %v3989 = vadd.f32 %v2120, %v3922
      %v3990 = vadd.f32 %v2121, %v3925
      %v3991 = vadd.f32 %v2122, %v3928
      %v3992 = vadd.f32 %v2123, %v3931
      %v3993 = vadd.f32 %v2124, %v3934
      %v3994 = vadd.f32 %v2125, %v3937
      %v3995 = vadd.f32 %v2126, %v3940
      %v3996 = vadd.f32 %v2127, %v3943
      %v3997 = vadd.f32 %v2128, %v3946
      %v3998 = vadd.f32 %v2129, %v3949
      %v3999 = vadd.f32 %v2130, %v3952
      %v4000 = vadd.f32 %v2131, %v3955
      %v4001 = vadd.f32 %v2132, %v3958
      %v4002 = vadd.f32 %v2133, %v3961
      %v4003 = vadd.f32 %v2134, %v3964
      %v4004 = vadd.f32 %v2135, %v3967
      %v4005 = vadd.f32 %v2136, %v3970
      %v4006 = vadd.f32 %v2137, %v3973
      %v4007 = vmax.f32 %v3975, 0.0
      %v4008 = vmax.f32 %v3976, 0.0
      %v4009 = vmax.f32 %v3977, 0.0
      %v4010 = vmax.f32 %v3978, 0.0
      %v4011 = vmax.f32 %v3979, 0.0
      %v4012 = vmax.f32 %v3980, 0.0
      %v4013 = vmax.f32 %v3981, 0.0
      %v4014 = vmax.f32 %v3982, 0.0
      %v4015 = vmax.f32 %v3983, 0.0
      %v4016 = vmax.f32 %v3984, 0.0
      %v4017 = vmax.f32 %v3985, 0.0
      %v4018 = vmax.f32 %v3986, 0.0
      %v4019 = vmax.f32 %v3987, 0.0
      %v4020 = vmax.f32 %v3988, 0.0
      %v4021 = vmax.f32 %v3989, 0.0
      %v4022 = vmax.f32 %v3990, 0.0
      %v4023 = vmax.f32 %v3991, 0.0
      %v4024 = vmax.f32 %v3992, 0.0
      %v4025 = vmax.f32 %v3993, 0.0
      %v4026 = vmax.f32 %v3994, 0.0
      %v4027 = vmax.f32 %v3995, 0.0
      %v4028 = vmax.f32 %v3996, 0.0
      %v4029 = vmax.f32 %v3997, 0.0
      %v4030 = vmax.f32 %v3998, 0.0
      %v4031 = vmax.f32 %v3999, 0.0
      %v4032 = vmax.f32 %v4000, 0.0
      %v4033 = vmax.f32 %v4001, 0.0
      %v4034 = vmax.f32 %v4002, 0.0
      %v4035 = vmax.f32 %v4003, 0.0
      %v4036 = vmax.f32 %v4004, 0.0
      %v4037 = vmax.f32 %v4005, 0.0
      %v4038 = vmax.f32 %v4006, 0.0
      %4039 = vst.msk [vmem:[%s170] sm:$0xff] %vm171, %v4007
      %4040 = vst.msk [vmem:[%s170 + $0x8] sm:$0xff] %vm171, %v4008
      %4041 = vst.msk [vmem:[%s170 + $0x10] sm:$0xff] %vm171, %v4009
      %4042 = vst.msk [vmem:[%s170 + $0x18] sm:$0xff] %vm171, %v4010
      %4043 = vst.msk [vmem:[%s170 + $0x20] sm:$0xff] %vm171, %v4011
      %4044 = vst.msk [vmem:[%s170 + $0x28] sm:$0xff] %vm171, %v4012
      %4045 = vst.msk [vmem:[%s170 + $0x30] sm:$0xff] %vm171, %v4013
      %4046 = vst.msk [vmem:[%s170 + $0x38] sm:$0xff] %vm171, %v4014
      %4047 = vst.msk [vmem:[%s170 + $0x40] sm:$0xff] %vm171, %v4015
      %4048 = vst.msk [vmem:[%s170 + $0x48] sm:$0xff] %vm171, %v4016
      %4049 = vst.msk [vmem:[%s170 + $0x50] sm:$0xff] %vm171, %v4017
      %4050 = vst.msk [vmem:[%s170 + $0x58] sm:$0xff] %vm171, %v4018
      %4051 = vst.msk [vmem:[%s170 + $0x60] sm:$0xff] %vm171, %v4019
      %4052 = vst.msk [vmem:[%s170 + $0x68] sm:$0xff] %vm171, %v4020
      %4053 = vst.msk [vmem:[%s170 + $0x70] sm:$0xff] %vm171, %v4021
      %4054 = vst.msk [vmem:[%s170 + $0x78] sm:$0xff] %vm171, %v4022
      %4055 = vst.msk [vmem:[%s170 + $0x80] sm:$0xff] %vm171, %v4023
      %4056 = vst.msk [vmem:[%s170 + $0x88] sm:$0xff] %vm171, %v4024
      %4057 = vst.msk [vmem:[%s170 + $0x90] sm:$0xff] %vm171, %v4025
      %4058 = vst.msk [vmem:[%s170 + $0x98] sm:$0xff] %vm171, %v4026
      %4059 = vst.msk [vmem:[%s170 + $0xa0] sm:$0xff] %vm171, %v4027
      %4060 = vst.msk [vmem:[%s170 + $0xa8] sm:$0xff] %vm171, %v4028
      %4061 = vst.msk [vmem:[%s170 + $0xb0] sm:$0xff] %vm171, %v4029
      %4062 = vst.msk [vmem:[%s170 + $0xb8] sm:$0xff] %vm171, %v4030
      %4063 = vst.msk [vmem:[%s170 + $0xc0] sm:$0xff] %vm171, %v4031
      %4064 = vst.msk [vmem:[%s170 + $0xc8] sm:$0xff] %vm171, %v4032
      %4065 = vst.msk [vmem:[%s170 + $0xd0] sm:$0xff] %vm171, %v4033
      %4066 = vst.msk [vmem:[%s170 + $0xd8] sm:$0xff] %vm171, %v4034
      %4067 = vst.msk [vmem:[%s170 + $0xe0] sm:$0xff] %vm171, %v4035
      %4068 = vst.msk [vmem:[%s170 + $0xe8] sm:$0xff] %vm171, %v4036
      %4069 = vst.msk [vmem:[%s170 + $0xf0] sm:$0xff] %vm171, %v4037
      %4070 = vst.msk [vmem:[%s170 + $0xf8] sm:$0xff] %vm171, %v4038
      %p4071 = scmp.lt.s32.totalorder %s14, 1
      %s4072 = scalar_select %p4071, %s14, 1
      %s4073 = smul.addr %s4072, 32
      %s4074 = smul.addr %s4073, 8
      %s4075 = scalar_lea.vmem %s3, %s4074
      // Predicated region
      $region33: #{tpu_custom_call.1} parent=31 // pred_check
        %p4076 = pneg %p100
      $region34: #{tpu_custom_call.1} parent=31 // pred_check_branch
        %4078 = sbr.rel (%p4076) target = $region36
      $region35: #{tpu_custom_call.1} parent=31 // pred_region
        _
      $region36: #{tpu_custom_call.1} parent=31 // pred_fallthru
        _
    $region32: #{tpu_custom_call.1} parent=5 // pred_fallthru
      _
    %p4079 = scmp.le.s32.totalorder 2, %s9
    // Predicated region
    $region37: #{tpu_custom_call.1} parent=5 // pred_check
      %p4080 = pneg %p4079
    $region38: #{tpu_custom_call.1} parent=5 // pred_check_branch
      %4082 = sbr.rel (%p4080) target = $region40
    $region39: #{tpu_custom_call.1} parent=5 // pred_region
      %s4083 = ssub.s32 %s9, 2
      // Predicated region
      $region41: #{tpu_custom_call.1} parent=39 // pred_check
        %p4084 = pneg %p106
      $region42: #{tpu_custom_call.1} parent=39 // pred_check_branch
        %4086 = sbr.rel (%p4084) target = $region44
      $region43: #{tpu_custom_call.1} parent=39 // pred_region
        %p4087 = scmp.lt.s32.totalorder %s15, 1
        %s4088 = scalar_select %p4087, %s15, 1
        %s4089 = smul.addr %s4088, 32
        %s4090 = smul.addr %s4089, 8
        %s4091 = scalar_lea.vmem %s3, %s4090
      $region44: #{tpu_custom_call.1} parent=39 // pred_fallthru
        _
    $region40: #{tpu_custom_call.1} parent=5 // pred_fallthru
      _
  $region6: #{tpu_custom_call.1} parent=0 // loop_footer
    %s13 = sadd.s32 1, %s9
  $region7: #{tpu_custom_call.1} parent=0 // loop_footer_branch
    %8 = sbr.rel target = $region3
  $region8: #{tpu_custom_call.1} parent=0 // loop_exit
    _

</llo_original>
